<compile_context>
chip_gen: v5e
topology: v5e:2x2
jax: 0.10.0
libtpu: 0.0.40
codegen_flags: <defaults>
</compile_context>

<pallas_src>
import functools
import math

import jax
import jax.numpy as jnp
from jax.experimental import pallas as pl
from jax.experimental.pallas import tpu as pltpu


_NEG_INF = -1000000000.0            # matches torch masked_fill(mask == 0, -1e9)
# 32 MiB scoped VMEM: explicit budget, safe on v5e/v6e (128 MiB) and v7x (64 MiB).
# For long sequences on v7x, keep <= ~48 MiB or add flash-style Tq/Tk blocking.
_VMEM_LIMIT = 32 * 1024 * 1024


# ----------------------------------------------------------------------------
# In-kernel helpers (operate on loaded VMEM values / scratch refs)
# ----------------------------------------------------------------------------

def _add_norm(x, y, gamma, beta, eps):
    """Residual add + LayerNorm (biased variance, f32 statistics)."""
    z = x + y
    mu = jnp.mean(z, axis=-1, keepdims=True)
    var = jnp.mean((z - mu) ** 2, axis=-1, keepdims=True)
    return (z - mu) * jax.lax.rsqrt(var + eps) * gamma + beta


def _mha(xq_b16, xkv_b16, keep, wq, bq, wkv, bkv, wo, bo, ctx_ref, n_heads, d_k):
    """Multi-head attention for one batch element.

    Weights arrive in bf16 (no in-kernel cast); biases and softmax statistics
    stay f32.  q/k/v are packed to bf16 once; each head's context is written
    into the `ctx_ref` VMEM scratch at its lane offset."""
    d_model = n_heads * d_k
    q = jnp.dot(xq_b16, wq, preferred_element_type=jnp.float32) + bq      # (Tq, D)
    kv = jnp.dot(xkv_b16, wkv, preferred_element_type=jnp.float32) + bkv  # (Tk, 2D)
    q_b = q.astype(jnp.bfloat16)
    k_b = kv[:, :d_model].astype(jnp.bfloat16)
    v_b = kv[:, d_model:].astype(jnp.bfloat16)
    scale = 1.0 / math.sqrt(d_k)
    for h in range(n_heads):                                  # static, unrolled
        sl = slice(h * d_k, (h + 1) * d_k)
        # q @ k^T via dot_general contracting the last dims (no transpose)
        s = jax.lax.dot_general(q_b[:, sl], k_b[:, sl], (((1,), (1,)), ((), ())),
                                preferred_element_type=jnp.float32) * scale
        s = jnp.where(keep, s, _NEG_INF)                      # masked_fill semantics
        s = s - jnp.max(s, axis=-1, keepdims=True)            # f32 softmax stats
        p = jnp.exp(s)
        p = p * pl.reciprocal(jnp.sum(p, axis=-1, keepdims=True), approx=True)
        ctx_ref[:, sl] = jnp.dot(p.astype(jnp.bfloat16), v_b[:, sl],
                                 preferred_element_type=jnp.float32)
    return jnp.dot(ctx_ref[...].astype(jnp.bfloat16), wo,
                   preferred_element_type=jnp.float32) + bo


# ----------------------------------------------------------------------------
# Pallas kernels
# ----------------------------------------------------------------------------

def _decoder_layer_kernel(
        x_ref, enc_ref, tkeep_ref, ekeep_ref,
        sa_wq, sa_bq, sa_wkv, sa_bkv, sa_wo, sa_bo, ln1_g, ln1_b,
        ca_wq, ca_bq, ca_wkv, ca_bkv, ca_wo, ca_bo, ln2_g, ln2_b,
        ff_w1, ff_b1, ff_w2, ff_b2, ln3_g, ln3_b,
        o_ref, ctx_ref, *, n_heads, d_k, eps):
    """One full decoder layer fused into a single kernel (one batch element
    per grid step): self-attn -> add&norm -> cross-attn -> add&norm ->
    FFN -> add&norm."""
    T = x_ref.shape[0]

    x = x_ref[...]                                   # (T, D) f32 residual stream

    # Masks rebuilt in-kernel from small padding vectors (no O(T*Tk) DMA).
    tkeep = tkeep_ref[...] > 0.5                     # (1, T) target-padding keep
    ekeep = ekeep_ref[...] > 0.5                     # (1, S) encoder-padding keep
    row = jax.lax.broadcasted_iota(jnp.int32, (T, T), 0)
    col = jax.lax.broadcasted_iota(jnp.int32, (T, T), 1)
    self_keep = jnp.logical_and(col <= row, tkeep)   # (T, T) causal & padding

    # ---- self attention + add & LayerNorm -----------------------------------
    x_b = x.astype(jnp.bfloat16)
    sa = _mha(x_b, x_b, self_keep,
              sa_wq[...], sa_bq[...], sa_wkv[...], sa_bkv[...],
              sa_wo[...], sa_bo[...], ctx_ref, n_heads, d_k)
    x = _add_norm(x, sa, ln1_g[...], ln1_b[...], eps)

    # ---- cross attention + add & LayerNorm ----------------------------------
    ca = _mha(x.astype(jnp.bfloat16), enc_ref[...], ekeep,
              ca_wq[...], ca_bq[...], ca_wkv[...], ca_bkv[...],
              ca_wo[...], ca_bo[...], ctx_ref, n_heads, d_k)
    x = _add_norm(x, ca, ln2_g[...], ln2_b[...], eps)

    # ---- position-wise FFN + add & LayerNorm --------------------------------
    h = jnp.dot(x.astype(jnp.bfloat16), ff_w1[...],
                preferred_element_type=jnp.float32) + ff_b1[...]
    h = jnp.maximum(h, 0.0)
    y = jnp.dot(h.astype(jnp.bfloat16), ff_w2[...],
                preferred_element_type=jnp.float32) + ff_b2[...]
    o_ref[...] = _add_norm(x, y, ln3_g[...], ln3_b[...], eps)


def _out_proj_kernel(x_ref, w_ref, b_ref, o_ref):
    # x: (tm, D) bf16, w: (D, tv) bf16, b: (1, tv) f32 -> lane-dense f32 stores
    o_ref[...] = jnp.dot(x_ref[...], w_ref[...],
                         preferred_element_type=jnp.float32) + b_ref[...]


# ----------------------------------------------------------------------------
# Thin wrappers around pallas_call
# ----------------------------------------------------------------------------

def decoder_layer(x, enc_b16, tgt_keep, enc_keep, lp, n_heads, eps=1e-5):
    B, T, D = x.shape
    S = enc_b16.shape[1]
    d_k = D // n_heads
    d_ff = lp["ff_w1"].shape[1]

    def rep(shape):                    # weight broadcast: same block every step
        return pl.BlockSpec(shape, lambda b: (0, 0))

    kernel = functools.partial(_decoder_layer_kernel,
                               n_heads=n_heads, d_k=d_k, eps=eps)
    return pl.pallas_call(
        kernel,
        out_shape=jax.ShapeDtypeStruct((B, T, D), jnp.float32),
        grid=(B,),
        in_specs=[
            pl.BlockSpec((None, T, D), lambda b: (b, 0, 0)),   # x (f32)
            pl.BlockSpec((None, S, D), lambda b: (b, 0, 0)),   # encoder out (bf16)
            pl.BlockSpec((None, 1, T), lambda b: (b, 0, 0)),   # tgt padding keep
            pl.BlockSpec((None, 1, S), lambda b: (b, 0, 0)),   # enc padding keep
            rep((D, D)), rep((1, D)), rep((D, 2 * D)), rep((1, 2 * D)),
            rep((D, D)), rep((1, D)), rep((1, D)), rep((1, D)),           # self-attn + ln1
            rep((D, D)), rep((1, D)), rep((D, 2 * D)), rep((1, 2 * D)),
            rep((D, D)), rep((1, D)), rep((1, D)), rep((1, D)),           # cross-attn + ln2
            rep((D, d_ff)), rep((1, d_ff)), rep((d_ff, D)), rep((1, D)),
            rep((1, D)), rep((1, D)),                                      # ffn + ln3
        ],
        out_specs=pl.BlockSpec((None, T, D), lambda b: (b, 0, 0)),
        scratch_shapes=[pltpu.VMEM((T, D), jnp.float32)],      # per-head ctx assembly
        compiler_params=pltpu.CompilerParams(
            dimension_semantics=("parallel",),                 # batch across TCs (v7x)
            vmem_limit_bytes=_VMEM_LIMIT),
    )(x, enc_b16, tgt_keep, enc_keep,
      lp["sa_wq"], lp["sa_bq"], lp["sa_wkv"], lp["sa_bkv"], lp["sa_wo"], lp["sa_bo"],
      lp["ln1_g"], lp["ln1_b"],
      lp["ca_wq"], lp["ca_bq"], lp["ca_wkv"], lp["ca_bkv"], lp["ca_wo"], lp["ca_bo"],
      lp["ln2_g"], lp["ln2_b"],
      lp["ff_w1"], lp["ff_b1"], lp["ff_w2"], lp["ff_b2"],
      lp["ln3_g"], lp["ln3_b"])


def _pick_tile(total, candidates):
    for c in candidates:
        if c <= total and total % c == 0:
            return c
    return total


def output_projection(x2d_b16, w_pad_b16, b_pad):
    """Final vocab projection, tiled over rows and (128-multiple) vocab lanes so
    the weight streams through VMEM and stores stay lane-dense."""
    M, D = x2d_b16.shape
    v_pad = w_pad_b16.shape[1]
    tm = _pick_tile(M, (512, 256, 128))
    tv = _pick_tile(v_pad, (2048, 1024, 512, 256, 128))
    return pl.pallas_call(
        _out_proj_kernel,
        out_shape=jax.ShapeDtypeStruct((M, v_pad), jnp.float32),
        grid=(M // tm, v_pad // tv),
        in_specs=[
            pl.BlockSpec((tm, D), lambda i, j: (i, 0)),
            pl.BlockSpec((D, tv), lambda i, j: (0, j)),
            pl.BlockSpec((1, tv), lambda i, j: (0, j)),
        ],
        out_specs=pl.BlockSpec((tm, tv), lambda i, j: (i, j)),
        compiler_params=pltpu.CompilerParams(
            dimension_semantics=("parallel", "parallel"),
            vmem_limit_bytes=_VMEM_LIMIT),
    )(x2d_b16, w_pad_b16, b_pad)


# ----------------------------------------------------------------------------
# Model (parameters + forward orchestration)
# ----------------------------------------------------------------------------

def make_positional_encoding(max_len, d_model):
    pos = jnp.arange(max_len, dtype=jnp.float32)[:, None]
    div = jnp.exp(jnp.arange(0, d_model, 2, dtype=jnp.float32)
                  * (-math.log(10000.0) / d_model))
    pe = jnp.zeros((max_len, d_model), jnp.float32)
    pe = pe.at[:, 0::2].set(jnp.sin(pos * div))
    pe = pe.at[:, 1::2].set(jnp.cos(pos * div))
    return pe


def init_params(key, vocab_size, d_model, n_heads, n_layers, d_ff, max_len):
    n_keys = 1 + n_layers * 20 + 2 + 4              # +slack
    keys = iter(jax.random.split(key, n_keys))

    def lin(din, dout):
        w = jax.random.normal(next(keys), (din, dout), jnp.float32) * 0.05
        b = jax.random.normal(next(keys), (dout,), jnp.float32) * 0.01
        return w, b

    params = {
        "embedding": jax.random.normal(next(keys), (vocab_size, d_model),
                                       jnp.float32) * 0.1,
        "pos_encoding": make_positional_encoding(max_len, d_model),
        "layers": [],
    }
    for _ in range(n_layers):
        lp = {}
        for prefix in ("sa", "ca"):
            wq, bq = lin(d_model, d_model)
            wk, bk = lin(d_model, d_model)
            wv, bv = lin(d_model, d_model)
            wo, bo = lin(d_model, d_model)
            # Weights stored in bf16 (halved HBM traffic / VMEM); biases f32.
            lp[f"{prefix}_wq"] = wq.astype(jnp.bfloat16)
            lp[f"{prefix}_bq"] = bq.reshape(1, d_model)
            lp[f"{prefix}_wkv"] = jnp.concatenate([wk, wv], axis=1).astype(jnp.bfloat16)
            lp[f"{prefix}_bkv"] = jnp.concatenate([bk, bv], axis=0).reshape(1, 2 * d_model)
            lp[f"{prefix}_wo"] = wo.astype(jnp.bfloat16)
            lp[f"{prefix}_bo"] = bo.reshape(1, d_model)
        w1, b1 = lin(d_model, d_ff)
        w2, b2 = lin(d_ff, d_model)
        lp["ff_w1"] = w1.astype(jnp.bfloat16)
        lp["ff_b1"] = b1.reshape(1, d_ff)
        lp["ff_w2"] = w2.astype(jnp.bfloat16)
        lp["ff_b2"] = b2.reshape(1, d_model)
        for i in (1, 2, 3):
            lp[f"ln{i}_g"] = jnp.ones((1, d_model), jnp.float32)
            lp[f"ln{i}_b"] = jnp.zeros((1, d_model), jnp.float32)
        params["layers"].append(lp)

    # Output head: vocab padded to a multiple of 128 lanes and cast to bf16
    # ONCE at init (no per-forward jnp.pad of a large weight).
    out_w, out_b = lin(d_model, vocab_size)
    v_pad = ((vocab_size + 127) // 128) * 128
    params["out_w_pad"] = jnp.pad(out_w, ((0, 0), (0, v_pad - vocab_size))).astype(jnp.bfloat16)
    params["out_b_pad"] = jnp.pad(out_b, ((0, v_pad - vocab_size),)).reshape(1, v_pad)
    return params


def transformer_decoder_forward(params, tgt, encoder_output, encoder_mask,
                                *, d_model, n_heads):
    B, T = tgt.shape
    S = encoder_output.shape[1]
    vocab = params["embedding"].shape[0]

    # Embedding gather + sqrt(d_model) scale + positional encoding: tiny
    # memory-bound glue, left to XLA to fuse with the gather (no Pallas launch).
    x = (jnp.take(params["embedding"], tgt, axis=0) * math.sqrt(d_model)
         + params["pos_encoding"][:T][None, :, :])

    # Only padding-keep vectors go to the kernel; causal mask is rebuilt there.
    tgt_keep = (tgt != 0).astype(jnp.float32).reshape(B, 1, T)
    if encoder_mask is not None:
        enc_keep = (encoder_mask != 0).astype(jnp.float32).reshape(B, 1, S)
    else:
        enc_keep = jnp.ones((B, 1, S), jnp.float32)

    enc_b16 = encoder_output.astype(jnp.bfloat16)    # K/V source only -> bf16 once

    for lp in params["layers"]:
        x = decoder_layer(x, enc_b16, tgt_keep, enc_keep, lp, n_heads)

    x2d = x.reshape(B * T, d_model).astype(jnp.bfloat16)
    logits_pad = output_projection(x2d, params["out_w_pad"], params["out_b_pad"])
    return logits_pad[:, :vocab].reshape(B, T, vocab)


# ----------------------------------------------------------------------------
# Demo
# ----------------------------------------------------------------------------

if __name__ == "__main__":
    vocab_size = 50
    d_model = 32       # NOTE: real configs should use a multiple of 128 for
    n_heads = 4        # lane-dense stores (esp. v5e); toy size kept per spec.
    n_layers = 2
    d_ff = 64
    max_len = 64

    B, T, S = 2, 8, 16

    key = jax.random.PRNGKey(0)
    k_tok, k_enc, k_par = jax.random.split(key, 3)

    tgt = jax.random.randint(k_tok, (B, T), 1, vocab_size, dtype=jnp.int32)
    tgt = tgt.at[1, -2:].set(0)   # some padding tokens in batch element 1
    encoder_output = jax.random.normal(k_enc, (B, S, d_model), jnp.float32)
    encoder_mask = jnp.ones((B, S), jnp.int32).at[1, -3:].set(0)

    params = init_params(k_par, vocab_size, d_model, n_heads, n_layers, d_ff, max_len)

    fwd = jax.jit(functools.partial(transformer_decoder_forward,
                                    d_model=d_model, n_heads=n_heads))

    logits = fwd(params, tgt, encoder_output, encoder_mask)
    logits = jax.block_until_ready(logits)

    assert logits.shape == (B, T, vocab_size)
    assert bool(jnp.all(jnp.isfinite(logits)))
    print("KERNEL_OK")
</pallas_src>

<mosaic_0001>
module attributes {stable_mosaic.version = 11 : i64} {
  func.func @_out_proj_kernel(%arg0: i32, %arg1: i32, %arg2: memref<16x32xbf16, #tpu.memory_space<vmem>>, %arg3: memref<32x128xbf16, #tpu.memory_space<vmem>>, %arg4: memref<1x128xf32, #tpu.memory_space<vmem>>, %arg5: memref<16x128xf32, #tpu.memory_space<vmem>>) attributes {dimension_semantics = [#tpu.dimension_semantics<parallel>, #tpu.dimension_semantics<parallel>], iteration_bounds = array<i64: 1, 1>, scalar_prefetch = 0 : i64, scratch_operands = 0 : i64, tpu.core_type = #tpu.core_type<tc>, window_params = [{transform_indices = @transform_0, window_bounds = array<i64: 16, 32>}, {transform_indices = @transform_1, window_bounds = array<i64: 32, 128>}, {transform_indices = @transform_2, window_bounds = array<i64: 1, 128>}, {transform_indices = @transform_3, window_bounds = array<i64: 16, 128>}]} {
    %c0 = arith.constant 0 : index
    %c0_0 = arith.constant 0 : index
    %0 = vector.load %arg2[%c0, %c0_0] : memref<16x32xbf16, #tpu.memory_space<vmem>>, vector<16x32xbf16>
    %c0_1 = arith.constant 0 : index
    %c0_2 = arith.constant 0 : index
    %1 = vector.load %arg3[%c0_1, %c0_2] : memref<32x128xbf16, #tpu.memory_space<vmem>>, vector<32x128xbf16>
    %cst = arith.constant dense<0.000000e+00> : vector<16x128xf32>
    %2 = tpu.matmul %0, %1, %cst {dimension_numbers = #tpu.dot_dimension_numbers<[1], [0], [0], [1], [0, 0, 1, 1], [], []>} : vector<16x32xbf16>, vector<32x128xbf16>, vector<16x128xf32> -> vector<16x128xf32>
    %c0_3 = arith.constant 0 : index
    %c0_4 = arith.constant 0 : index
    %3 = vector.load %arg4[%c0_3, %c0_4] : memref<1x128xf32, #tpu.memory_space<vmem>>, vector<1x128xf32>
    %4 = vector.broadcast %3 : vector<1x128xf32> to vector<16x128xf32>
    %5 = arith.addf %2, %4 : vector<16x128xf32>
    %c0_5 = arith.constant 0 : index
    %c0_6 = arith.constant 0 : index
    %6 = vector.load %arg5[%c0_5, %c0_6] : memref<16x128xf32, #tpu.memory_space<vmem>>, vector<16x128xf32>
    tpu.vector_store %arg5[%c0_5, %c0_6], %5 {strides = array<i32>} : memref<16x128xf32, #tpu.memory_space<vmem>>, vector<16x128xf32>,
    return
  }
  func.func @transform_0(%arg0: i32, %arg1: i32) -> (i32, i32) {
    %c0_i32 = arith.constant 0 : i32
    %c0_i32_0 = arith.constant 0 : i32
    return %arg0, %c0_i32 : i32, i32
  }
  func.func @transform_1(%arg0: i32, %arg1: i32) -> (i32, i32) {
    %c0_i32 = arith.constant 0 : i32
    %c0_i32_0 = arith.constant 0 : i32
    return %c0_i32, %arg1 : i32, i32
  }
  func.func @transform_2(%arg0: i32, %arg1: i32) -> (i32, i32) {
    %c0_i32 = arith.constant 0 : i32
    %c0_i32_0 = arith.constant 0 : i32
    return %c0_i32, %arg1 : i32, i32
  }
  func.func @transform_3(%arg0: i32, %arg1: i32) -> (i32, i32) {
    %c0_i32 = arith.constant 0 : i32
    return %arg0, %arg1 : i32, i32
  }
}

module attributes {stable_mosaic.version = 11 : i64} {
  func.func @_decoder_layer_kernel(%arg0: i32, %arg1: memref<1x8x32xf32, #tpu.memory_space<vmem>>, %arg2: memref<1x16x32xbf16, #tpu.memory_space<vmem>>, %arg3: memref<1x1x8xf32, #tpu.memory_space<vmem>>, %arg4: memref<1x1x16xf32, #tpu.memory_space<vmem>>, %arg5: memref<32x32xbf16, #tpu.memory_space<vmem>>, %arg6: memref<1x32xf32, #tpu.memory_space<vmem>>, %arg7: memref<32x64xbf16, #tpu.memory_space<vmem>>, %arg8: memref<1x64xf32, #tpu.memory_space<vmem>>, %arg9: memref<32x32xbf16, #tpu.memory_space<vmem>>, %arg10: memref<1x32xf32, #tpu.memory_space<vmem>>, %arg11: memref<1x32xf32, #tpu.memory_space<vmem>>, %arg12: memref<1x32xf32, #tpu.memory_space<vmem>>, %arg13: memref<32x32xbf16, #tpu.memory_space<vmem>>, %arg14: memref<1x32xf32, #tpu.memory_space<vmem>>, %arg15: memref<32x64xbf16, #tpu.memory_space<vmem>>, %arg16: memref<1x64xf32, #tpu.memory_space<vmem>>, %arg17: memref<32x32xbf16, #tpu.memory_space<vmem>>, %arg18: memref<1x32xf32, #tpu.memory_space<vmem>>, %arg19: memref<1x32xf32, #tpu.memory_space<vmem>>, %arg20: memref<1x32xf32, #tpu.memory_space<vmem>>, %arg21: memref<32x64xbf16, #tpu.memory_space<vmem>>, %arg22: memref<1x64xf32, #tpu.memory_space<vmem>>, %arg23: memref<64x32xbf16, #tpu.memory_space<vmem>>, %arg24: memref<1x32xf32, #tpu.memory_space<vmem>>, %arg25: memref<1x32xf32, #tpu.memory_space<vmem>>, %arg26: memref<1x32xf32, #tpu.memory_space<vmem>>, %arg27: memref<1x8x32xf32, #tpu.memory_space<vmem>>, %arg28: memref<8x32xf32, #tpu.memory_space<vmem>>) attributes {dimension_semantics = [#tpu.dimension_semantics<parallel>], iteration_bounds = array<i64: 2>, scalar_prefetch = 0 : i64, scratch_operands = 1 : i64, tpu.core_type = #tpu.core_type<tc>, window_params = [{transform_indices = @transform_0, window_bounds = array<i64: 1, 8, 32>}, {transform_indices = @transform_1, window_bounds = array<i64: 1, 16, 32>}, {transform_indices = @transform_2, window_bounds = array<i64: 1, 1, 8>}, {transform_indices = @transform_3, window_bounds = array<i64: 1, 1, 16>}, {pipeline_mode = #tpu.pipeline_mode<synchronous>, transform_indices = @transform_4, window_bounds = array<i64: 32, 32>}, {pipeline_mode = #tpu.pipeline_mode<synchronous>, transform_indices = @transform_5, window_bounds = array<i64: 1, 32>}, {pipeline_mode = #tpu.pipeline_mode<synchronous>, transform_indices = @transform_6, window_bounds = array<i64: 32, 64>}, {pipeline_mode = #tpu.pipeline_mode<synchronous>, transform_indices = @transform_7, window_bounds = array<i64: 1, 64>}, {pipeline_mode = #tpu.pipeline_mode<synchronous>, transform_indices = @transform_8, window_bounds = array<i64: 32, 32>}, {pipeline_mode = #tpu.pipeline_mode<synchronous>, transform_indices = @transform_9, window_bounds = array<i64: 1, 32>}, {pipeline_mode = #tpu.pipeline_mode<synchronous>, transform_indices = @transform_10, window_bounds = array<i64: 1, 32>}, {pipeline_mode = #tpu.pipeline_mode<synchronous>, transform_indices = @transform_11, window_bounds = array<i64: 1, 32>}, {pipeline_mode = #tpu.pipeline_mode<synchronous>, transform_indices = @transform_12, window_bounds = array<i64: 32, 32>}, {pipeline_mode = #tpu.pipeline_mode<synchronous>, transform_indices = @transform_13, window_bounds = array<i64: 1, 32>}, {pipeline_mode = #tpu.pipeline_mode<synchronous>, transform_indices = @transform_14, window_bounds = array<i64: 32, 64>}, {pipeline_mode = #tpu.pipeline_mode<synchronous>, transform_indices = @transform_15, window_bounds = array<i64: 1, 64>}, {pipeline_mode = #tpu.pipeline_mode<synchronous>, transform_indices = @transform_16, window_bounds = array<i64: 32, 32>}, {pipeline_mode = #tpu.pipeline_mode<synchronous>, transform_indices = @transform_17, window_bounds = array<i64: 1, 32>}, {pipeline_mode = #tpu.pipeline_mode<synchronous>, transform_indices = @transform_18, window_bounds = array<i64: 1, 32>}, {pipeline_mode = #tpu.pipeline_mode<synchronous>, transform_indices = @transform_19, window_bounds = array<i64: 1, 32>}, {pipeline_mode = #tpu.pipeline_mode<synchronous>, transform_indices = @transform_20, window_bounds = array<i64: 32, 64>}, {pipeline_mode = #tpu.pipeline_mode<synchronous>, transform_indices = @transform_21, window_bounds = array<i64: 1, 64>}, {pipeline_mode = #tpu.pipeline_mode<synchronous>, transform_indices = @transform_22, window_bounds = array<i64: 64, 32>}, {pipeline_mode = #tpu.pipeline_mode<synchronous>, transform_indices = @transform_23, window_bounds = array<i64: 1, 32>}, {pipeline_mode = #tpu.pipeline_mode<synchronous>, transform_indices = @transform_24, window_bounds = array<i64: 1, 32>}, {pipeline_mode = #tpu.pipeline_mode<synchronous>, transform_indices = @transform_25, window_bounds = array<i64: 1, 32>}, {transform_indices = @transform_26, window_bounds = array<i64: 1, 8, 32>}]} {
    %c0 = arith.constant 0 : index
    %c0_0 = arith.constant 0 : index
    %c0_1 = arith.constant 0 : index
    %0 = vector.load %arg1[%c0, %c0_0, %c0_1] : memref<1x8x32xf32, #tpu.memory_space<vmem>>, vector<1x8x32xf32>
    %1 = vector.shape_cast %0 : vector<1x8x32xf32> to vector<8x32xf32>
    %c0_2 = arith.constant 0 : index
    %c0_3 = arith.constant 0 : index
    %c0_4 = arith.constant 0 : index
    %2 = vector.load %arg3[%c0_2, %c0_3, %c0_4] : memref<1x1x8xf32, #tpu.memory_space<vmem>>, vector<1x1x8xf32>
    %3 = vector.shape_cast %2 : vector<1x1x8xf32> to vector<1x8xf32>
    %cst = arith.constant 5.000000e-01 : f32
    %4 = vector.broadcast %cst : f32 to vector<1x8xf32>
    %5 = arith.cmpf ogt, %3, %4 : vector<1x8xf32>
    %c0_5 = arith.constant 0 : index
    %c0_6 = arith.constant 0 : index
    %c0_7 = arith.constant 0 : index
    %6 = vector.load %arg4[%c0_5, %c0_6, %c0_7] : memref<1x1x16xf32, #tpu.memory_space<vmem>>, vector<1x1x16xf32>
    %7 = vector.shape_cast %6 : vector<1x1x16xf32> to vector<1x16xf32>
    %cst_8 = arith.constant 5.000000e-01 : f32
    %8 = vector.broadcast %cst_8 : f32 to vector<1x16xf32>
    %9 = arith.cmpf ogt, %7, %8 : vector<1x16xf32>
    %10 = tpu.iota {dimensions = array<i32: 0>} : vector<8x8xi32>
    %11 = tpu.iota {dimensions = array<i32: 1>} : vector<8x8xi32>
    %12 = arith.cmpi sle, %11, %10 : vector<8x8xi32>
    %13 = vector.broadcast %5 : vector<1x8xi1> to vector<8x8xi1>
    %14 = arith.andi %12, %13 : vector<8x8xi1>
    %15 = arith.truncf %1 : vector<8x32xf32> to vector<8x32xbf16>
    %c0_9 = arith.constant 0 : index
    %c0_10 = arith.constant 0 : index
    %16 = vector.load %arg5[%c0_9, %c0_10] : memref<32x32xbf16, #tpu.memory_space<vmem>>, vector<32x32xbf16>
    %c0_11 = arith.constant 0 : index
    %c0_12 = arith.constant 0 : index
    %17 = vector.load %arg6[%c0_11, %c0_12] : memref<1x32xf32, #tpu.memory_space<vmem>>, vector<1x32xf32>
    %c0_13 = arith.constant 0 : index
    %c0_14 = arith.constant 0 : index
    %18 = vector.load %arg7[%c0_13, %c0_14] : memref<32x64xbf16, #tpu.memory_space<vmem>>, vector<32x64xbf16>
    %c0_15 = arith.constant 0 : index
    %c0_16 = arith.constant 0 : index
    %19 = vector.load %arg8[%c0_15, %c0_16] : memref<1x64xf32, #tpu.memory_space<vmem>>, vector<1x64xf32>
    %c0_17 = arith.constant 0 : index
    %c0_18 = arith.constant 0 : index
    %20 = vector.load %arg9[%c0_17, %c0_18] : memref<32x32xbf16, #tpu.memory_space<vmem>>, vector<32x32xbf16>
    %c0_19 = arith.constant 0 : index
    %c0_20 = arith.constant 0 : index
    %21 = vector.load %arg10[%c0_19, %c0_20] : memref<1x32xf32, #tpu.memory_space<vmem>>, vector<1x32xf32>
    %cst_21 = arith.constant dense<0.000000e+00> : vector<8x32xf32>
    %22 = tpu.matmul %15, %16, %cst_21 {dimension_numbers = #tpu.dot_dimension_numbers<[1], [0], [0], [1], [0, 0, 1, 1], [], []>} : vector<8x32xbf16>, vector<32x32xbf16>, vector<8x32xf32> -> vector<8x32xf32>
    %23 = vector.broadcast %17 : vector<1x32xf32> to vector<8x32xf32>
    %24 = arith.addf %22, %23 : vector<8x32xf32>
    %cst_22 = arith.constant dense<0.000000e+00> : vector<8x64xf32>
    %25 = tpu.matmul %15, %18, %cst_22 {dimension_numbers = #tpu.dot_dimension_numbers<[1], [0], [0], [1], [0, 0, 1, 1], [], []>} : vector<8x32xbf16>, vector<32x64xbf16>, vector<8x64xf32> -> vector<8x64xf32>
    %26 = vector.broadcast %19 : vector<1x64xf32> to vector<8x64xf32>
    %27 = arith.addf %25, %26 : vector<8x64xf32>
    %28 = arith.truncf %24 : vector<8x32xf32> to vector<8x32xbf16>
    %29 = vector.extract_strided_slice %27 {offsets = [0, 0], sizes = [8, 32], strides = [1, 1]} : vector<8x64xf32> to vector<8x32xf32>
    %30 = arith.truncf %29 : vector<8x32xf32> to vector<8x32xbf16>
    %31 = vector.extract_strided_slice %27 {offsets = [0, 32], sizes = [8, 32], strides = [1, 1]} : vector<8x64xf32> to vector<8x32xf32>
    %32 = arith.truncf %31 : vector<8x32xf32> to vector<8x32xbf16>
    %33 = vector.extract_strided_slice %28 {offsets = [0, 0], sizes = [8, 8], strides = [1, 1]} : vector<8x32xbf16> to vector<8x8xbf16>
    %34 = vector.extract_strided_slice %30 {offsets = [0, 0], sizes = [8, 8], strides = [1, 1]} : vector<8x32xbf16> to vector<8x8xbf16>
    %cst_23 = arith.constant dense<0.000000e+00> : vector<8x8xf32>
    %35 = tpu.matmul %33, %34, %cst_23 {dimension_numbers = #tpu.dot_dimension_numbers<[1], [1], [0], [0], [0, 0, 1, 0], [], []>} : vector<8x8xbf16>, vector<8x8xbf16>, vector<8x8xf32> -> vector<8x8xf32>
    %cst_24 = arith.constant 0.353553385 : f32
    %36 = vector.broadcast %cst_24 : f32 to vector<8x8xf32>
    %37 = arith.mulf %35, %36 : vector<8x8xf32>
    %cst_25 = arith.constant -1.000000e+09 : f32
    %38 = vector.broadcast %cst_25 : f32 to vector<8x8xf32>
    %39 = arith.select %14, %37, %38 : vector<8x8xi1>, vector<8x8xf32>
    %cst_26 = arith.constant dense<0xFF800000> : vector<8xf32>
    %40 = vector.multi_reduction <maximumf>, %39, %cst_26 [1] : vector<8x8xf32> to vector<8xf32>
    %41 = vector.shape_cast %40 : vector<8xf32> to vector<8x1xf32>
    %42 = vector.broadcast %41 : vector<8x1xf32> to vector<8x8xf32>
    %43 = arith.subf %39, %42 : vector<8x8xf32>
    %44 = math.exp %43 : vector<8x8xf32>
    %cst_27 = arith.constant dense<0.000000e+00> : vector<8xf32>
    %45 = vector.multi_reduction <add>, %44, %cst_27 [1] : vector<8x8xf32> to vector<8xf32>
    %46 = vector.shape_cast %45 : vector<8xf32> to vector<8x1xf32>
    %47 = tpu.reciprocal %46 {approx = true} : vector<8x1xf32> -> vector<8x1xf32>
    %48 = vector.broadcast %47 : vector<8x1xf32> to vector<8x8xf32>
    %49 = arith.mulf %44, %48 : vector<8x8xf32>
    %50 = arith.truncf %49 : vector<8x8xf32> to vector<8x8xbf16>
    %51 = vector.extract_strided_slice %32 {offsets = [0, 0], sizes = [8, 8], strides = [1, 1]} : vector<8x32xbf16> to vector<8x8xbf16>
    %cst_28 = arith.constant dense<0.000000e+00> : vector<8x8xf32>
    %52 = tpu.matmul %50, %51, %cst_28 {dimension_numbers = #tpu.dot_dimension_numbers<[1], [0], [0], [1], [0, 0, 1, 1], [], []>} : vector<8x8xbf16>, vector<8x8xbf16>, vector<8x8xf32> -> vector<8x8xf32>
    %c0_29 = arith.constant 0 : index
    %c0_30 = arith.constant 0 : index
    %53 = vector.load %arg28[%c0_29, %c0_30] : memref<8x32xf32, #tpu.memory_space<vmem>>, vector<8x8xf32>
    tpu.vector_store %arg28[%c0_29, %c0_30], %52 {strides = array<i32>} : memref<8x32xf32, #tpu.memory_space<vmem>>, vector<8x8xf32>,
    %54 = vector.extract_strided_slice %28 {offsets = [0, 8], sizes = [8, 8], strides = [1, 1]} : vector<8x32xbf16> to vector<8x8xbf16>
    %55 = vector.extract_strided_slice %30 {offsets = [0, 8], sizes = [8, 8], strides = [1, 1]} : vector<8x32xbf16> to vector<8x8xbf16>
    %cst_31 = arith.constant dense<0.000000e+00> : vector<8x8xf32>
    %56 = tpu.matmul %54, %55, %cst_31 {dimension_numbers = #tpu.dot_dimension_numbers<[1], [1], [0], [0], [0, 0, 1, 0], [], []>} : vector<8x8xbf16>, vector<8x8xbf16>, vector<8x8xf32> -> vector<8x8xf32>
    %cst_32 = arith.constant 0.353553385 : f32
    %57 = vector.broadcast %cst_32 : f32 to vector<8x8xf32>
    %58 = arith.mulf %56, %57 : vector<8x8xf32>
    %cst_33 = arith.constant -1.000000e+09 : f32
    %59 = vector.broadcast %cst_33 : f32 to vector<8x8xf32>
    %60 = arith.select %14, %58, %59 : vector<8x8xi1>, vector<8x8xf32>
    %cst_34 = arith.constant dense<0xFF800000> : vector<8xf32>
    %61 = vector.multi_reduction <maximumf>, %60, %cst_34 [1] : vector<8x8xf32> to vector<8xf32>
    %62 = vector.shape_cast %61 : vector<8xf32> to vector<8x1xf32>
    %63 = vector.broadcast %62 : vector<8x1xf32> to vector<8x8xf32>
    %64 = arith.subf %60, %63 : vector<8x8xf32>
    %65 = math.exp %64 : vector<8x8xf32>
    %cst_35 = arith.constant dense<0.000000e+00> : vector<8xf32>
    %66 = vector.multi_reduction <add>, %65, %cst_35 [1] : vector<8x8xf32> to vector<8xf32>
    %67 = vector.shape_cast %66 : vector<8xf32> to vector<8x1xf32>
    %68 = tpu.reciprocal %67 {approx = true} : vector<8x1xf32> -> vector<8x1xf32>
    %69 = vector.broadcast %68 : vector<8x1xf32> to vector<8x8xf32>
    %70 = arith.mulf %65, %69 : vector<8x8xf32>
    %71 = arith.truncf %70 : vector<8x8xf32> to vector<8x8xbf16>
    %72 = vector.extract_strided_slice %32 {offsets = [0, 8], sizes = [8, 8], strides = [1, 1]} : vector<8x32xbf16> to vector<8x8xbf16>
    %cst_36 = arith.constant dense<0.000000e+00> : vector<8x8xf32>
    %73 = tpu.matmul %71, %72, %cst_36 {dimension_numbers = #tpu.dot_dimension_numbers<[1], [0], [0], [1], [0, 0, 1, 1], [], []>} : vector<8x8xbf16>, vector<8x8xbf16>, vector<8x8xf32> -> vector<8x8xf32>
    %c0_37 = arith.constant 0 : index
    %c8 = arith.constant 8 : index
    %74 = vector.load %arg28[%c0_37, %c8] : memref<8x32xf32, #tpu.memory_space<vmem>>, vector<8x8xf32>
    tpu.vector_store %arg28[%c0_37, %c8], %73 {strides = array<i32>} : memref<8x32xf32, #tpu.memory_space<vmem>>, vector<8x8xf32>,
    %75 = vector.extract_strided_slice %28 {offsets = [0, 16], sizes = [8, 8], strides = [1, 1]} : vector<8x32xbf16> to vector<8x8xbf16>
    %76 = vector.extract_strided_slice %30 {offsets = [0, 16], sizes = [8, 8], strides = [1, 1]} : vector<8x32xbf16> to vector<8x8xbf16>
    %cst_38 = arith.constant dense<0.000000e+00> : vector<8x8xf32>
    %77 = tpu.matmul %75, %76, %cst_38 {dimension_numbers = #tpu.dot_dimension_numbers<[1], [1], [0], [0], [0, 0, 1, 0], [], []>} : vector<8x8xbf16>, vector<8x8xbf16>, vector<8x8xf32> -> vector<8x8xf32>
    %cst_39 = arith.constant 0.353553385 : f32
    %78 = vector.broadcast %cst_39 : f32 to vector<8x8xf32>
    %79 = arith.mulf %77, %78 : vector<8x8xf32>
    %cst_40 = arith.constant -1.000000e+09 : f32
    %80 = vector.broadcast %cst_40 : f32 to vector<8x8xf32>
    %81 = arith.select %14, %79, %80 : vector<8x8xi1>, vector<8x8xf32>
    %cst_41 = arith.constant dense<0xFF800000> : vector<8xf32>
    %82 = vector.multi_reduction <maximumf>, %81, %cst_41 [1] : vector<8x8xf32> to vector<8xf32>
    %83 = vector.shape_cast %82 : vector<8xf32> to vector<8x1xf32>
    %84 = vector.broadcast %83 : vector<8x1xf32> to vector<8x8xf32>
    %85 = arith.subf %81, %84 : vector<8x8xf32>
    %86 = math.exp %85 : vector<8x8xf32>
    %cst_42 = arith.constant dense<0.000000e+00> : vector<8xf32>
    %87 = vector.multi_reduction <add>, %86, %cst_42 [1] : vector<8x8xf32> to vector<8xf32>
    %88 = vector.shape_cast %87 : vector<8xf32> to vector<8x1xf32>
    %89 = tpu.reciprocal %88 {approx = true} : vector<8x1xf32> -> vector<8x1xf32>
    %90 = vector.broadcast %89 : vector<8x1xf32> to vector<8x8xf32>
    %91 = arith.mulf %86, %90 : vector<8x8xf32>
    %92 = arith.truncf %91 : vector<8x8xf32> to vector<8x8xbf16>
    %93 = vector.extract_strided_slice %32 {offsets = [0, 16], sizes = [8, 8], strides = [1, 1]} : vector<8x32xbf16> to vector<8x8xbf16>
    %cst_43 = arith.constant dense<0.000000e+00> : vector<8x8xf32>
    %94 = tpu.matmul %92, %93, %cst_43 {dimension_numbers = #tpu.dot_dimension_numbers<[1], [0], [0], [1], [0, 0, 1, 1], [], []>} : vector<8x8xbf16>, vector<8x8xbf16>, vector<8x8xf32> -> vector<8x8xf32>
    %c0_44 = arith.constant 0 : index
    %c16 = arith.constant 16 : index
    %95 = vector.load %arg28[%c0_44, %c16] : memref<8x32xf32, #tpu.memory_space<vmem>>, vector<8x8xf32>
    tpu.vector_store %arg28[%c0_44, %c16], %94 {strides = array<i32>} : memref<8x32xf32, #tpu.memory_space<vmem>>, vector<8x8xf32>,
    %96 = vector.extract_strided_slice %28 {offsets = [0, 24], sizes = [8, 8], strides = [1, 1]} : vector<8x32xbf16> to vector<8x8xbf16>
    %97 = vector.extract_strided_slice %30 {offsets = [0, 24], sizes = [8, 8], strides = [1, 1]} : vector<8x32xbf16> to vector<8x8xbf16>
    %cst_45 = arith.constant dense<0.000000e+00> : vector<8x8xf32>
    %98 = tpu.matmul %96, %97, %cst_45 {dimension_numbers = #tpu.dot_dimension_numbers<[1], [1], [0], [0], [0, 0, 1, 0], [], []>} : vector<8x8xbf16>, vector<8x8xbf16>, vector<8x8xf32> -> vector<8x8xf32>
    %cst_46 = arith.constant 0.353553385 : f32
    %99 = vector.broadcast %cst_46 : f32 to vector<8x8xf32>
    %100 = arith.mulf %98, %99 : vector<8x8xf32>
    %cst_47 = arith.constant -1.000000e+09 : f32
    %101 = vector.broadcast %cst_47 : f32 to vector<8x8xf32>
    %102 = arith.select %14, %100, %101 : vector<8x8xi1>, vector<8x8xf32>
    %cst_48 = arith.constant dense<0xFF800000> : vector<8xf32>
    %103 = vector.multi_reduction <maximumf>, %102, %cst_48 [1] : vector<8x8xf32> to vector<8xf32>
    %104 = vector.shape_cast %103 : vector<8xf32> to vector<8x1xf32>
    %105 = vector.broadcast %104 : vector<8x1xf32> to vector<8x8xf32>
    %106 = arith.subf %102, %105 : vector<8x8xf32>
    %107 = math.exp %106 : vector<8x8xf32>
    %cst_49 = arith.constant dense<0.000000e+00> : vector<8xf32>
    %108 = vector.multi_reduction <add>, %107, %cst_49 [1] : vector<8x8xf32> to vector<8xf32>
    %109 = vector.shape_cast %108 : vector<8xf32> to vector<8x1xf32>
    %110 = tpu.reciprocal %109 {approx = true} : vector<8x1xf32> -> vector<8x1xf32>
    %111 = vector.broadcast %110 : vector<8x1xf32> to vector<8x8xf32>
    %112 = arith.mulf %107, %111 : vector<8x8xf32>
    %113 = arith.truncf %112 : vector<8x8xf32> to vector<8x8xbf16>
    %114 = vector.extract_strided_slice %32 {offsets = [0, 24], sizes = [8, 8], strides = [1, 1]} : vector<8x32xbf16> to vector<8x8xbf16>
    %cst_50 = arith.constant dense<0.000000e+00> : vector<8x8xf32>
    %115 = tpu.matmul %113, %114, %cst_50 {dimension_numbers = #tpu.dot_dimension_numbers<[1], [0], [0], [1], [0, 0, 1, 1], [], []>} : vector<8x8xbf16>, vector<8x8xbf16>, vector<8x8xf32> -> vector<8x8xf32>
    %c0_51 = arith.constant 0 : index
    %c24 = arith.constant 24 : index
    %116 = vector.load %arg28[%c0_51, %c24] : memref<8x32xf32, #tpu.memory_space<vmem>>, vector<8x8xf32>
    tpu.vector_store %arg28[%c0_51, %c24], %115 {strides = array<i32>} : memref<8x32xf32, #tpu.memory_space<vmem>>, vector<8x8xf32>,
    %c0_52 = arith.constant 0 : index
    %c0_53 = arith.constant 0 : index
    %117 = vector.load %arg28[%c0_52, %c0_53] : memref<8x32xf32, #tpu.memory_space<vmem>>, vector<8x32xf32>
    %118 = arith.truncf %117 : vector<8x32xf32> to vector<8x32xbf16>
    %cst_54 = arith.constant dense<0.000000e+00> : vector<8x32xf32>
    %119 = tpu.matmul %118, %20, %cst_54 {dimension_numbers = #tpu.dot_dimension_numbers<[1], [0], [0], [1], [0, 0, 1, 1], [], []>} : vector<8x32xbf16>, vector<32x32xbf16>, vector<8x32xf32> -> vector<8x32xf32>
    %120 = vector.broadcast %21 : vector<1x32xf32> to vector<8x32xf32>
    %121 = arith.addf %119, %120 : vector<8x32xf32>
    %c0_55 = arith.constant 0 : index
    %c0_56 = arith.constant 0 : index
    %122 = vector.load %arg11[%c0_55, %c0_56] : memref<1x32xf32, #tpu.memory_space<vmem>>, vector<1x32xf32>
    %c0_57 = arith.constant 0 : index
    %c0_58 = arith.constant 0 : index
    %123 = vector.load %arg12[%c0_57, %c0_58] : memref<1x32xf32, #tpu.memory_space<vmem>>, vector<1x32xf32>
    %124 = arith.addf %1, %121 : vector<8x32xf32>
    %cst_59 = arith.constant dense<0.000000e+00> : vector<8xf32>
    %125 = vector.multi_reduction <add>, %124, %cst_59 [1] : vector<8x32xf32> to vector<8xf32>
    %126 = vector.shape_cast %125 : vector<8xf32> to vector<8x1xf32>
    %cst_60 = arith.constant 3.200000e+01 : f32
    %127 = vector.broadcast %cst_60 : f32 to vector<8x1xf32>
    %128 = arith.divf %126, %127 : vector<8x1xf32>
    %129 = vector.broadcast %128 : vector<8x1xf32> to vector<8x32xf32>
    %130 = arith.subf %124, %129 : vector<8x32xf32>
    %131 = arith.mulf %130, %130 : vector<8x32xf32>
    %cst_61 = arith.constant dense<0.000000e+00> : vector<8xf32>
    %132 = vector.multi_reduction <add>, %131, %cst_61 [1] : vector<8x32xf32> to vector<8xf32>
    %133 = vector.shape_cast %132 : vector<8xf32> to vector<8x1xf32>
    %cst_62 = arith.constant 3.200000e+01 : f32
    %134 = vector.broadcast %cst_62 : f32 to vector<8x1xf32>
    %135 = arith.divf %133, %134 : vector<8x1xf32>
    %136 = vector.broadcast %128 : vector<8x1xf32> to vector<8x32xf32>
    %137 = arith.subf %124, %136 : vector<8x32xf32>
    %cst_63 = arith.constant 9.99999974E-6 : f32
    %138 = vector.broadcast %cst_63 : f32 to vector<8x1xf32>
    %139 = arith.addf %135, %138 : vector<8x1xf32>
    %140 = math.rsqrt %139 : vector<8x1xf32>
    %141 = vector.broadcast %140 : vector<8x1xf32> to vector<8x32xf32>
    %142 = arith.mulf %137, %141 : vector<8x32xf32>
    %143 = vector.broadcast %122 : vector<1x32xf32> to vector<8x32xf32>
    %144 = arith.mulf %142, %143 : vector<8x32xf32>
    %145 = vector.broadcast %123 : vector<1x32xf32> to vector<8x32xf32>
    %146 = arith.addf %144, %145 : vector<8x32xf32>
    %147 = arith.truncf %146 : vector<8x32xf32> to vector<8x32xbf16>
    %c0_64 = arith.constant 0 : index
    %c0_65 = arith.constant 0 : index
    %c0_66 = arith.constant 0 : index
    %148 = vector.load %arg2[%c0_64, %c0_65, %c0_66] : memref<1x16x32xbf16, #tpu.memory_space<vmem>>, vector<1x16x32xbf16>
    %149 = vector.shape_cast %148 : vector<1x16x32xbf16> to vector<16x32xbf16>
    %c0_67 = arith.constant 0 : index
    %c0_68 = arith.constant 0 : index
    %150 = vector.load %arg13[%c0_67, %c0_68] : memref<32x32xbf16, #tpu.memory_space<vmem>>, vector<32x32xbf16>
    %c0_69 = arith.constant 0 : index
    %c0_70 = arith.constant 0 : index
    %151 = vector.load %arg14[%c0_69, %c0_70] : memref<1x32xf32, #tpu.memory_space<vmem>>, vector<1x32xf32>
    %c0_71 = arith.constant 0 : index
    %c0_72 = arith.constant 0 : index
    %152 = vector.load %arg15[%c0_71, %c0_72] : memref<32x64xbf16, #tpu.memory_space<vmem>>, vector<32x64xbf16>
    %c0_73 = arith.constant 0 : index
    %c0_74 = arith.constant 0 : index
    %153 = vector.load %arg16[%c0_73, %c0_74] : memref<1x64xf32, #tpu.memory_space<vmem>>, vector<1x64xf32>
    %c0_75 = arith.constant 0 : index
    %c0_76 = arith.constant 0 : index
    %154 = vector.load %arg17[%c0_75, %c0_76] : memref<32x32xbf16, #tpu.memory_space<vmem>>, vector<32x32xbf16>
    %c0_77 = arith.constant 0 : index
    %c0_78 = arith.constant 0 : index
    %155 = vector.load %arg18[%c0_77, %c0_78] : memref<1x32xf32, #tpu.memory_space<vmem>>, vector<1x32xf32>
    %cst_79 = arith.constant dense<0.000000e+00> : vector<8x32xf32>
    %156 = tpu.matmul %147, %150, %cst_79 {dimension_numbers = #tpu.dot_dimension_numbers<[1], [0], [0], [1], [0, 0, 1, 1], [], []>} : vector<8x32xbf16>, vector<32x32xbf16>, vector<8x32xf32> -> vector<8x32xf32>
    %157 = vector.broadcast %151 : vector<1x32xf32> to vector<8x32xf32>
    %158 = arith.addf %156, %157 : vector<8x32xf32>
    %cst_80 = arith.constant dense<0.000000e+00> : vector<16x64xf32>
    %159 = tpu.matmul %149, %152, %cst_80 {dimension_numbers = #tpu.dot_dimension_numbers<[1], [0], [0], [1], [0, 0, 1, 1], [], []>} : vector<16x32xbf16>, vector<32x64xbf16>, vector<16x64xf32> -> vector<16x64xf32>
    %160 = vector.broadcast %153 : vector<1x64xf32> to vector<16x64xf32>
    %161 = arith.addf %159, %160 : vector<16x64xf32>
    %162 = arith.truncf %158 : vector<8x32xf32> to vector<8x32xbf16>
    %163 = vector.extract_strided_slice %161 {offsets = [0, 0], sizes = [16, 32], strides = [1, 1]} : vector<16x64xf32> to vector<16x32xf32>
    %164 = arith.truncf %163 : vector<16x32xf32> to vector<16x32xbf16>
    %165 = vector.extract_strided_slice %161 {offsets = [0, 32], sizes = [16, 32], strides = [1, 1]} : vector<16x64xf32> to vector<16x32xf32>
    %166 = arith.truncf %165 : vector<16x32xf32> to vector<16x32xbf16>
    %167 = vector.extract_strided_slice %162 {offsets = [0, 0], sizes = [8, 8], strides = [1, 1]} : vector<8x32xbf16> to vector<8x8xbf16>
    %168 = vector.extract_strided_slice %164 {offsets = [0, 0], sizes = [16, 8], strides = [1, 1]} : vector<16x32xbf16> to vector<16x8xbf16>
    %cst_81 = arith.constant dense<0.000000e+00> : vector<8x16xf32>
    %169 = tpu.matmul %167, %168, %cst_81 {dimension_numbers = #tpu.dot_dimension_numbers<[1], [1], [0], [0], [0, 0, 1, 0], [], []>} : vector<8x8xbf16>, vector<16x8xbf16>, vector<8x16xf32> -> vector<8x16xf32>
    %cst_82 = arith.constant 0.353553385 : f32
    %170 = vector.broadcast %cst_82 : f32 to vector<8x16xf32>
    %171 = arith.mulf %169, %170 : vector<8x16xf32>
    %cst_83 = arith.constant -1.000000e+09 : f32
    %172 = vector.shape_cast %9 : vector<1x16xi1> to vector<1x16xi1>
    %173 = vector.broadcast %172 : vector<1x16xi1> to vector<8x16xi1>
    %174 = vector.broadcast %cst_83 : f32 to vector<8x16xf32>
    %175 = arith.select %173, %171, %174 : vector<8x16xi1>, vector<8x16xf32>
    %cst_84 = arith.constant dense<0xFF800000> : vector<8xf32>
    %176 = vector.multi_reduction <maximumf>, %175, %cst_84 [1] : vector<8x16xf32> to vector<8xf32>
    %177 = vector.shape_cast %176 : vector<8xf32> to vector<8x1xf32>
    %178 = vector.broadcast %177 : vector<8x1xf32> to vector<8x16xf32>
    %179 = arith.subf %175, %178 : vector<8x16xf32>
    %180 = math.exp %179 : vector<8x16xf32>
    %cst_85 = arith.constant dense<0.000000e+00> : vector<8xf32>
    %181 = vector.multi_reduction <add>, %180, %cst_85 [1] : vector<8x16xf32> to vector<8xf32>
    %182 = vector.shape_cast %181 : vector<8xf32> to vector<8x1xf32>
    %183 = tpu.reciprocal %182 {approx = true} : vector<8x1xf32> -> vector<8x1xf32>
    %184 = vector.broadcast %183 : vector<8x1xf32> to vector<8x16xf32>
    %185 = arith.mulf %180, %184 : vector<8x16xf32>
    %186 = arith.truncf %185 : vector<8x16xf32> to vector<8x16xbf16>
    %187 = vector.extract_strided_slice %166 {offsets = [0, 0], sizes = [16, 8], strides = [1, 1]} : vector<16x32xbf16> to vector<16x8xbf16>
    %cst_86 = arith.constant dense<0.000000e+00> : vector<8x8xf32>
    %188 = tpu.matmul %186, %187, %cst_86 {dimension_numbers = #tpu.dot_dimension_numbers<[1], [0], [0], [1], [0, 0, 1, 1], [], []>} : vector<8x16xbf16>, vector<16x8xbf16>, vector<8x8xf32> -> vector<8x8xf32>
    %c0_87 = arith.constant 0 : index
    %c0_88 = arith.constant 0 : index
    %189 = vector.load %arg28[%c0_87, %c0_88] : memref<8x32xf32, #tpu.memory_space<vmem>>, vector<8x8xf32>
    tpu.vector_store %arg28[%c0_87, %c0_88], %188 {strides = array<i32>} : memref<8x32xf32, #tpu.memory_space<vmem>>, vector<8x8xf32>,
    %190 = vector.extract_strided_slice %162 {offsets = [0, 8], sizes = [8, 8], strides = [1, 1]} : vector<8x32xbf16> to vector<8x8xbf16>
    %191 = vector.extract_strided_slice %164 {offsets = [0, 8], sizes = [16, 8], strides = [1, 1]} : vector<16x32xbf16> to vector<16x8xbf16>
    %cst_89 = arith.constant dense<0.000000e+00> : vector<8x16xf32>
    %192 = tpu.matmul %190, %191, %cst_89 {dimension_numbers = #tpu.dot_dimension_numbers<[1], [1], [0], [0], [0, 0, 1, 0], [], []>} : vector<8x8xbf16>, vector<16x8xbf16>, vector<8x16xf32> -> vector<8x16xf32>
    %cst_90 = arith.constant 0.353553385 : f32
    %193 = vector.broadcast %cst_90 : f32 to vector<8x16xf32>
    %194 = arith.mulf %192, %193 : vector<8x16xf32>
    %cst_91 = arith.constant -1.000000e+09 : f32
    %195 = vector.shape_cast %9 : vector<1x16xi1> to vector<1x16xi1>
    %196 = vector.broadcast %195 : vector<1x16xi1> to vector<8x16xi1>
    %197 = vector.broadcast %cst_91 : f32 to vector<8x16xf32>
    %198 = arith.select %196, %194, %197 : vector<8x16xi1>, vector<8x16xf32>
    %cst_92 = arith.constant dense<0xFF800000> : vector<8xf32>
    %199 = vector.multi_reduction <maximumf>, %198, %cst_92 [1] : vector<8x16xf32> to vector<8xf32>
    %200 = vector.shape_cast %199 : vector<8xf32> to vector<8x1xf32>
    %201 = vector.broadcast %200 : vector<8x1xf32> to vector<8x16xf32>
    %202 = arith.subf %198, %201 : vector<8x16xf32>
    %203 = math.exp %202 : vector<8x16xf32>
    %cst_93 = arith.constant dense<0.000000e+00> : vector<8xf32>
    %204 = vector.multi_reduction <add>, %203, %cst_93 [1] : vector<8x16xf32> to vector<8xf32>
    %205 = vector.shape_cast %204 : vector<8xf32> to vector<8x1xf32>
    %206 = tpu.reciprocal %205 {approx = true} : vector<8x1xf32> -> vector<8x1xf32>
    %207 = vector.broadcast %206 : vector<8x1xf32> to vector<8x16xf32>
    %208 = arith.mulf %203, %207 : vector<8x16xf32>
    %209 = arith.truncf %208 : vector<8x16xf32> to vector<8x16xbf16>
    %210 = vector.extract_strided_slice %166 {offsets = [0, 8], sizes = [16, 8], strides = [1, 1]} : vector<16x32xbf16> to vector<16x8xbf16>
    %cst_94 = arith.constant dense<0.000000e+00> : vector<8x8xf32>
    %211 = tpu.matmul %209, %210, %cst_94 {dimension_numbers = #tpu.dot_dimension_numbers<[1], [0], [0], [1], [0, 0, 1, 1], [], []>} : vector<8x16xbf16>, vector<16x8xbf16>, vector<8x8xf32> -> vector<8x8xf32>
    %c0_95 = arith.constant 0 : index
    %c8_96 = arith.constant 8 : index
    %212 = vector.load %arg28[%c0_95, %c8_96] : memref<8x32xf32, #tpu.memory_space<vmem>>, vector<8x8xf32>
    tpu.vector_store %arg28[%c0_95, %c8_96], %211 {strides = array<i32>} : memref<8x32xf32, #tpu.memory_space<vmem>>, vector<8x8xf32>,
    %213 = vector.extract_strided_slice %162 {offsets = [0, 16], sizes = [8, 8], strides = [1, 1]} : vector<8x32xbf16> to vector<8x8xbf16>
    %214 = vector.extract_strided_slice %164 {offsets = [0, 16], sizes = [16, 8], strides = [1, 1]} : vector<16x32xbf16> to vector<16x8xbf16>
    %cst_97 = arith.constant dense<0.000000e+00> : vector<8x16xf32>
    %215 = tpu.matmul %213, %214, %cst_97 {dimension_numbers = #tpu.dot_dimension_numbers<[1], [1], [0], [0], [0, 0, 1, 0], [], []>} : vector<8x8xbf16>, vector<16x8xbf16>, vector<8x16xf32> -> vector<8x16xf32>
    %cst_98 = arith.constant 0.353553385 : f32
    %216 = vector.broadcast %cst_98 : f32 to vector<8x16xf32>
    %217 = arith.mulf %215, %216 : vector<8x16xf32>
    %cst_99 = arith.constant -1.000000e+09 : f32
    %218 = vector.shape_cast %9 : vector<1x16xi1> to vector<1x16xi1>
    %219 = vector.broadcast %218 : vector<1x16xi1> to vector<8x16xi1>
    %220 = vector.broadcast %cst_99 : f32 to vector<8x16xf32>
    %221 = arith.select %219, %217, %220 : vector<8x16xi1>, vector<8x16xf32>
    %cst_100 = arith.constant dense<0xFF800000> : vector<8xf32>
    %222 = vector.multi_reduction <maximumf>, %221, %cst_100 [1] : vector<8x16xf32> to vector<8xf32>
    %223 = vector.shape_cast %222 : vector<8xf32> to vector<8x1xf32>
    %224 = vector.broadcast %223 : vector<8x1xf32> to vector<8x16xf32>
    %225 = arith.subf %221, %224 : vector<8x16xf32>
    %226 = math.exp %225 : vector<8x16xf32>
    %cst_101 = arith.constant dense<0.000000e+00> : vector<8xf32>
    %227 = vector.multi_reduction <add>, %226, %cst_101 [1] : vector<8x16xf32> to vector<8xf32>
    %228 = vector.shape_cast %227 : vector<8xf32> to vector<8x1xf32>
    %229 = tpu.reciprocal %228 {approx = true} : vector<8x1xf32> -> vector<8x1xf32>
    %230 = vector.broadcast %229 : vector<8x1xf32> to vector<8x16xf32>
    %231 = arith.mulf %226, %230 : vector<8x16xf32>
    %232 = arith.truncf %231 : vector<8x16xf32> to vector<8x16xbf16>
    %233 = vector.extract_strided_slice %166 {offsets = [0, 16], sizes = [16, 8], strides = [1, 1]} : vector<16x32xbf16> to vector<16x8xbf16>
    %cst_102 = arith.constant dense<0.000000e+00> : vector<8x8xf32>
    %234 = tpu.matmul %232, %233, %cst_102 {dimension_numbers = #tpu.dot_dimension_numbers<[1], [0], [0], [1], [0, 0, 1, 1], [], []>} : vector<8x16xbf16>, vector<16x8xbf16>, vector<8x8xf32> -> vector<8x8xf32>
    %c0_103 = arith.constant 0 : index
    %c16_104 = arith.constant 16 : index
    %235 = vector.load %arg28[%c0_103, %c16_104] : memref<8x32xf32, #tpu.memory_space<vmem>>, vector<8x8xf32>
    tpu.vector_store %arg28[%c0_103, %c16_104], %234 {strides = array<i32>} : memref<8x32xf32, #tpu.memory_space<vmem>>, vector<8x8xf32>,
    %236 = vector.extract_strided_slice %162 {offsets = [0, 24], sizes = [8, 8], strides = [1, 1]} : vector<8x32xbf16> to vector<8x8xbf16>
    %237 = vector.extract_strided_slice %164 {offsets = [0, 24], sizes = [16, 8], strides = [1, 1]} : vector<16x32xbf16> to vector<16x8xbf16>
    %cst_105 = arith.constant dense<0.000000e+00> : vector<8x16xf32>
    %238 = tpu.matmul %236, %237, %cst_105 {dimension_numbers = #tpu.dot_dimension_numbers<[1], [1], [0], [0], [0, 0, 1, 0], [], []>} : vector<8x8xbf16>, vector<16x8xbf16>, vector<8x16xf32> -> vector<8x16xf32>
    %cst_106 = arith.constant 0.353553385 : f32
    %239 = vector.broadcast %cst_106 : f32 to vector<8x16xf32>
    %240 = arith.mulf %238, %239 : vector<8x16xf32>
    %cst_107 = arith.constant -1.000000e+09 : f32
    %241 = vector.shape_cast %9 : vector<1x16xi1> to vector<1x16xi1>
    %242 = vector.broadcast %241 : vector<1x16xi1> to vector<8x16xi1>
    %243 = vector.broadcast %cst_107 : f32 to vector<8x16xf32>
    %244 = arith.select %242, %240, %243 : vector<8x16xi1>, vector<8x16xf32>
    %cst_108 = arith.constant dense<0xFF800000> : vector<8xf32>
    %245 = vector.multi_reduction <maximumf>, %244, %cst_108 [1] : vector<8x16xf32> to vector<8xf32>
    %246 = vector.shape_cast %245 : vector<8xf32> to vector<8x1xf32>
    %247 = vector.broadcast %246 : vector<8x1xf32> to vector<8x16xf32>
    %248 = arith.subf %244, %247 : vector<8x16xf32>
    %249 = math.exp %248 : vector<8x16xf32>
    %cst_109 = arith.constant dense<0.000000e+00> : vector<8xf32>
    %250 = vector.multi_reduction <add>, %249, %cst_109 [1] : vector<8x16xf32> to vector<8xf32>
    %251 = vector.shape_cast %250 : vector<8xf32> to vector<8x1xf32>
    %252 = tpu.reciprocal %251 {approx = true} : vector<8x1xf32> -> vector<8x1xf32>
    %253 = vector.broadcast %252 : vector<8x1xf32> to vector<8x16xf32>
    %254 = arith.mulf %249, %253 : vector<8x16xf32>
    %255 = arith.truncf %254 : vector<8x16xf32> to vector<8x16xbf16>
    %256 = vector.extract_strided_slice %166 {offsets = [0, 24], sizes = [16, 8], strides = [1, 1]} : vector<16x32xbf16> to vector<16x8xbf16>
    %cst_110 = arith.constant dense<0.000000e+00> : vector<8x8xf32>
    %257 = tpu.matmul %255, %256, %cst_110 {dimension_numbers = #tpu.dot_dimension_numbers<[1], [0], [0], [1], [0, 0, 1, 1], [], []>} : vector<8x16xbf16>, vector<16x8xbf16>, vector<8x8xf32> -> vector<8x8xf32>
    %c0_111 = arith.constant 0 : index
    %c24_112 = arith.constant 24 : index
    %258 = vector.load %arg28[%c0_111, %c24_112] : memref<8x32xf32, #tpu.memory_space<vmem>>, vector<8x8xf32>
    tpu.vector_store %arg28[%c0_111, %c24_112], %257 {strides = array<i32>} : memref<8x32xf32, #tpu.memory_space<vmem>>, vector<8x8xf32>,
    %c0_113 = arith.constant 0 : index
    %c0_114 = arith.constant 0 : index
    %259 = vector.load %arg28[%c0_113, %c0_114] : memref<8x32xf32, #tpu.memory_space<vmem>>, vector<8x32xf32>
    %260 = arith.truncf %259 : vector<8x32xf32> to vector<8x32xbf16>
    %cst_115 = arith.constant dense<0.000000e+00> : vector<8x32xf32>
    %261 = tpu.matmul %260, %154, %cst_115 {dimension_numbers = #tpu.dot_dimension_numbers<[1], [0], [0], [1], [0, 0, 1, 1], [], []>} : vector<8x32xbf16>, vector<32x32xbf16>, vector<8x32xf32> -> vector<8x32xf32>
    %262 = vector.broadcast %155 : vector<1x32xf32> to vector<8x32xf32>
    %263 = arith.addf %261, %262 : vector<8x32xf32>
    %c0_116 = arith.constant 0 : index
    %c0_117 = arith.constant 0 : index
    %264 = vector.load %arg19[%c0_116, %c0_117] : memref<1x32xf32, #tpu.memory_space<vmem>>, vector<1x32xf32>
    %c0_118 = arith.constant 0 : index
    %c0_119 = arith.constant 0 : index
    %265 = vector.load %arg20[%c0_118, %c0_119] : memref<1x32xf32, #tpu.memory_space<vmem>>, vector<1x32xf32>
    %266 = arith.addf %146, %263 : vector<8x32xf32>
    %cst_120 = arith.constant dense<0.000000e+00> : vector<8xf32>
    %267 = vector.multi_reduction <add>, %266, %cst_120 [1] : vector<8x32xf32> to vector<8xf32>
    %268 = vector.shape_cast %267 : vector<8xf32> to vector<8x1xf32>
    %cst_121 = arith.constant 3.200000e+01 : f32
    %269 = vector.broadcast %cst_121 : f32 to vector<8x1xf32>
    %270 = arith.divf %268, %269 : vector<8x1xf32>
    %271 = vector.broadcast %270 : vector<8x1xf32> to vector<8x32xf32>
    %272 = arith.subf %266, %271 : vector<8x32xf32>
    %273 = arith.mulf %272, %272 : vector<8x32xf32>
    %cst_122 = arith.constant dense<0.000000e+00> : vector<8xf32>
    %274 = vector.multi_reduction <add>, %273, %cst_122 [1] : vector<8x32xf32> to vector<8xf32>
    %275 = vector.shape_cast %274 : vector<8xf32> to vector<8x1xf32>
    %cst_123 = arith.constant 3.200000e+01 : f32
    %276 = vector.broadcast %cst_123 : f32 to vector<8x1xf32>
    %277 = arith.divf %275, %276 : vector<8x1xf32>
    %278 = vector.broadcast %270 : vector<8x1xf32> to vector<8x32xf32>
    %279 = arith.subf %266, %278 : vector<8x32xf32>
    %cst_124 = arith.constant 9.99999974E-6 : f32
    %280 = vector.broadcast %cst_124 : f32 to vector<8x1xf32>
    %281 = arith.addf %277, %280 : vector<8x1xf32>
    %282 = math.rsqrt %281 : vector<8x1xf32>
    %283 = vector.broadcast %282 : vector<8x1xf32> to vector<8x32xf32>
    %284 = arith.mulf %279, %283 : vector<8x32xf32>
    %285 = vector.broadcast %264 : vector<1x32xf32> to vector<8x32xf32>
    %286 = arith.mulf %284, %285 : vector<8x32xf32>
    %287 = vector.broadcast %265 : vector<1x32xf32> to vector<8x32xf32>
    %288 = arith.addf %286, %287 : vector<8x32xf32>
    %289 = arith.truncf %288 : vector<8x32xf32> to vector<8x32xbf16>
    %c0_125 = arith.constant 0 : index
    %c0_126 = arith.constant 0 : index
    %290 = vector.load %arg21[%c0_125, %c0_126] : memref<32x64xbf16, #tpu.memory_space<vmem>>, vector<32x64xbf16>
    %cst_127 = arith.constant dense<0.000000e+00> : vector<8x64xf32>
    %291 = tpu.matmul %289, %290, %cst_127 {dimension_numbers = #tpu.dot_dimension_numbers<[1], [0], [0], [1], [0, 0, 1, 1], [], []>} : vector<8x32xbf16>, vector<32x64xbf16>, vector<8x64xf32> -> vector<8x64xf32>
    %c0_128 = arith.constant 0 : index
    %c0_129 = arith.constant 0 : index
    %292 = vector.load %arg22[%c0_128, %c0_129] : memref<1x64xf32, #tpu.memory_space<vmem>>, vector<1x64xf32>
    %293 = vector.broadcast %292 : vector<1x64xf32> to vector<8x64xf32>
    %294 = arith.addf %291, %293 : vector<8x64xf32>
    %cst_130 = arith.constant 0.000000e+00 : f32
    %295 = vector.broadcast %cst_130 : f32 to vector<8x64xf32>
    %296 = arith.maximumf %294, %295 : vector<8x64xf32>
    %297 = arith.truncf %296 : vector<8x64xf32> to vector<8x64xbf16>
    %c0_131 = arith.constant 0 : index
    %c0_132 = arith.constant 0 : index
    %298 = vector.load %arg23[%c0_131, %c0_132] : memref<64x32xbf16, #tpu.memory_space<vmem>>, vector<64x32xbf16>
    %cst_133 = arith.constant dense<0.000000e+00> : vector<8x32xf32>
    %299 = tpu.matmul %297, %298, %cst_133 {dimension_numbers = #tpu.dot_dimension_numbers<[1], [0], [0], [1], [0, 0, 1, 1], [], []>} : vector<8x64xbf16>, vector<64x32xbf16>, vector<8x32xf32> -> vector<8x32xf32>
    %c0_134 = arith.constant 0 : index
    %c0_135 = arith.constant 0 : index
    %300 = vector.load %arg24[%c0_134, %c0_135] : memref<1x32xf32, #tpu.memory_space<vmem>>, vector<1x32xf32>
    %301 = vector.broadcast %300 : vector<1x32xf32> to vector<8x32xf32>
    %302 = arith.addf %299, %301 : vector<8x32xf32>
    %c0_136 = arith.constant 0 : index
    %c0_137 = arith.constant 0 : index
    %303 = vector.load %arg25[%c0_136, %c0_137] : memref<1x32xf32, #tpu.memory_space<vmem>>, vector<1x32xf32>
    %c0_138 = arith.constant 0 : index
    %c0_139 = arith.constant 0 : index
    %304 = vector.load %arg26[%c0_138, %c0_139] : memref<1x32xf32, #tpu.memory_space<vmem>>, vector<1x32xf32>
    %305 = arith.addf %288, %302 : vector<8x32xf32>
    %cst_140 = arith.constant dense<0.000000e+00> : vector<8xf32>
    %306 = vector.multi_reduction <add>, %305, %cst_140 [1] : vector<8x32xf32> to vector<8xf32>
    %307 = vector.shape_cast %306 : vector<8xf32> to vector<8x1xf32>
    %cst_141 = arith.constant 3.200000e+01 : f32
    %308 = vector.broadcast %cst_141 : f32 to vector<8x1xf32>
    %309 = arith.divf %307, %308 : vector<8x1xf32>
    %310 = vector.broadcast %309 : vector<8x1xf32> to vector<8x32xf32>
    %311 = arith.subf %305, %310 : vector<8x32xf32>
    %312 = arith.mulf %311, %311 : vector<8x32xf32>
    %cst_142 = arith.constant dense<0.000000e+00> : vector<8xf32>
    %313 = vector.multi_reduction <add>, %312, %cst_142 [1] : vector<8x32xf32> to vector<8xf32>
    %314 = vector.shape_cast %313 : vector<8xf32> to vector<8x1xf32>
    %cst_143 = arith.constant 3.200000e+01 : f32
    %315 = vector.broadcast %cst_143 : f32 to vector<8x1xf32>
    %316 = arith.divf %314, %315 : vector<8x1xf32>
    %317 = vector.broadcast %309 : vector<8x1xf32> to vector<8x32xf32>
    %318 = arith.subf %305, %317 : vector<8x32xf32>
    %cst_144 = arith.constant 9.99999974E-6 : f32
    %319 = vector.broadcast %cst_144 : f32 to vector<8x1xf32>
    %320 = arith.addf %316, %319 : vector<8x1xf32>
    %321 = math.rsqrt %320 : vector<8x1xf32>
    %322 = vector.broadcast %321 : vector<8x1xf32> to vector<8x32xf32>
    %323 = arith.mulf %318, %322 : vector<8x32xf32>
    %324 = vector.broadcast %303 : vector<1x32xf32> to vector<8x32xf32>
    %325 = arith.mulf %323, %324 : vector<8x32xf32>
    %326 = vector.broadcast %304 : vector<1x32xf32> to vector<8x32xf32>
    %327 = arith.addf %325, %326 : vector<8x32xf32>
    %c0_145 = arith.constant 0 : index
    %c0_146 = arith.constant 0 : index
    %c0_147 = arith.constant 0 : index
    %328 = vector.load %arg27[%c0_145, %c0_146, %c0_147] : memref<1x8x32xf32, #tpu.memory_space<vmem>>, vector<1x8x32xf32>
    %329 = vector.shape_cast %328 : vector<1x8x32xf32> to vector<8x32xf32>
    %330 = vector.shape_cast %327 : vector<8x32xf32> to vector<1x8x32xf32>
    tpu.vector_store %arg27[%c0_145, %c0_146, %c0_147], %330 {strides = array<i32>} : memref<1x8x32xf32, #tpu.memory_space<vmem>>, vector<1x8x32xf32>,
    return
  }
  func.func @transform_0(%arg0: i32) -> (i32, i32, i32) {
    %c0_i32 = arith.constant 0 : i32
    %c0_i32_0 = arith.constant 0 : i32
    %c0_i32_1 = arith.constant 0 : i32
    return %arg0, %c0_i32, %c0_i32_0 : i32, i32, i32
  }
  func.func @transform_1(%arg0: i32) -> (i32, i32, i32) {
    %c0_i32 = arith.constant 0 : i32
    %c0_i32_0 = arith.constant 0 : i32
    %c0_i32_1 = arith.constant 0 : i32
    return %arg0, %c0_i32, %c0_i32_0 : i32, i32, i32
  }
  func.func @transform_2(%arg0: i32) -> (i32, i32, i32) {
    %c0_i32 = arith.constant 0 : i32
    %c0_i32_0 = arith.constant 0 : i32
    %c0_i32_1 = arith.constant 0 : i32
    return %arg0, %c0_i32, %c0_i32_0 : i32, i32, i32
  }
  func.func @transform_3(%arg0: i32) -> (i32, i32, i32) {
    %c0_i32 = arith.constant 0 : i32
    %c0_i32_0 = arith.constant 0 : i32
    %c0_i32_1 = arith.constant 0 : i32
    return %arg0, %c0_i32, %c0_i32_0 : i32, i32, i32
  }
  func.func @transform_4(%arg0: i32) -> (i32, i32) {
    %c0_i32 = arith.constant 0 : i32
    %c0_i32_0 = arith.constant 0 : i32
    %c0_i32_1 = arith.constant 0 : i32
    return %c0_i32, %c0_i32_0 : i32, i32
  }
  func.func @transform_5(%arg0: i32) -> (i32, i32) {
    %c0_i32 = arith.constant 0 : i32
    %c0_i32_0 = arith.constant 0 : i32
    %c0_i32_1 = arith.constant 0 : i32
    return %c0_i32, %c0_i32_0 : i32, i32
  }
  func.func @transform_6(%arg0: i32) -> (i32, i32) {
    %c0_i32 = arith.constant 0 : i32
    %c0_i32_0 = arith.constant 0 : i32
    %c0_i32_1 = arith.constant 0 : i32
    return %c0_i32, %c0_i32_0 : i32, i32
  }
  func.func @transform_7(%arg0: i32) -> (i32, i32) {
    %c0_i32 = arith.constant 0 : i32
    %c0_i32_0 = arith.constant 0 : i32
    %c0_i32_1 = arith.constant 0 : i32
    return %c0_i32, %c0_i32_0 : i32, i32
  }
  func.func @transform_8(%arg0: i32) -> (i32, i32) {
    %c0_i32 = arith.constant 0 : i32
    %c0_i32_0 = arith.constant 0 : i32
    %c0_i32_1 = arith.constant 0 : i32
    return %c0_i32, %c0_i32_0 : i32, i32
  }
  func.func @transform_9(%arg0: i32) -> (i32, i32) {
    %c0_i32 = arith.constant 0 : i32
    %c0_i32_0 = arith.constant 0 : i32
    %c0_i32_1 = arith.constant 0 : i32
    return %c0_i32, %c0_i32_0 : i32, i32
  }
  func.func @transform_10(%arg0: i32) -> (i32, i32) {
    %c0_i32 = arith.constant 0 : i32
    %c0_i32_0 = arith.constant 0 : i32
    %c0_i32_1 = arith.constant 0 : i32
    return %c0_i32, %c0_i32_0 : i32, i32
  }
  func.func @transform_11(%arg0: i32) -> (i32, i32) {
    %c0_i32 = arith.constant 0 : i32
    %c0_i32_0 = arith.constant 0 : i32
    %c0_i32_1 = arith.constant 0 : i32
    return %c0_i32, %c0_i32_0 : i32, i32
  }
  func.func @transform_12(%arg0: i32) -> (i32, i32) {
    %c0_i32 = arith.constant 0 : i32
    %c0_i32_0 = arith.constant 0 : i32
    %c0_i32_1 = arith.constant 0 : i32
    return %c0_i32, %c0_i32_0 : i32, i32
  }
  func.func @transform_13(%arg0: i32) -> (i32, i32) {
    %c0_i32 = arith.constant 0 : i32
    %c0_i32_0 = arith.constant 0 : i32
    %c0_i32_1 = arith.constant 0 : i32
    return %c0_i32, %c0_i32_0 : i32, i32
  }
  func.func @transform_14(%arg0: i32) -> (i32, i32) {
    %c0_i32 = arith.constant 0 : i32
    %c0_i32_0 = arith.constant 0 : i32
    %c0_i32_1 = arith.constant 0 : i32
    return %c0_i32, %c0_i32_0 : i32, i32
  }
  func.func @transform_15(%arg0: i32) -> (i32, i32) {
    %c0_i32 = arith.constant 0 : i32
    %c0_i32_0 = arith.constant 0 : i32
    %c0_i32_1 = arith.constant 0 : i32
    return %c0_i32, %c0_i32_0 : i32, i32
  }
  func.func @transform_16(%arg0: i32) -> (i32, i32) {
    %c0_i32 = arith.constant 0 : i32
    %c0_i32_0 = arith.constant 0 : i32
    %c0_i32_1 = arith.constant 0 : i32
    return %c0_i32, %c0_i32_0 : i32, i32
  }
  func.func @transform_17(%arg0: i32) -> (i32, i32) {
    %c0_i32 = arith.constant 0 : i32
    %c0_i32_0 = arith.constant 0 : i32
    %c0_i32_1 = arith.constant 0 : i32
    return %c0_i32, %c0_i32_0 : i32, i32
  }
  func.func @transform_18(%arg0: i32) -> (i32, i32) {
    %c0_i32 = arith.constant 0 : i32
    %c0_i32_0 = arith.constant 0 : i32
    %c0_i32_1 = arith.constant 0 : i32
    return %c0_i32, %c0_i32_0 : i32, i32
  }
  func.func @transform_19(%arg0: i32) -> (i32, i32) {
    %c0_i32 = arith.constant 0 : i32
    %c0_i32_0 = arith.constant 0 : i32
    %c0_i32_1 = arith.constant 0 : i32
    return %c0_i32, %c0_i32_0 : i32, i32
  }
  func.func @transform_20(%arg0: i32) -> (i32, i32) {
    %c0_i32 = arith.constant 0 : i32
    %c0_i32_0 = arith.constant 0 : i32
    %c0_i32_1 = arith.constant 0 : i32
    return %c0_i32, %c0_i32_0 : i32, i32
  }
  func.func @transform_21(%arg0: i32) -> (i32, i32) {
    %c0_i32 = arith.constant 0 : i32
    %c0_i32_0 = arith.constant 0 : i32
    %c0_i32_1 = arith.constant 0 : i32
    return %c0_i32, %c0_i32_0 : i32, i32
  }
  func.func @transform_22(%arg0: i32) -> (i32, i32) {
    %c0_i32 = arith.constant 0 : i32
    %c0_i32_0 = arith.constant 0 : i32
    %c0_i32_1 = arith.constant 0 : i32
    return %c0_i32, %c0_i32_0 : i32, i32
  }
  func.func @transform_23(%arg0: i32) -> (i32, i32) {
    %c0_i32 = arith.constant 0 : i32
    %c0_i32_0 = arith.constant 0 : i32
    %c0_i32_1 = arith.constant 0 : i32
    return %c0_i32, %c0_i32_0 : i32, i32
  }
  func.func @transform_24(%arg0: i32) -> (i32, i32) {
    %c0_i32 = arith.constant 0 : i32
    %c0_i32_0 = arith.constant 0 : i32
    %c0_i32_1 = arith.constant 0 : i32
    return %c0_i32, %c0_i32_0 : i32, i32
  }
  func.func @transform_25(%arg0: i32) -> (i32, i32) {
    %c0_i32 = arith.constant 0 : i32
    %c0_i32_0 = arith.constant 0 : i32
    %c0_i32_1 = arith.constant 0 : i32
    return %c0_i32, %c0_i32_0 : i32, i32
  }
  func.func @transform_26(%arg0: i32) -> (i32, i32, i32) {
    %c0_i32 = arith.constant 0 : i32
    %c0_i32_0 = arith.constant 0 : i32
    %c0_i32_1 = arith.constant 0 : i32
    return %arg0, %c0_i32, %c0_i32_0 : i32, i32, i32
  }
}

module attributes {stable_mosaic.version = 11 : i64} {
  func.func @_decoder_layer_kernel(%arg0: i32, %arg1: memref<1x8x32xf32, #tpu.memory_space<vmem>>, %arg2: memref<1x16x32xbf16, #tpu.memory_space<vmem>>, %arg3: memref<1x1x8xf32, #tpu.memory_space<vmem>>, %arg4: memref<1x1x16xf32, #tpu.memory_space<vmem>>, %arg5: memref<32x32xbf16, #tpu.memory_space<vmem>>, %arg6: memref<1x32xf32, #tpu.memory_space<vmem>>, %arg7: memref<32x64xbf16, #tpu.memory_space<vmem>>, %arg8: memref<1x64xf32, #tpu.memory_space<vmem>>, %arg9: memref<32x32xbf16, #tpu.memory_space<vmem>>, %arg10: memref<1x32xf32, #tpu.memory_space<vmem>>, %arg11: memref<1x32xf32, #tpu.memory_space<vmem>>, %arg12: memref<1x32xf32, #tpu.memory_space<vmem>>, %arg13: memref<32x32xbf16, #tpu.memory_space<vmem>>, %arg14: memref<1x32xf32, #tpu.memory_space<vmem>>, %arg15: memref<32x64xbf16, #tpu.memory_space<vmem>>, %arg16: memref<1x64xf32, #tpu.memory_space<vmem>>, %arg17: memref<32x32xbf16, #tpu.memory_space<vmem>>, %arg18: memref<1x32xf32, #tpu.memory_space<vmem>>, %arg19: memref<1x32xf32, #tpu.memory_space<vmem>>, %arg20: memref<1x32xf32, #tpu.memory_space<vmem>>, %arg21: memref<32x64xbf16, #tpu.memory_space<vmem>>, %arg22: memref<1x64xf32, #tpu.memory_space<vmem>>, %arg23: memref<64x32xbf16, #tpu.memory_space<vmem>>, %arg24: memref<1x32xf32, #tpu.memory_space<vmem>>, %arg25: memref<1x32xf32, #tpu.memory_space<vmem>>, %arg26: memref<1x32xf32, #tpu.memory_space<vmem>>, %arg27: memref<1x8x32xf32, #tpu.memory_space<vmem>>, %arg28: memref<8x32xf32, #tpu.memory_space<vmem>>) attributes {dimension_semantics = [#tpu.dimension_semantics<parallel>], iteration_bounds = array<i64: 2>, scalar_prefetch = 0 : i64, scratch_operands = 1 : i64, tpu.core_type = #tpu.core_type<tc>, window_params = [{transform_indices = @transform_0, window_bounds = array<i64: 1, 8, 32>}, {transform_indices = @transform_1, window_bounds = array<i64: 1, 16, 32>}, {transform_indices = @transform_2, window_bounds = array<i64: 1, 1, 8>}, {transform_indices = @transform_3, window_bounds = array<i64: 1, 1, 16>}, {pipeline_mode = #tpu.pipeline_mode<synchronous>, transform_indices = @transform_4, window_bounds = array<i64: 32, 32>}, {pipeline_mode = #tpu.pipeline_mode<synchronous>, transform_indices = @transform_5, window_bounds = array<i64: 1, 32>}, {pipeline_mode = #tpu.pipeline_mode<synchronous>, transform_indices = @transform_6, window_bounds = array<i64: 32, 64>}, {pipeline_mode = #tpu.pipeline_mode<synchronous>, transform_indices = @transform_7, window_bounds = array<i64: 1, 64>}, {pipeline_mode = #tpu.pipeline_mode<synchronous>, transform_indices = @transform_8, window_bounds = array<i64: 32, 32>}, {pipeline_mode = #tpu.pipeline_mode<synchronous>, transform_indices = @transform_9, window_bounds = array<i64: 1, 32>}, {pipeline_mode = #tpu.pipeline_mode<synchronous>, transform_indices = @transform_10, window_bounds = array<i64: 1, 32>}, {pipeline_mode = #tpu.pipeline_mode<synchronous>, transform_indices = @transform_11, window_bounds = array<i64: 1, 32>}, {pipeline_mode = #tpu.pipeline_mode<synchronous>, transform_indices = @transform_12, window_bounds = array<i64: 32, 32>}, {pipeline_mode = #tpu.pipeline_mode<synchronous>, transform_indices = @transform_13, window_bounds = array<i64: 1, 32>}, {pipeline_mode = #tpu.pipeline_mode<synchronous>, transform_indices = @transform_14, window_bounds = array<i64: 32, 64>}, {pipeline_mode = #tpu.pipeline_mode<synchronous>, transform_indices = @transform_15, window_bounds = array<i64: 1, 64>}, {pipeline_mode = #tpu.pipeline_mode<synchronous>, transform_indices = @transform_16, window_bounds = array<i64: 32, 32>}, {pipeline_mode = #tpu.pipeline_mode<synchronous>, transform_indices = @transform_17, window_bounds = array<i64: 1, 32>}, {pipeline_mode = #tpu.pipeline_mode<synchronous>, transform_indices = @transform_18, window_bounds = array<i64: 1, 32>}, {pipeline_mode = #tpu.pipeline_mode<synchronous>, transform_indices = @transform_19, window_bounds = array<i64: 1, 32>}, {pipeline_mode = #tpu.pipeline_mode<synchronous>, transform_indices = @transform_20, window_bounds = array<i64: 32, 64>}, {pipeline_mode = #tpu.pipeline_mode<synchronous>, transform_indices = @transform_21, window_bounds = array<i64: 1, 64>}, {pipeline_mode = #tpu.pipeline_mode<synchronous>, transform_indices = @transform_22, window_bounds = array<i64: 64, 32>}, {pipeline_mode = #tpu.pipeline_mode<synchronous>, transform_indices = @transform_23, window_bounds = array<i64: 1, 32>}, {pipeline_mode = #tpu.pipeline_mode<synchronous>, transform_indices = @transform_24, window_bounds = array<i64: 1, 32>}, {pipeline_mode = #tpu.pipeline_mode<synchronous>, transform_indices = @transform_25, window_bounds = array<i64: 1, 32>}, {transform_indices = @transform_26, window_bounds = array<i64: 1, 8, 32>}]} {
    %c0 = arith.constant 0 : index
    %c0_0 = arith.constant 0 : index
    %c0_1 = arith.constant 0 : index
    %0 = vector.load %arg1[%c0, %c0_0, %c0_1] : memref<1x8x32xf32, #tpu.memory_space<vmem>>, vector<1x8x32xf32>
    %1 = vector.shape_cast %0 : vector<1x8x32xf32> to vector<8x32xf32>
    %c0_2 = arith.constant 0 : index
    %c0_3 = arith.constant 0 : index
    %c0_4 = arith.constant 0 : index
    %2 = vector.load %arg3[%c0_2, %c0_3, %c0_4] : memref<1x1x8xf32, #tpu.memory_space<vmem>>, vector<1x1x8xf32>
    %3 = vector.shape_cast %2 : vector<1x1x8xf32> to vector<1x8xf32>
    %cst = arith.constant 5.000000e-01 : f32
    %4 = vector.broadcast %cst : f32 to vector<1x8xf32>
    %5 = arith.cmpf ogt, %3, %4 : vector<1x8xf32>
    %c0_5 = arith.constant 0 : index
    %c0_6 = arith.constant 0 : index
    %c0_7 = arith.constant 0 : index
    %6 = vector.load %arg4[%c0_5, %c0_6, %c0_7] : memref<1x1x16xf32, #tpu.memory_space<vmem>>, vector<1x1x16xf32>
    %7 = vector.shape_cast %6 : vector<1x1x16xf32> to vector<1x16xf32>
    %cst_8 = arith.constant 5.000000e-01 : f32
    %8 = vector.broadcast %cst_8 : f32 to vector<1x16xf32>
    %9 = arith.cmpf ogt, %7, %8 : vector<1x16xf32>
    %10 = tpu.iota {dimensions = array<i32: 0>} : vector<8x8xi32>
    %11 = tpu.iota {dimensions = array<i32: 1>} : vector<8x8xi32>
    %12 = arith.cmpi sle, %11, %10 : vector<8x8xi32>
    %13 = vector.broadcast %5 : vector<1x8xi1> to vector<8x8xi1>
    %14 = arith.andi %12, %13 : vector<8x8xi1>
    %15 = arith.truncf %1 : vector<8x32xf32> to vector<8x32xbf16>
    %c0_9 = arith.constant 0 : index
    %c0_10 = arith.constant 0 : index
    %16 = vector.load %arg5[%c0_9, %c0_10] : memref<32x32xbf16, #tpu.memory_space<vmem>>, vector<32x32xbf16>
    %c0_11 = arith.constant 0 : index
    %c0_12 = arith.constant 0 : index
    %17 = vector.load %arg6[%c0_11, %c0_12] : memref<1x32xf32, #tpu.memory_space<vmem>>, vector<1x32xf32>
    %c0_13 = arith.constant 0 : index
    %c0_14 = arith.constant 0 : index
    %18 = vector.load %arg7[%c0_13, %c0_14] : memref<32x64xbf16, #tpu.memory_space<vmem>>, vector<32x64xbf16>
    %c0_15 = arith.constant 0 : index
    %c0_16 = arith.constant 0 : index
    %19 = vector.load %arg8[%c0_15, %c0_16] : memref<1x64xf32, #tpu.memory_space<vmem>>, vector<1x64xf32>
    %c0_17 = arith.constant 0 : index
    %c0_18 = arith.constant 0 : index
    %20 = vector.load %arg9[%c0_17, %c0_18] : memref<32x32xbf16, #tpu.memory_space<vmem>>, vector<32x32xbf16>
    %c0_19 = arith.constant 0 : index
    %c0_20 = arith.constant 0 : index
    %21 = vector.load %arg10[%c0_19, %c0_20] : memref<1x32xf32, #tpu.memory_space<vmem>>, vector<1x32xf32>
    %cst_21 = arith.constant dense<0.000000e+00> : vector<8x32xf32>
    %22 = tpu.matmul %15, %16, %cst_21 {dimension_numbers = #tpu.dot_dimension_numbers<[1], [0], [0], [1], [0, 0, 1, 1], [], []>} : vector<8x32xbf16>, vector<32x32xbf16>, vector<8x32xf32> -> vector<8x32xf32>
    %23 = vector.broadcast %17 : vector<1x32xf32> to vector<8x32xf32>
    %24 = arith.addf %22, %23 : vector<8x32xf32>
    %cst_22 = arith.constant dense<0.000000e+00> : vector<8x64xf32>
    %25 = tpu.matmul %15, %18, %cst_22 {dimension_numbers = #tpu.dot_dimension_numbers<[1], [0], [0], [1], [0, 0, 1, 1], [], []>} : vector<8x32xbf16>, vector<32x64xbf16>, vector<8x64xf32> -> vector<8x64xf32>
    %26 = vector.broadcast %19 : vector<1x64xf32> to vector<8x64xf32>
    %27 = arith.addf %25, %26 : vector<8x64xf32>
    %28 = arith.truncf %24 : vector<8x32xf32> to vector<8x32xbf16>
    %29 = vector.extract_strided_slice %27 {offsets = [0, 0], sizes = [8, 32], strides = [1, 1]} : vector<8x64xf32> to vector<8x32xf32>
    %30 = arith.truncf %29 : vector<8x32xf32> to vector<8x32xbf16>
    %31 = vector.extract_strided_slice %27 {offsets = [0, 32], sizes = [8, 32], strides = [1, 1]} : vector<8x64xf32> to vector<8x32xf32>
    %32 = arith.truncf %31 : vector<8x32xf32> to vector<8x32xbf16>
    %33 = vector.extract_strided_slice %28 {offsets = [0, 0], sizes = [8, 8], strides = [1, 1]} : vector<8x32xbf16> to vector<8x8xbf16>
    %34 = vector.extract_strided_slice %30 {offsets = [0, 0], sizes = [8, 8], strides = [1, 1]} : vector<8x32xbf16> to vector<8x8xbf16>
    %cst_23 = arith.constant dense<0.000000e+00> : vector<8x8xf32>
    %35 = tpu.matmul %33, %34, %cst_23 {dimension_numbers = #tpu.dot_dimension_numbers<[1], [1], [0], [0], [0, 0, 1, 0], [], []>} : vector<8x8xbf16>, vector<8x8xbf16>, vector<8x8xf32> -> vector<8x8xf32>
    %cst_24 = arith.constant 0.353553385 : f32
    %36 = vector.broadcast %cst_24 : f32 to vector<8x8xf32>
    %37 = arith.mulf %35, %36 : vector<8x8xf32>
    %cst_25 = arith.constant -1.000000e+09 : f32
    %38 = vector.broadcast %cst_25 : f32 to vector<8x8xf32>
    %39 = arith.select %14, %37, %38 : vector<8x8xi1>, vector<8x8xf32>
    %cst_26 = arith.constant dense<0xFF800000> : vector<8xf32>
    %40 = vector.multi_reduction <maximumf>, %39, %cst_26 [1] : vector<8x8xf32> to vector<8xf32>
    %41 = vector.shape_cast %40 : vector<8xf32> to vector<8x1xf32>
    %42 = vector.broadcast %41 : vector<8x1xf32> to vector<8x8xf32>
    %43 = arith.subf %39, %42 : vector<8x8xf32>
    %44 = math.exp %43 : vector<8x8xf32>
    %cst_27 = arith.constant dense<0.000000e+00> : vector<8xf32>
    %45 = vector.multi_reduction <add>, %44, %cst_27 [1] : vector<8x8xf32> to vector<8xf32>
    %46 = vector.shape_cast %45 : vector<8xf32> to vector<8x1xf32>
    %47 = tpu.reciprocal %46 {approx = true} : vector<8x1xf32> -> vector<8x1xf32>
    %48 = vector.broadcast %47 : vector<8x1xf32> to vector<8x8xf32>
    %49 = arith.mulf %44, %48 : vector<8x8xf32>
    %50 = arith.truncf %49 : vector<8x8xf32> to vector<8x8xbf16>
    %51 = vector.extract_strided_slice %32 {offsets = [0, 0], sizes = [8, 8], strides = [1, 1]} : vector<8x32xbf16> to vector<8x8xbf16>
    %cst_28 = arith.constant dense<0.000000e+00> : vector<8x8xf32>
    %52 = tpu.matmul %50, %51, %cst_28 {dimension_numbers = #tpu.dot_dimension_numbers<[1], [0], [0], [1], [0, 0, 1, 1], [], []>} : vector<8x8xbf16>, vector<8x8xbf16>, vector<8x8xf32> -> vector<8x8xf32>
    %c0_29 = arith.constant 0 : index
    %c0_30 = arith.constant 0 : index
    %53 = vector.load %arg28[%c0_29, %c0_30] : memref<8x32xf32, #tpu.memory_space<vmem>>, vector<8x8xf32>
    tpu.vector_store %arg28[%c0_29, %c0_30], %52 {strides = array<i32>} : memref<8x32xf32, #tpu.memory_space<vmem>>, vector<8x8xf32>,
    %54 = vector.extract_strided_slice %28 {offsets = [0, 8], sizes = [8, 8], strides = [1, 1]} : vector<8x32xbf16> to vector<8x8xbf16>
    %55 = vector.extract_strided_slice %30 {offsets = [0, 8], sizes = [8, 8], strides = [1, 1]} : vector<8x32xbf16> to vector<8x8xbf16>
    %cst_31 = arith.constant dense<0.000000e+00> : vector<8x8xf32>
    %56 = tpu.matmul %54, %55, %cst_31 {dimension_numbers = #tpu.dot_dimension_numbers<[1], [1], [0], [0], [0, 0, 1, 0], [], []>} : vector<8x8xbf16>, vector<8x8xbf16>, vector<8x8xf32> -> vector<8x8xf32>
    %cst_32 = arith.constant 0.353553385 : f32
    %57 = vector.broadcast %cst_32 : f32 to vector<8x8xf32>
    %58 = arith.mulf %56, %57 : vector<8x8xf32>
    %cst_33 = arith.constant -1.000000e+09 : f32
    %59 = vector.broadcast %cst_33 : f32 to vector<8x8xf32>
    %60 = arith.select %14, %58, %59 : vector<8x8xi1>, vector<8x8xf32>
    %cst_34 = arith.constant dense<0xFF800000> : vector<8xf32>
    %61 = vector.multi_reduction <maximumf>, %60, %cst_34 [1] : vector<8x8xf32> to vector<8xf32>
    %62 = vector.shape_cast %61 : vector<8xf32> to vector<8x1xf32>
    %63 = vector.broadcast %62 : vector<8x1xf32> to vector<8x8xf32>
    %64 = arith.subf %60, %63 : vector<8x8xf32>
    %65 = math.exp %64 : vector<8x8xf32>
    %cst_35 = arith.constant dense<0.000000e+00> : vector<8xf32>
    %66 = vector.multi_reduction <add>, %65, %cst_35 [1] : vector<8x8xf32> to vector<8xf32>
    %67 = vector.shape_cast %66 : vector<8xf32> to vector<8x1xf32>
    %68 = tpu.reciprocal %67 {approx = true} : vector<8x1xf32> -> vector<8x1xf32>
    %69 = vector.broadcast %68 : vector<8x1xf32> to vector<8x8xf32>
    %70 = arith.mulf %65, %69 : vector<8x8xf32>
    %71 = arith.truncf %70 : vector<8x8xf32> to vector<8x8xbf16>
    %72 = vector.extract_strided_slice %32 {offsets = [0, 8], sizes = [8, 8], strides = [1, 1]} : vector<8x32xbf16> to vector<8x8xbf16>
    %cst_36 = arith.constant dense<0.000000e+00> : vector<8x8xf32>
    %73 = tpu.matmul %71, %72, %cst_36 {dimension_numbers = #tpu.dot_dimension_numbers<[1], [0], [0], [1], [0, 0, 1, 1], [], []>} : vector<8x8xbf16>, vector<8x8xbf16>, vector<8x8xf32> -> vector<8x8xf32>
    %c0_37 = arith.constant 0 : index
    %c8 = arith.constant 8 : index
    %74 = vector.load %arg28[%c0_37, %c8] : memref<8x32xf32, #tpu.memory_space<vmem>>, vector<8x8xf32>
    tpu.vector_store %arg28[%c0_37, %c8], %73 {strides = array<i32>} : memref<8x32xf32, #tpu.memory_space<vmem>>, vector<8x8xf32>,
    %75 = vector.extract_strided_slice %28 {offsets = [0, 16], sizes = [8, 8], strides = [1, 1]} : vector<8x32xbf16> to vector<8x8xbf16>
    %76 = vector.extract_strided_slice %30 {offsets = [0, 16], sizes = [8, 8], strides = [1, 1]} : vector<8x32xbf16> to vector<8x8xbf16>
    %cst_38 = arith.constant dense<0.000000e+00> : vector<8x8xf32>
    %77 = tpu.matmul %75, %76, %cst_38 {dimension_numbers = #tpu.dot_dimension_numbers<[1], [1], [0], [0], [0, 0, 1, 0], [], []>} : vector<8x8xbf16>, vector<8x8xbf16>, vector<8x8xf32> -> vector<8x8xf32>
    %cst_39 = arith.constant 0.353553385 : f32
    %78 = vector.broadcast %cst_39 : f32 to vector<8x8xf32>
    %79 = arith.mulf %77, %78 : vector<8x8xf32>
    %cst_40 = arith.constant -1.000000e+09 : f32
    %80 = vector.broadcast %cst_40 : f32 to vector<8x8xf32>
    %81 = arith.select %14, %79, %80 : vector<8x8xi1>, vector<8x8xf32>
    %cst_41 = arith.constant dense<0xFF800000> : vector<8xf32>
    %82 = vector.multi_reduction <maximumf>, %81, %cst_41 [1] : vector<8x8xf32> to vector<8xf32>
    %83 = vector.shape_cast %82 : vector<8xf32> to vector<8x1xf32>
    %84 = vector.broadcast %83 : vector<8x1xf32> to vector<8x8xf32>
    %85 = arith.subf %81, %84 : vector<8x8xf32>
    %86 = math.exp %85 : vector<8x8xf32>
    %cst_42 = arith.constant dense<0.000000e+00> : vector<8xf32>
    %87 = vector.multi_reduction <add>, %86, %cst_42 [1] : vector<8x8xf32> to vector<8xf32>
    %88 = vector.shape_cast %87 : vector<8xf32> to vector<8x1xf32>
    %89 = tpu.reciprocal %88 {approx = true} : vector<8x1xf32> -> vector<8x1xf32>
    %90 = vector.broadcast %89 : vector<8x1xf32> to vector<8x8xf32>
    %91 = arith.mulf %86, %90 : vector<8x8xf32>
    %92 = arith.truncf %91 : vector<8x8xf32> to vector<8x8xbf16>
    %93 = vector.extract_strided_slice %32 {offsets = [0, 16], sizes = [8, 8], strides = [1, 1]} : vector<8x32xbf16> to vector<8x8xbf16>
    %cst_43 = arith.constant dense<0.000000e+00> : vector<8x8xf32>
    %94 = tpu.matmul %92, %93, %cst_43 {dimension_numbers = #tpu.dot_dimension_numbers<[1], [0], [0], [1], [0, 0, 1, 1], [], []>} : vector<8x8xbf16>, vector<8x8xbf16>, vector<8x8xf32> -> vector<8x8xf32>
    %c0_44 = arith.constant 0 : index
    %c16 = arith.constant 16 : index
    %95 = vector.load %arg28[%c0_44, %c16] : memref<8x32xf32, #tpu.memory_space<vmem>>, vector<8x8xf32>
    tpu.vector_store %arg28[%c0_44, %c16], %94 {strides = array<i32>} : memref<8x32xf32, #tpu.memory_space<vmem>>, vector<8x8xf32>,
    %96 = vector.extract_strided_slice %28 {offsets = [0, 24], sizes = [8, 8], strides = [1, 1]} : vector<8x32xbf16> to vector<8x8xbf16>
    %97 = vector.extract_strided_slice %30 {offsets = [0, 24], sizes = [8, 8], strides = [1, 1]} : vector<8x32xbf16> to vector<8x8xbf16>
    %cst_45 = arith.constant dense<0.000000e+00> : vector<8x8xf32>
    %98 = tpu.matmul %96, %97, %cst_45 {dimension_numbers = #tpu.dot_dimension_numbers<[1], [1], [0], [0], [0, 0, 1, 0], [], []>} : vector<8x8xbf16>, vector<8x8xbf16>, vector<8x8xf32> -> vector<8x8xf32>
    %cst_46 = arith.constant 0.353553385 : f32
    %99 = vector.broadcast %cst_46 : f32 to vector<8x8xf32>
    %100 = arith.mulf %98, %99 : vector<8x8xf32>
    %cst_47 = arith.constant -1.000000e+09 : f32
    %101 = vector.broadcast %cst_47 : f32 to vector<8x8xf32>
    %102 = arith.select %14, %100, %101 : vector<8x8xi1>, vector<8x8xf32>
    %cst_48 = arith.constant dense<0xFF800000> : vector<8xf32>
    %103 = vector.multi_reduction <maximumf>, %102, %cst_48 [1] : vector<8x8xf32> to vector<8xf32>
    %104 = vector.shape_cast %103 : vector<8xf32> to vector<8x1xf32>
    %105 = vector.broadcast %104 : vector<8x1xf32> to vector<8x8xf32>
    %106 = arith.subf %102, %105 : vector<8x8xf32>
    %107 = math.exp %106 : vector<8x8xf32>
    %cst_49 = arith.constant dense<0.000000e+00> : vector<8xf32>
    %108 = vector.multi_reduction <add>, %107, %cst_49 [1] : vector<8x8xf32> to vector<8xf32>
    %109 = vector.shape_cast %108 : vector<8xf32> to vector<8x1xf32>
    %110 = tpu.reciprocal %109 {approx = true} : vector<8x1xf32> -> vector<8x1xf32>
    %111 = vector.broadcast %110 : vector<8x1xf32> to vector<8x8xf32>
    %112 = arith.mulf %107, %111 : vector<8x8xf32>
    %113 = arith.truncf %112 : vector<8x8xf32> to vector<8x8xbf16>
    %114 = vector.extract_strided_slice %32 {offsets = [0, 24], sizes = [8, 8], strides = [1, 1]} : vector<8x32xbf16> to vector<8x8xbf16>
    %cst_50 = arith.constant dense<0.000000e+00> : vector<8x8xf32>
    %115 = tpu.matmul %113, %114, %cst_50 {dimension_numbers = #tpu.dot_dimension_numbers<[1], [0], [0], [1], [0, 0, 1, 1], [], []>} : vector<8x8xbf16>, vector<8x8xbf16>, vector<8x8xf32> -> vector<8x8xf32>
    %c0_51 = arith.constant 0 : index
    %c24 = arith.constant 24 : index
    %116 = vector.load %arg28[%c0_51, %c24] : memref<8x32xf32, #tpu.memory_space<vmem>>, vector<8x8xf32>
    tpu.vector_store %arg28[%c0_51, %c24], %115 {strides = array<i32>} : memref<8x32xf32, #tpu.memory_space<vmem>>, vector<8x8xf32>,
    %c0_52 = arith.constant 0 : index
    %c0_53 = arith.constant 0 : index
    %117 = vector.load %arg28[%c0_52, %c0_53] : memref<8x32xf32, #tpu.memory_space<vmem>>, vector<8x32xf32>
    %118 = arith.truncf %117 : vector<8x32xf32> to vector<8x32xbf16>
    %cst_54 = arith.constant dense<0.000000e+00> : vector<8x32xf32>
    %119 = tpu.matmul %118, %20, %cst_54 {dimension_numbers = #tpu.dot_dimension_numbers<[1], [0], [0], [1], [0, 0, 1, 1], [], []>} : vector<8x32xbf16>, vector<32x32xbf16>, vector<8x32xf32> -> vector<8x32xf32>
    %120 = vector.broadcast %21 : vector<1x32xf32> to vector<8x32xf32>
    %121 = arith.addf %119, %120 : vector<8x32xf32>
    %c0_55 = arith.constant 0 : index
    %c0_56 = arith.constant 0 : index
    %122 = vector.load %arg11[%c0_55, %c0_56] : memref<1x32xf32, #tpu.memory_space<vmem>>, vector<1x32xf32>
    %c0_57 = arith.constant 0 : index
    %c0_58 = arith.constant 0 : index
    %123 = vector.load %arg12[%c0_57, %c0_58] : memref<1x32xf32, #tpu.memory_space<vmem>>, vector<1x32xf32>
    %124 = arith.addf %1, %121 : vector<8x32xf32>
    %cst_59 = arith.constant dense<0.000000e+00> : vector<8xf32>
    %125 = vector.multi_reduction <add>, %124, %cst_59 [1] : vector<8x32xf32> to vector<8xf32>
    %126 = vector.shape_cast %125 : vector<8xf32> to vector<8x1xf32>
    %cst_60 = arith.constant 3.200000e+01 : f32
    %127 = vector.broadcast %cst_60 : f32 to vector<8x1xf32>
    %128 = arith.divf %126, %127 : vector<8x1xf32>
    %129 = vector.broadcast %128 : vector<8x1xf32> to vector<8x32xf32>
    %130 = arith.subf %124, %129 : vector<8x32xf32>
    %131 = arith.mulf %130, %130 : vector<8x32xf32>
    %cst_61 = arith.constant dense<0.000000e+00> : vector<8xf32>
    %132 = vector.multi_reduction <add>, %131, %cst_61 [1] : vector<8x32xf32> to vector<8xf32>
    %133 = vector.shape_cast %132 : vector<8xf32> to vector<8x1xf32>
    %cst_62 = arith.constant 3.200000e+01 : f32
    %134 = vector.broadcast %cst_62 : f32 to vector<8x1xf32>
    %135 = arith.divf %133, %134 : vector<8x1xf32>
    %136 = vector.broadcast %128 : vector<8x1xf32> to vector<8x32xf32>
    %137 = arith.subf %124, %136 : vector<8x32xf32>
    %cst_63 = arith.constant 9.99999974E-6 : f32
    %138 = vector.broadcast %cst_63 : f32 to vector<8x1xf32>
    %139 = arith.addf %135, %138 : vector<8x1xf32>
    %140 = math.rsqrt %139 : vector<8x1xf32>
    %141 = vector.broadcast %140 : vector<8x1xf32> to vector<8x32xf32>
    %142 = arith.mulf %137, %141 : vector<8x32xf32>
    %143 = vector.broadcast %122 : vector<1x32xf32> to vector<8x32xf32>
    %144 = arith.mulf %142, %143 : vector<8x32xf32>
    %145 = vector.broadcast %123 : vector<1x32xf32> to vector<8x32xf32>
    %146 = arith.addf %144, %145 : vector<8x32xf32>
    %147 = arith.truncf %146 : vector<8x32xf32> to vector<8x32xbf16>
    %c0_64 = arith.constant 0 : index
    %c0_65 = arith.constant 0 : index
    %c0_66 = arith.constant 0 : index
    %148 = vector.load %arg2[%c0_64, %c0_65, %c0_66] : memref<1x16x32xbf16, #tpu.memory_space<vmem>>, vector<1x16x32xbf16>
    %149 = vector.shape_cast %148 : vector<1x16x32xbf16> to vector<16x32xbf16>
    %c0_67 = arith.constant 0 : index
    %c0_68 = arith.constant 0 : index
    %150 = vector.load %arg13[%c0_67, %c0_68] : memref<32x32xbf16, #tpu.memory_space<vmem>>, vector<32x32xbf16>
    %c0_69 = arith.constant 0 : index
    %c0_70 = arith.constant 0 : index
    %151 = vector.load %arg14[%c0_69, %c0_70] : memref<1x32xf32, #tpu.memory_space<vmem>>, vector<1x32xf32>
    %c0_71 = arith.constant 0 : index
    %c0_72 = arith.constant 0 : index
    %152 = vector.load %arg15[%c0_71, %c0_72] : memref<32x64xbf16, #tpu.memory_space<vmem>>, vector<32x64xbf16>
    %c0_73 = arith.constant 0 : index
    %c0_74 = arith.constant 0 : index
    %153 = vector.load %arg16[%c0_73, %c0_74] : memref<1x64xf32, #tpu.memory_space<vmem>>, vector<1x64xf32>
    %c0_75 = arith.constant 0 : index
    %c0_76 = arith.constant 0 : index
    %154 = vector.load %arg17[%c0_75, %c0_76] : memref<32x32xbf16, #tpu.memory_space<vmem>>, vector<32x32xbf16>
    %c0_77 = arith.constant 0 : index
    %c0_78 = arith.constant 0 : index
    %155 = vector.load %arg18[%c0_77, %c0_78] : memref<1x32xf32, #tpu.memory_space<vmem>>, vector<1x32xf32>
    %cst_79 = arith.constant dense<0.000000e+00> : vector<8x32xf32>
    %156 = tpu.matmul %147, %150, %cst_79 {dimension_numbers = #tpu.dot_dimension_numbers<[1], [0], [0], [1], [0, 0, 1, 1], [], []>} : vector<8x32xbf16>, vector<32x32xbf16>, vector<8x32xf32> -> vector<8x32xf32>
    %157 = vector.broadcast %151 : vector<1x32xf32> to vector<8x32xf32>
    %158 = arith.addf %156, %157 : vector<8x32xf32>
    %cst_80 = arith.constant dense<0.000000e+00> : vector<16x64xf32>
    %159 = tpu.matmul %149, %152, %cst_80 {dimension_numbers = #tpu.dot_dimension_numbers<[1], [0], [0], [1], [0, 0, 1, 1], [], []>} : vector<16x32xbf16>, vector<32x64xbf16>, vector<16x64xf32> -> vector<16x64xf32>
    %160 = vector.broadcast %153 : vector<1x64xf32> to vector<16x64xf32>
    %161 = arith.addf %159, %160 : vector<16x64xf32>
    %162 = arith.truncf %158 : vector<8x32xf32> to vector<8x32xbf16>
    %163 = vector.extract_strided_slice %161 {offsets = [0, 0], sizes = [16, 32], strides = [1, 1]} : vector<16x64xf32> to vector<16x32xf32>
    %164 = arith.truncf %163 : vector<16x32xf32> to vector<16x32xbf16>
    %165 = vector.extract_strided_slice %161 {offsets = [0, 32], sizes = [16, 32], strides = [1, 1]} : vector<16x64xf32> to vector<16x32xf32>
    %166 = arith.truncf %165 : vector<16x32xf32> to vector<16x32xbf16>
    %167 = vector.extract_strided_slice %162 {offsets = [0, 0], sizes = [8, 8], strides = [1, 1]} : vector<8x32xbf16> to vector<8x8xbf16>
    %168 = vector.extract_strided_slice %164 {offsets = [0, 0], sizes = [16, 8], strides = [1, 1]} : vector<16x32xbf16> to vector<16x8xbf16>
    %cst_81 = arith.constant dense<0.000000e+00> : vector<8x16xf32>
    %169 = tpu.matmul %167, %168, %cst_81 {dimension_numbers = #tpu.dot_dimension_numbers<[1], [1], [0], [0], [0, 0, 1, 0], [], []>} : vector<8x8xbf16>, vector<16x8xbf16>, vector<8x16xf32> -> vector<8x16xf32>
    %cst_82 = arith.constant 0.353553385 : f32
    %170 = vector.broadcast %cst_82 : f32 to vector<8x16xf32>
    %171 = arith.mulf %169, %170 : vector<8x16xf32>
    %cst_83 = arith.constant -1.000000e+09 : f32
    %172 = vector.shape_cast %9 : vector<1x16xi1> to vector<1x16xi1>
    %173 = vector.broadcast %172 : vector<1x16xi1> to vector<8x16xi1>
    %174 = vector.broadcast %cst_83 : f32 to vector<8x16xf32>
    %175 = arith.select %173, %171, %174 : vector<8x16xi1>, vector<8x16xf32>
    %cst_84 = arith.constant dense<0xFF800000> : vector<8xf32>
    %176 = vector.multi_reduction <maximumf>, %175, %cst_84 [1] : vector<8x16xf32> to vector<8xf32>
    %177 = vector.shape_cast %176 : vector<8xf32> to vector<8x1xf32>
    %178 = vector.broadcast %177 : vector<8x1xf32> to vector<8x16xf32>
    %179 = arith.subf %175, %178 : vector<8x16xf32>
    %180 = math.exp %179 : vector<8x16xf32>
    %cst_85 = arith.constant dense<0.000000e+00> : vector<8xf32>
    %181 = vector.multi_reduction <add>, %180, %cst_85 [1] : vector<8x16xf32> to vector<8xf32>
    %182 = vector.shape_cast %181 : vector<8xf32> to vector<8x1xf32>
    %183 = tpu.reciprocal %182 {approx = true} : vector<8x1xf32> -> vector<8x1xf32>
    %184 = vector.broadcast %183 : vector<8x1xf32> to vector<8x16xf32>
    %185 = arith.mulf %180, %184 : vector<8x16xf32>
    %186 = arith.truncf %185 : vector<8x16xf32> to vector<8x16xbf16>
    %187 = vector.extract_strided_slice %166 {offsets = [0, 0], sizes = [16, 8], strides = [1, 1]} : vector<16x32xbf16> to vector<16x8xbf16>
    %cst_86 = arith.constant dense<0.000000e+00> : vector<8x8xf32>
    %188 = tpu.matmul %186, %187, %cst_86 {dimension_numbers = #tpu.dot_dimension_numbers<[1], [0], [0], [1], [0, 0, 1, 1], [], []>} : vector<8x16xbf16>, vector<16x8xbf16>, vector<8x8xf32> -> vector<8x8xf32>
    %c0_87 = arith.constant 0 : index
    %c0_88 = arith.constant 0 : index
    %189 = vector.load %arg28[%c0_87, %c0_88] : memref<8x32xf32, #tpu.memory_space<vmem>>, vector<8x8xf32>
    tpu.vector_store %arg28[%c0_87, %c0_88], %188 {strides = array<i32>} : memref<8x32xf32, #tpu.memory_space<vmem>>, vector<8x8xf32>,
    %190 = vector.extract_strided_slice %162 {offsets = [0, 8], sizes = [8, 8], strides = [1, 1]} : vector<8x32xbf16> to vector<8x8xbf16>
    %191 = vector.extract_strided_slice %164 {offsets = [0, 8], sizes = [16, 8], strides = [1, 1]} : vector<16x32xbf16> to vector<16x8xbf16>
    %cst_89 = arith.constant dense<0.000000e+00> : vector<8x16xf32>
    %192 = tpu.matmul %190, %191, %cst_89 {dimension_numbers = #tpu.dot_dimension_numbers<[1], [1], [0], [0], [0, 0, 1, 0], [], []>} : vector<8x8xbf16>, vector<16x8xbf16>, vector<8x16xf32> -> vector<8x16xf32>
    %cst_90 = arith.constant 0.353553385 : f32
    %193 = vector.broadcast %cst_90 : f32 to vector<8x16xf32>
    %194 = arith.mulf %192, %193 : vector<8x16xf32>
    %cst_91 = arith.constant -1.000000e+09 : f32
    %195 = vector.shape_cast %9 : vector<1x16xi1> to vector<1x16xi1>
    %196 = vector.broadcast %195 : vector<1x16xi1> to vector<8x16xi1>
    %197 = vector.broadcast %cst_91 : f32 to vector<8x16xf32>
    %198 = arith.select %196, %194, %197 : vector<8x16xi1>, vector<8x16xf32>
    %cst_92 = arith.constant dense<0xFF800000> : vector<8xf32>
    %199 = vector.multi_reduction <maximumf>, %198, %cst_92 [1] : vector<8x16xf32> to vector<8xf32>
    %200 = vector.shape_cast %199 : vector<8xf32> to vector<8x1xf32>
    %201 = vector.broadcast %200 : vector<8x1xf32> to vector<8x16xf32>
    %202 = arith.subf %198, %201 : vector<8x16xf32>
    %203 = math.exp %202 : vector<8x16xf32>
    %cst_93 = arith.constant dense<0.000000e+00> : vector<8xf32>
    %204 = vector.multi_reduction <add>, %203, %cst_93 [1] : vector<8x16xf32> to vector<8xf32>
    %205 = vector.shape_cast %204 : vector<8xf32> to vector<8x1xf32>
    %206 = tpu.reciprocal %205 {approx = true} : vector<8x1xf32> -> vector<8x1xf32>
    %207 = vector.broadcast %206 : vector<8x1xf32> to vector<8x16xf32>
    %208 = arith.mulf %203, %207 : vector<8x16xf32>
    %209 = arith.truncf %208 : vector<8x16xf32> to vector<8x16xbf16>
    %210 = vector.extract_strided_slice %166 {offsets = [0, 8], sizes = [16, 8], strides = [1, 1]} : vector<16x32xbf16> to vector<16x8xbf16>
    %cst_94 = arith.constant dense<0.000000e+00> : vector<8x8xf32>
    %211 = tpu.matmul %209, %210, %cst_94 {dimension_numbers = #tpu.dot_dimension_numbers<[1], [0], [0], [1], [0, 0, 1, 1], [], []>} : vector<8x16xbf16>, vector<16x8xbf16>, vector<8x8xf32> -> vector<8x8xf32>
    %c0_95 = arith.constant 0 : index
    %c8_96 = arith.constant 8 : index
    %212 = vector.load %arg28[%c0_95, %c8_96] : memref<8x32xf32, #tpu.memory_space<vmem>>, vector<8x8xf32>
    tpu.vector_store %arg28[%c0_95, %c8_96], %211 {strides = array<i32>} : memref<8x32xf32, #tpu.memory_space<vmem>>, vector<8x8xf32>,
    %213 = vector.extract_strided_slice %162 {offsets = [0, 16], sizes = [8, 8], strides = [1, 1]} : vector<8x32xbf16> to vector<8x8xbf16>
    %214 = vector.extract_strided_slice %164 {offsets = [0, 16], sizes = [16, 8], strides = [1, 1]} : vector<16x32xbf16> to vector<16x8xbf16>
    %cst_97 = arith.constant dense<0.000000e+00> : vector<8x16xf32>
    %215 = tpu.matmul %213, %214, %cst_97 {dimension_numbers = #tpu.dot_dimension_numbers<[1], [1], [0], [0], [0, 0, 1, 0], [], []>} : vector<8x8xbf16>, vector<16x8xbf16>, vector<8x16xf32> -> vector<8x16xf32>
    %cst_98 = arith.constant 0.353553385 : f32
    %216 = vector.broadcast %cst_98 : f32 to vector<8x16xf32>
    %217 = arith.mulf %215, %216 : vector<8x16xf32>
    %cst_99 = arith.constant -1.000000e+09 : f32
    %218 = vector.shape_cast %9 : vector<1x16xi1> to vector<1x16xi1>
    %219 = vector.broadcast %218 : vector<1x16xi1> to vector<8x16xi1>
    %220 = vector.broadcast %cst_99 : f32 to vector<8x16xf32>
    %221 = arith.select %219, %217, %220 : vector<8x16xi1>, vector<8x16xf32>
    %cst_100 = arith.constant dense<0xFF800000> : vector<8xf32>
    %222 = vector.multi_reduction <maximumf>, %221, %cst_100 [1] : vector<8x16xf32> to vector<8xf32>
    %223 = vector.shape_cast %222 : vector<8xf32> to vector<8x1xf32>
    %224 = vector.broadcast %223 : vector<8x1xf32> to vector<8x16xf32>
    %225 = arith.subf %221, %224 : vector<8x16xf32>
    %226 = math.exp %225 : vector<8x16xf32>
    %cst_101 = arith.constant dense<0.000000e+00> : vector<8xf32>
    %227 = vector.multi_reduction <add>, %226, %cst_101 [1] : vector<8x16xf32> to vector<8xf32>
    %228 = vector.shape_cast %227 : vector<8xf32> to vector<8x1xf32>
    %229 = tpu.reciprocal %228 {approx = true} : vector<8x1xf32> -> vector<8x1xf32>
    %230 = vector.broadcast %229 : vector<8x1xf32> to vector<8x16xf32>
    %231 = arith.mulf %226, %230 : vector<8x16xf32>
    %232 = arith.truncf %231 : vector<8x16xf32> to vector<8x16xbf16>
    %233 = vector.extract_strided_slice %166 {offsets = [0, 16], sizes = [16, 8], strides = [1, 1]} : vector<16x32xbf16> to vector<16x8xbf16>
    %cst_102 = arith.constant dense<0.000000e+00> : vector<8x8xf32>
    %234 = tpu.matmul %232, %233, %cst_102 {dimension_numbers = #tpu.dot_dimension_numbers<[1], [0], [0], [1], [0, 0, 1, 1], [], []>} : vector<8x16xbf16>, vector<16x8xbf16>, vector<8x8xf32> -> vector<8x8xf32>
    %c0_103 = arith.constant 0 : index
    %c16_104 = arith.constant 16 : index
    %235 = vector.load %arg28[%c0_103, %c16_104] : memref<8x32xf32, #tpu.memory_space<vmem>>, vector<8x8xf32>
    tpu.vector_store %arg28[%c0_103, %c16_104], %234 {strides = array<i32>} : memref<8x32xf32, #tpu.memory_space<vmem>>, vector<8x8xf32>,
    %236 = vector.extract_strided_slice %162 {offsets = [0, 24], sizes = [8, 8], strides = [1, 1]} : vector<8x32xbf16> to vector<8x8xbf16>
    %237 = vector.extract_strided_slice %164 {offsets = [0, 24], sizes = [16, 8], strides = [1, 1]} : vector<16x32xbf16> to vector<16x8xbf16>
    %cst_105 = arith.constant dense<0.000000e+00> : vector<8x16xf32>
    %238 = tpu.matmul %236, %237, %cst_105 {dimension_numbers = #tpu.dot_dimension_numbers<[1], [1], [0], [0], [0, 0, 1, 0], [], []>} : vector<8x8xbf16>, vector<16x8xbf16>, vector<8x16xf32> -> vector<8x16xf32>
    %cst_106 = arith.constant 0.353553385 : f32
    %239 = vector.broadcast %cst_106 : f32 to vector<8x16xf32>
    %240 = arith.mulf %238, %239 : vector<8x16xf32>
    %cst_107 = arith.constant -1.000000e+09 : f32
    %241 = vector.shape_cast %9 : vector<1x16xi1> to vector<1x16xi1>
    %242 = vector.broadcast %241 : vector<1x16xi1> to vector<8x16xi1>
    %243 = vector.broadcast %cst_107 : f32 to vector<8x16xf32>
    %244 = arith.select %242, %240, %243 : vector<8x16xi1>, vector<8x16xf32>
    %cst_108 = arith.constant dense<0xFF800000> : vector<8xf32>
    %245 = vector.multi_reduction <maximumf>, %244, %cst_108 [1] : vector<8x16xf32> to vector<8xf32>
    %246 = vector.shape_cast %245 : vector<8xf32> to vector<8x1xf32>
    %247 = vector.broadcast %246 : vector<8x1xf32> to vector<8x16xf32>
    %248 = arith.subf %244, %247 : vector<8x16xf32>
    %249 = math.exp %248 : vector<8x16xf32>
    %cst_109 = arith.constant dense<0.000000e+00> : vector<8xf32>
    %250 = vector.multi_reduction <add>, %249, %cst_109 [1] : vector<8x16xf32> to vector<8xf32>
    %251 = vector.shape_cast %250 : vector<8xf32> to vector<8x1xf32>
    %252 = tpu.reciprocal %251 {approx = true} : vector<8x1xf32> -> vector<8x1xf32>
    %253 = vector.broadcast %252 : vector<8x1xf32> to vector<8x16xf32>
    %254 = arith.mulf %249, %253 : vector<8x16xf32>
    %255 = arith.truncf %254 : vector<8x16xf32> to vector<8x16xbf16>
    %256 = vector.extract_strided_slice %166 {offsets = [0, 24], sizes = [16, 8], strides = [1, 1]} : vector<16x32xbf16> to vector<16x8xbf16>
    %cst_110 = arith.constant dense<0.000000e+00> : vector<8x8xf32>
    %257 = tpu.matmul %255, %256, %cst_110 {dimension_numbers = #tpu.dot_dimension_numbers<[1], [0], [0], [1], [0, 0, 1, 1], [], []>} : vector<8x16xbf16>, vector<16x8xbf16>, vector<8x8xf32> -> vector<8x8xf32>
    %c0_111 = arith.constant 0 : index
    %c24_112 = arith.constant 24 : index
    %258 = vector.load %arg28[%c0_111, %c24_112] : memref<8x32xf32, #tpu.memory_space<vmem>>, vector<8x8xf32>
    tpu.vector_store %arg28[%c0_111, %c24_112], %257 {strides = array<i32>} : memref<8x32xf32, #tpu.memory_space<vmem>>, vector<8x8xf32>,
    %c0_113 = arith.constant 0 : index
    %c0_114 = arith.constant 0 : index
    %259 = vector.load %arg28[%c0_113, %c0_114] : memref<8x32xf32, #tpu.memory_space<vmem>>, vector<8x32xf32>
    %260 = arith.truncf %259 : vector<8x32xf32> to vector<8x32xbf16>
    %cst_115 = arith.constant dense<0.000000e+00> : vector<8x32xf32>
    %261 = tpu.matmul %260, %154, %cst_115 {dimension_numbers = #tpu.dot_dimension_numbers<[1], [0], [0], [1], [0, 0, 1, 1], [], []>} : vector<8x32xbf16>, vector<32x32xbf16>, vector<8x32xf32> -> vector<8x32xf32>
    %262 = vector.broadcast %155 : vector<1x32xf32> to vector<8x32xf32>
    %263 = arith.addf %261, %262 : vector<8x32xf32>
    %c0_116 = arith.constant 0 : index
    %c0_117 = arith.constant 0 : index
    %264 = vector.load %arg19[%c0_116, %c0_117] : memref<1x32xf32, #tpu.memory_space<vmem>>, vector<1x32xf32>
    %c0_118 = arith.constant 0 : index
    %c0_119 = arith.constant 0 : index
    %265 = vector.load %arg20[%c0_118, %c0_119] : memref<1x32xf32, #tpu.memory_space<vmem>>, vector<1x32xf32>
    %266 = arith.addf %146, %263 : vector<8x32xf32>
    %cst_120 = arith.constant dense<0.000000e+00> : vector<8xf32>
    %267 = vector.multi_reduction <add>, %266, %cst_120 [1] : vector<8x32xf32> to vector<8xf32>
    %268 = vector.shape_cast %267 : vector<8xf32> to vector<8x1xf32>
    %cst_121 = arith.constant 3.200000e+01 : f32
    %269 = vector.broadcast %cst_121 : f32 to vector<8x1xf32>
    %270 = arith.divf %268, %269 : vector<8x1xf32>
    %271 = vector.broadcast %270 : vector<8x1xf32> to vector<8x32xf32>
    %272 = arith.subf %266, %271 : vector<8x32xf32>
    %273 = arith.mulf %272, %272 : vector<8x32xf32>
    %cst_122 = arith.constant dense<0.000000e+00> : vector<8xf32>
    %274 = vector.multi_reduction <add>, %273, %cst_122 [1] : vector<8x32xf32> to vector<8xf32>
    %275 = vector.shape_cast %274 : vector<8xf32> to vector<8x1xf32>
    %cst_123 = arith.constant 3.200000e+01 : f32
    %276 = vector.broadcast %cst_123 : f32 to vector<8x1xf32>
    %277 = arith.divf %275, %276 : vector<8x1xf32>
    %278 = vector.broadcast %270 : vector<8x1xf32> to vector<8x32xf32>
    %279 = arith.subf %266, %278 : vector<8x32xf32>
    %cst_124 = arith.constant 9.99999974E-6 : f32
    %280 = vector.broadcast %cst_124 : f32 to vector<8x1xf32>
    %281 = arith.addf %277, %280 : vector<8x1xf32>
    %282 = math.rsqrt %281 : vector<8x1xf32>
    %283 = vector.broadcast %282 : vector<8x1xf32> to vector<8x32xf32>
    %284 = arith.mulf %279, %283 : vector<8x32xf32>
    %285 = vector.broadcast %264 : vector<1x32xf32> to vector<8x32xf32>
    %286 = arith.mulf %284, %285 : vector<8x32xf32>
    %287 = vector.broadcast %265 : vector<1x32xf32> to vector<8x32xf32>
    %288 = arith.addf %286, %287 : vector<8x32xf32>
    %289 = arith.truncf %288 : vector<8x32xf32> to vector<8x32xbf16>
    %c0_125 = arith.constant 0 : index
    %c0_126 = arith.constant 0 : index
    %290 = vector.load %arg21[%c0_125, %c0_126] : memref<32x64xbf16, #tpu.memory_space<vmem>>, vector<32x64xbf16>
    %cst_127 = arith.constant dense<0.000000e+00> : vector<8x64xf32>
    %291 = tpu.matmul %289, %290, %cst_127 {dimension_numbers = #tpu.dot_dimension_numbers<[1], [0], [0], [1], [0, 0, 1, 1], [], []>} : vector<8x32xbf16>, vector<32x64xbf16>, vector<8x64xf32> -> vector<8x64xf32>
    %c0_128 = arith.constant 0 : index
    %c0_129 = arith.constant 0 : index
    %292 = vector.load %arg22[%c0_128, %c0_129] : memref<1x64xf32, #tpu.memory_space<vmem>>, vector<1x64xf32>
    %293 = vector.broadcast %292 : vector<1x64xf32> to vector<8x64xf32>
    %294 = arith.addf %291, %293 : vector<8x64xf32>
    %cst_130 = arith.constant 0.000000e+00 : f32
    %295 = vector.broadcast %cst_130 : f32 to vector<8x64xf32>
    %296 = arith.maximumf %294, %295 : vector<8x64xf32>
    %297 = arith.truncf %296 : vector<8x64xf32> to vector<8x64xbf16>
    %c0_131 = arith.constant 0 : index
    %c0_132 = arith.constant 0 : index
    %298 = vector.load %arg23[%c0_131, %c0_132] : memref<64x32xbf16, #tpu.memory_space<vmem>>, vector<64x32xbf16>
    %cst_133 = arith.constant dense<0.000000e+00> : vector<8x32xf32>
    %299 = tpu.matmul %297, %298, %cst_133 {dimension_numbers = #tpu.dot_dimension_numbers<[1], [0], [0], [1], [0, 0, 1, 1], [], []>} : vector<8x64xbf16>, vector<64x32xbf16>, vector<8x32xf32> -> vector<8x32xf32>
    %c0_134 = arith.constant 0 : index
    %c0_135 = arith.constant 0 : index
    %300 = vector.load %arg24[%c0_134, %c0_135] : memref<1x32xf32, #tpu.memory_space<vmem>>, vector<1x32xf32>
    %301 = vector.broadcast %300 : vector<1x32xf32> to vector<8x32xf32>
    %302 = arith.addf %299, %301 : vector<8x32xf32>
    %c0_136 = arith.constant 0 : index
    %c0_137 = arith.constant 0 : index
    %303 = vector.load %arg25[%c0_136, %c0_137] : memref<1x32xf32, #tpu.memory_space<vmem>>, vector<1x32xf32>
    %c0_138 = arith.constant 0 : index
    %c0_139 = arith.constant 0 : index
    %304 = vector.load %arg26[%c0_138, %c0_139] : memref<1x32xf32, #tpu.memory_space<vmem>>, vector<1x32xf32>
    %305 = arith.addf %288, %302 : vector<8x32xf32>
    %cst_140 = arith.constant dense<0.000000e+00> : vector<8xf32>
    %306 = vector.multi_reduction <add>, %305, %cst_140 [1] : vector<8x32xf32> to vector<8xf32>
    %307 = vector.shape_cast %306 : vector<8xf32> to vector<8x1xf32>
    %cst_141 = arith.constant 3.200000e+01 : f32
    %308 = vector.broadcast %cst_141 : f32 to vector<8x1xf32>
    %309 = arith.divf %307, %308 : vector<8x1xf32>
    %310 = vector.broadcast %309 : vector<8x1xf32> to vector<8x32xf32>
    %311 = arith.subf %305, %310 : vector<8x32xf32>
    %312 = arith.mulf %311, %311 : vector<8x32xf32>
    %cst_142 = arith.constant dense<0.000000e+00> : vector<8xf32>
    %313 = vector.multi_reduction <add>, %312, %cst_142 [1] : vector<8x32xf32> to vector<8xf32>
    %314 = vector.shape_cast %313 : vector<8xf32> to vector<8x1xf32>
    %cst_143 = arith.constant 3.200000e+01 : f32
    %315 = vector.broadcast %cst_143 : f32 to vector<8x1xf32>
    %316 = arith.divf %314, %315 : vector<8x1xf32>
    %317 = vector.broadcast %309 : vector<8x1xf32> to vector<8x32xf32>
    %318 = arith.subf %305, %317 : vector<8x32xf32>
    %cst_144 = arith.constant 9.99999974E-6 : f32
    %319 = vector.broadcast %cst_144 : f32 to vector<8x1xf32>
    %320 = arith.addf %316, %319 : vector<8x1xf32>
    %321 = math.rsqrt %320 : vector<8x1xf32>
    %322 = vector.broadcast %321 : vector<8x1xf32> to vector<8x32xf32>
    %323 = arith.mulf %318, %322 : vector<8x32xf32>
    %324 = vector.broadcast %303 : vector<1x32xf32> to vector<8x32xf32>
    %325 = arith.mulf %323, %324 : vector<8x32xf32>
    %326 = vector.broadcast %304 : vector<1x32xf32> to vector<8x32xf32>
    %327 = arith.addf %325, %326 : vector<8x32xf32>
    %c0_145 = arith.constant 0 : index
    %c0_146 = arith.constant 0 : index
    %c0_147 = arith.constant 0 : index
    %328 = vector.load %arg27[%c0_145, %c0_146, %c0_147] : memref<1x8x32xf32, #tpu.memory_space<vmem>>, vector<1x8x32xf32>
    %329 = vector.shape_cast %328 : vector<1x8x32xf32> to vector<8x32xf32>
    %330 = vector.shape_cast %327 : vector<8x32xf32> to vector<1x8x32xf32>
    tpu.vector_store %arg27[%c0_145, %c0_146, %c0_147], %330 {strides = array<i32>} : memref<1x8x32xf32, #tpu.memory_space<vmem>>, vector<1x8x32xf32>,
    return
  }
  func.func @transform_0(%arg0: i32) -> (i32, i32, i32) {
    %c0_i32 = arith.constant 0 : i32
    %c0_i32_0 = arith.constant 0 : i32
    %c0_i32_1 = arith.constant 0 : i32
    return %arg0, %c0_i32, %c0_i32_0 : i32, i32, i32
  }
  func.func @transform_1(%arg0: i32) -> (i32, i32, i32) {
    %c0_i32 = arith.constant 0 : i32
    %c0_i32_0 = arith.constant 0 : i32
    %c0_i32_1 = arith.constant 0 : i32
    return %arg0, %c0_i32, %c0_i32_0 : i32, i32, i32
  }
  func.func @transform_2(%arg0: i32) -> (i32, i32, i32) {
    %c0_i32 = arith.constant 0 : i32
    %c0_i32_0 = arith.constant 0 : i32
    %c0_i32_1 = arith.constant 0 : i32
    return %arg0, %c0_i32, %c0_i32_0 : i32, i32, i32
  }
  func.func @transform_3(%arg0: i32) -> (i32, i32, i32) {
    %c0_i32 = arith.constant 0 : i32
    %c0_i32_0 = arith.constant 0 : i32
    %c0_i32_1 = arith.constant 0 : i32
    return %arg0, %c0_i32, %c0_i32_0 : i32, i32, i32
  }
  func.func @transform_4(%arg0: i32) -> (i32, i32) {
    %c0_i32 = arith.constant 0 : i32
    %c0_i32_0 = arith.constant 0 : i32
    %c0_i32_1 = arith.constant 0 : i32
    return %c0_i32, %c0_i32_0 : i32, i32
  }
  func.func @transform_5(%arg0: i32) -> (i32, i32) {
    %c0_i32 = arith.constant 0 : i32
    %c0_i32_0 = arith.constant 0 : i32
    %c0_i32_1 = arith.constant 0 : i32
    return %c0_i32, %c0_i32_0 : i32, i32
  }
  func.func @transform_6(%arg0: i32) -> (i32, i32) {
    %c0_i32 = arith.constant 0 : i32
    %c0_i32_0 = arith.constant 0 : i32
    %c0_i32_1 = arith.constant 0 : i32
    return %c0_i32, %c0_i32_0 : i32, i32
  }
  func.func @transform_7(%arg0: i32) -> (i32, i32) {
    %c0_i32 = arith.constant 0 : i32
    %c0_i32_0 = arith.constant 0 : i32
    %c0_i32_1 = arith.constant 0 : i32
    return %c0_i32, %c0_i32_0 : i32, i32
  }
  func.func @transform_8(%arg0: i32) -> (i32, i32) {
    %c0_i32 = arith.constant 0 : i32
    %c0_i32_0 = arith.constant 0 : i32
    %c0_i32_1 = arith.constant 0 : i32
    return %c0_i32, %c0_i32_0 : i32, i32
  }
  func.func @transform_9(%arg0: i32) -> (i32, i32) {
    %c0_i32 = arith.constant 0 : i32
    %c0_i32_0 = arith.constant 0 : i32
    %c0_i32_1 = arith.constant 0 : i32
    return %c0_i32, %c0_i32_0 : i32, i32
  }
  func.func @transform_10(%arg0: i32) -> (i32, i32) {
    %c0_i32 = arith.constant 0 : i32
    %c0_i32_0 = arith.constant 0 : i32
    %c0_i32_1 = arith.constant 0 : i32
    return %c0_i32, %c0_i32_0 : i32, i32
  }
  func.func @transform_11(%arg0: i32) -> (i32, i32) {
    %c0_i32 = arith.constant 0 : i32
    %c0_i32_0 = arith.constant 0 : i32
    %c0_i32_1 = arith.constant 0 : i32
    return %c0_i32, %c0_i32_0 : i32, i32
  }
  func.func @transform_12(%arg0: i32) -> (i32, i32) {
    %c0_i32 = arith.constant 0 : i32
    %c0_i32_0 = arith.constant 0 : i32
    %c0_i32_1 = arith.constant 0 : i32
    return %c0_i32, %c0_i32_0 : i32, i32
  }
  func.func @transform_13(%arg0: i32) -> (i32, i32) {
    %c0_i32 = arith.constant 0 : i32
    %c0_i32_0 = arith.constant 0 : i32
    %c0_i32_1 = arith.constant 0 : i32
    return %c0_i32, %c0_i32_0 : i32, i32
  }
  func.func @transform_14(%arg0: i32) -> (i32, i32) {
    %c0_i32 = arith.constant 0 : i32
    %c0_i32_0 = arith.constant 0 : i32
    %c0_i32_1 = arith.constant 0 : i32
    return %c0_i32, %c0_i32_0 : i32, i32
  }
  func.func @transform_15(%arg0: i32) -> (i32, i32) {
    %c0_i32 = arith.constant 0 : i32
    %c0_i32_0 = arith.constant 0 : i32
    %c0_i32_1 = arith.constant 0 : i32
    return %c0_i32, %c0_i32_0 : i32, i32
  }
  func.func @transform_16(%arg0: i32) -> (i32, i32) {
    %c0_i32 = arith.constant 0 : i32
    %c0_i32_0 = arith.constant 0 : i32
    %c0_i32_1 = arith.constant 0 : i32
    return %c0_i32, %c0_i32_0 : i32, i32
  }
  func.func @transform_17(%arg0: i32) -> (i32, i32) {
    %c0_i32 = arith.constant 0 : i32
    %c0_i32_0 = arith.constant 0 : i32
    %c0_i32_1 = arith.constant 0 : i32
    return %c0_i32, %c0_i32_0 : i32, i32
  }
  func.func @transform_18(%arg0: i32) -> (i32, i32) {
    %c0_i32 = arith.constant 0 : i32
    %c0_i32_0 = arith.constant 0 : i32
    %c0_i32_1 = arith.constant 0 : i32
    return %c0_i32, %c0_i32_0 : i32, i32
  }
  func.func @transform_19(%arg0: i32) -> (i32, i32) {
    %c0_i32 = arith.constant 0 : i32
    %c0_i32_0 = arith.constant 0 : i32
    %c0_i32_1 = arith.constant 0 : i32
    return %c0_i32, %c0_i32_0 : i32, i32
  }
  func.func @transform_20(%arg0: i32) -> (i32, i32) {
    %c0_i32 = arith.constant 0 : i32
    %c0_i32_0 = arith.constant 0 : i32
    %c0_i32_1 = arith.constant 0 : i32
    return %c0_i32, %c0_i32_0 : i32, i32
  }
  func.func @transform_21(%arg0: i32) -> (i32, i32) {
    %c0_i32 = arith.constant 0 : i32
    %c0_i32_0 = arith.constant 0 : i32
    %c0_i32_1 = arith.constant 0 : i32
    return %c0_i32, %c0_i32_0 : i32, i32
  }
  func.func @transform_22(%arg0: i32) -> (i32, i32) {
    %c0_i32 = arith.constant 0 : i32
    %c0_i32_0 = arith.constant 0 : i32
    %c0_i32_1 = arith.constant 0 : i32
    return %c0_i32, %c0_i32_0 : i32, i32
  }
  func.func @transform_23(%arg0: i32) -> (i32, i32) {
    %c0_i32 = arith.constant 0 : i32
    %c0_i32_0 = arith.constant 0 : i32
    %c0_i32_1 = arith.constant 0 : i32
    return %c0_i32, %c0_i32_0 : i32, i32
  }
  func.func @transform_24(%arg0: i32) -> (i32, i32) {
    %c0_i32 = arith.constant 0 : i32
    %c0_i32_0 = arith.constant 0 : i32
    %c0_i32_1 = arith.constant 0 : i32
    return %c0_i32, %c0_i32_0 : i32, i32
  }
  func.func @transform_25(%arg0: i32) -> (i32, i32) {
    %c0_i32 = arith.constant 0 : i32
    %c0_i32_0 = arith.constant 0 : i32
    %c0_i32_1 = arith.constant 0 : i32
    return %c0_i32, %c0_i32_0 : i32, i32
  }
  func.func @transform_26(%arg0: i32) -> (i32, i32, i32) {
    %c0_i32 = arith.constant 0 : i32
    %c0_i32_0 = arith.constant 0 : i32
    %c0_i32_1 = arith.constant 0 : i32
    return %arg0, %c0_i32, %c0_i32_0 : i32, i32, i32
  }
}

</mosaic_0001>

<llo_original>
// kernel: transformer_decoder_forward.5
$region0: #{transformer_decoder_forward.5}
  #allocation0 [shape = 'u32[]', space=smem, size = 0x4, offset = 0x4, fixed_abs, tag = 'smem constant byte address 0x4 - core index']
  #allocation1 [shape = 'u32[72,128]{1,0:T(1,128)}', space=vmem, size = 0x9000, scoped, tag = 'internal scratch']
  %s0 = inlined_call_operand.vmem [shape: bf16[16,32], index: 0, kind: input, shape index: {}]
  %s1 = inlined_call_operand.vmem [shape: bf16[32,128], index: 1, kind: input, shape index: {}]
  %s2 = inlined_call_operand.vmem [shape: f32[1,128], index: 2, kind: input, shape index: {}]
  %s3 = inlined_call_operand.vmem [shape: f32[16,128], index: 3, kind: output, shape index: {}]
  %s4 = sld [smem:[#allocation0]]
  $region22: #{transformer_decoder_forward.5} parent=0
    _
  %s6 = ssub.s32 1, %s4
  %s7 = scalar_select 0, %s6, %s4
  // Predicated region
  $region2: #{transformer_decoder_forward.5} parent=0 // pred_check
    _
  $region3: #{transformer_decoder_forward.5} parent=0 // pred_check_branch
    %9 = sbr.rel (0) target = $region5
  $region4: #{transformer_decoder_forward.5} parent=0 // pred_region
    _
  $region5: #{transformer_decoder_forward.5} parent=0 // pred_fallthru
    _
  // Predicated region
  $region6: #{transformer_decoder_forward.5} parent=0 // pred_check
    _
  $region7: #{transformer_decoder_forward.5} parent=0 // pred_check_branch
    %11 = sbr.rel (0) target = $region9
  $region8: #{transformer_decoder_forward.5} parent=0 // pred_region
    _
  $region9: #{transformer_decoder_forward.5} parent=0 // pred_fallthru
    _
  // Predicated region
  $region10: #{transformer_decoder_forward.5} parent=0 // pred_check
    _
  $region11: #{transformer_decoder_forward.5} parent=0 // pred_check_branch
    %13 = sbr.rel (0) target = $region13
  $region12: #{transformer_decoder_forward.5} parent=0 // pred_region
    _
  $region13: #{transformer_decoder_forward.5} parent=0 // pred_fallthru
    _
  %v15 = vld [vmem:[%s0] sm:$0xf]
  %v16 = vld [vmem:[%s0 + $0x4] sm:$0xf]
  %v17 = vld [vmem:[%s1] sm:$0xf]
  %v18 = vld [vmem:[%s1 + $0x4] sm:$0xf]
  %v19 = vld [vmem:[%s1 + $0x8] sm:$0xf]
  %v20 = vld [vmem:[%s1 + $0xc] sm:$0xf]
  %v21 = vld [vmem:[%s2] sm:$0x1]
  %v23 = vperm.slane %v21, 0
  %v27 = vunpack.c.l.b16 %v15
  %v28 = vunpack.c.l.b16 %v16
  %v29 = vpack.c.b16 %v28, %v27
  %v34 = vunpack.c.l.b16 %v17
  %v35 = vunpack.c.l.b16 %v18
  %v36 = vunpack.c.l.b16 %v19
  %v37 = vunpack.c.l.b16 %v20
  %v38 = vpack.c.b16 %v35, %v34
  %v39 = vpack.c.b16 %v37, %v36
  %vm42 = vcmask 261120
  %v44 = vsel %vm42, %v29, 0
  %46 = vmatpush.bf16.msra.mxu0 0
  %47 = vmatpush.bf16.msra.mxu0 0
  %48 = vmatpush.bf16.msra.mxu0 0
  %49 = vmatpush.bf16.msra.mxu0 0
  %50 = vmatpush.bf16.msra.mxu0 0
  %51 = vmatpush.bf16.msra.mxu0 0
  %52 = vmatpush.bf16.msra.mxu0 %v39
  %53 = vmatpush.bf16.msra.mxu0 %v38
  %54 = vmatmul.bf16.gmra.mxu0 %v44
  %v55 = vpop.f32.mrf.mxu0
  %v56 = vadd.f32 %v23, %v55
  %v57 = vpop.f32.mrf.mxu0
  %v58 = vadd.f32 %v23, %v57
  %59 = vdwg.mxu0
  %60 = vst [vmem:[%s3] sm:$0xff] %v56
  %61 = vst [vmem:[%s3 + $0x8] sm:$0xff] %v58
  // Predicated region
  $region14: #{transformer_decoder_forward.5} parent=0 // pred_check
    _
  $region15: #{transformer_decoder_forward.5} parent=0 // pred_check_branch
    %63 = sbr.rel (0) target = $region17
  $region16: #{transformer_decoder_forward.5} parent=0 // pred_region
    _
  $region17: #{transformer_decoder_forward.5} parent=0 // pred_fallthru
    _
  // Predicated region
  $region18: #{transformer_decoder_forward.5} parent=0 // pred_check
    _
  $region19: #{transformer_decoder_forward.5} parent=0 // pred_check_branch
    %65 = sbr.rel (0) target = $region21
  $region20: #{transformer_decoder_forward.5} parent=0 // pred_region
    _
  $region21: #{transformer_decoder_forward.5} parent=0 // pred_fallthru
    _

// kernel: transformer_decoder_forward.3
$region0: #{transformer_decoder_forward.3}
  #allocation0 [shape = 'u32[]', space=smem, size = 0x4, offset = 0x4, fixed_abs, tag = 'smem constant byte address 0x4 - core index']
  #allocation1 [shape = 'u32[72,128]{1,0:T(1,128)}', space=vmem, size = 0x9000, scoped, tag = 'internal scratch']
  #allocation2 [shape = 'f32[8,32]{1,0:T(8,128)}', space=vmem, size = 0x1000, scoped, tag = 'scratch operand']
  %s0 = inlined_call_operand.vmem [shape: f32[2,8,32], index: 0, kind: input, shape index: {}]
  %s1 = inlined_call_operand.vmem [shape: bf16[2,16,32], index: 1, kind: input, shape index: {}]
  %s2 = inlined_call_operand.vmem [shape: f32[2,1,8], index: 2, kind: input, shape index: {}]
  %s3 = inlined_call_operand.vmem [shape: f32[2,1,16], index: 3, kind: input, shape index: {}]
  %s4 = inlined_call_operand.vmem [shape: bf16[32,32], index: 4, kind: input, shape index: {}]
  %s5 = inlined_call_operand.vmem [shape: f32[1,32], index: 5, kind: input, shape index: {}]
  %s6 = inlined_call_operand.vmem [shape: bf16[32,64], index: 6, kind: input, shape index: {}]
  %s7 = inlined_call_operand.vmem [shape: f32[1,64], index: 7, kind: input, shape index: {}]
  %s8 = inlined_call_operand.vmem [shape: bf16[32,32], index: 8, kind: input, shape index: {}]
  %s9 = inlined_call_operand.vmem [shape: f32[1,32], index: 9, kind: input, shape index: {}]
  %s10 = inlined_call_operand.vmem [shape: f32[1,32], index: 10, kind: input, shape index: {}]
  %s11 = inlined_call_operand.vmem [shape: f32[1,32], index: 11, kind: input, shape index: {}]
  %s12 = inlined_call_operand.vmem [shape: bf16[32,32], index: 12, kind: input, shape index: {}]
  %s13 = inlined_call_operand.vmem [shape: f32[1,32], index: 13, kind: input, shape index: {}]
  %s14 = inlined_call_operand.vmem [shape: bf16[32,64], index: 14, kind: input, shape index: {}]
  %s15 = inlined_call_operand.vmem [shape: f32[1,64], index: 15, kind: input, shape index: {}]
  %s16 = inlined_call_operand.vmem [shape: bf16[32,32], index: 16, kind: input, shape index: {}]
  %s17 = inlined_call_operand.vmem [shape: f32[1,32], index: 17, kind: input, shape index: {}]
  %s18 = inlined_call_operand.vmem [shape: f32[1,32], index: 18, kind: input, shape index: {}]
  %s19 = inlined_call_operand.vmem [shape: f32[1,32], index: 19, kind: input, shape index: {}]
  %s20 = inlined_call_operand.vmem [shape: bf16[32,64], index: 20, kind: input, shape index: {}]
  %s21 = inlined_call_operand.vmem [shape: f32[1,64], index: 21, kind: input, shape index: {}]
  %s22 = inlined_call_operand.vmem [shape: bf16[64,32], index: 22, kind: input, shape index: {}]
  %s23 = inlined_call_operand.vmem [shape: f32[1,32], index: 23, kind: input, shape index: {}]
  %s24 = inlined_call_operand.vmem [shape: f32[1,32], index: 24, kind: input, shape index: {}]
  %s25 = inlined_call_operand.vmem [shape: f32[1,32], index: 25, kind: input, shape index: {}]
  %s26 = inlined_call_operand.vmem [shape: f32[2,8,32], index: 26, kind: output, shape index: {}]
  %s27 = sld [smem:[#allocation0]]
  $region137: #{transformer_decoder_forward.3} parent=0
    _
  %s29 = ssub.s32 1, %s27
  %s30 = scalar_select 0, %s29, %s27
  loop: start=0, step=1, limit=4
  $region2: #{transformer_decoder_forward.3} parent=0 // loop_pre_header
    _
  $region3: #{transformer_decoder_forward.3} parent=0 // loop_header
    %s32 = sphi 0, %s36
    %p33 = scmp.ge.s32.totalorder %s32, 4
    %s42 = sphi 0, %s44
    %s45 = sphi 0, %s42
    %s46 = sphi 0, %s45
    %s62 = sphi 0, %s46
    %s68 = sphi 0, %s70
    %s71 = sphi 0, %s68
    %s72 = sphi 0, %s71
    %s88 = sphi 0, %s72
    %s94 = sphi 0, %s96
    %s97 = sphi 0, %s94
    %s98 = sphi 0, %s97
    %s114 = sphi 0, %s98
    %s120 = sphi 0, %s122
    %s123 = sphi 0, %s120
    %s124 = sphi 0, %s123
    %s140 = sphi 0, %s124
    %s144 = sphi 0, %s144
    %s146 = sphi 0, %s144
    %s147 = sphi 0, %s146
    %s161 = sphi 0, %s147
    %s165 = sphi 0, %s165
    %s167 = sphi 0, %s165
    %s168 = sphi 0, %s167
    %s182 = sphi 0, %s168
    %s186 = sphi 0, %s186
    %s188 = sphi 0, %s186
    %s189 = sphi 0, %s188
    %s203 = sphi 0, %s189
    %s207 = sphi 0, %s207
    %s209 = sphi 0, %s207
    %s210 = sphi 0, %s209
    %s224 = sphi 0, %s210
    %s228 = sphi 0, %s228
    %s230 = sphi 0, %s228
    %s231 = sphi 0, %s230
    %s245 = sphi 0, %s231
    %s249 = sphi 0, %s249
    %s251 = sphi 0, %s249
    %s252 = sphi 0, %s251
    %s266 = sphi 0, %s252
    %s270 = sphi 0, %s270
    %s272 = sphi 0, %s270
    %s273 = sphi 0, %s272
    %s287 = sphi 0, %s273
    %s291 = sphi 0, %s291
    %s293 = sphi 0, %s291
    %s294 = sphi 0, %s293
    %s308 = sphi 0, %s294
    %s312 = sphi 0, %s312
    %s314 = sphi 0, %s312
    %s315 = sphi 0, %s314
    %s329 = sphi 0, %s315
    %s333 = sphi 0, %s333
    %s335 = sphi 0, %s333
    %s336 = sphi 0, %s335
    %s350 = sphi 0, %s336
    %s354 = sphi 0, %s354
    %s356 = sphi 0, %s354
    %s357 = sphi 0, %s356
    %s371 = sphi 0, %s357
    %s375 = sphi 0, %s375
    %s377 = sphi 0, %s375
    %s378 = sphi 0, %s377
    %s392 = sphi 0, %s378
    %s396 = sphi 0, %s396
    %s398 = sphi 0, %s396
    %s399 = sphi 0, %s398
    %s413 = sphi 0, %s399
    %s417 = sphi 0, %s417
    %s419 = sphi 0, %s417
    %s420 = sphi 0, %s419
    %s434 = sphi 0, %s420
    %s438 = sphi 0, %s438
    %s440 = sphi 0, %s438
    %s441 = sphi 0, %s440
    %s455 = sphi 0, %s441
    %s459 = sphi 0, %s459
    %s461 = sphi 0, %s459
    %s462 = sphi 0, %s461
    %s476 = sphi 0, %s462
    %s480 = sphi 0, %s480
    %s482 = sphi 0, %s480
    %s483 = sphi 0, %s482
    %s497 = sphi 0, %s483
    %s501 = sphi 0, %s501
    %s503 = sphi 0, %s501
    %s504 = sphi 0, %s503
    %s518 = sphi 0, %s504
    %s522 = sphi 0, %s522
    %s524 = sphi 0, %s522
    %s525 = sphi 0, %s524
    %s539 = sphi 0, %s525
    %s543 = sphi 0, %s543
    %s545 = sphi 0, %s543
    %s546 = sphi 0, %s545
    %s560 = sphi 0, %s546
    %s564 = sphi 0, %s564
    %s566 = sphi 0, %s564
    %s567 = sphi 0, %s566
    %s581 = sphi 0, %s567
    %s585 = sphi 0, %s585
    %s587 = sphi 0, %s585
    %s588 = sphi 0, %s587
    %s602 = sphi 0, %s588
    %s608 = sphi 0, %s610
    %s611 = sphi 0, %s608
    %s612 = sphi 0, %s611
    %s628 = sphi 0, %s612
  $region4: #{transformer_decoder_forward.3} parent=0 // loop_header_branch
    %35 = sbr.rel (%p33) target = $region8
  $region5: #{transformer_decoder_forward.3} parent=0 // loop_body
    %s37 = ssub.s32 %s32, 1
    %s38 = ssub.s32 %s32, 2
    %s39 = sadd.s32 %s32, 1
    %s40 = ssub.s32 %s32, %s39
    %p41 = scmp.eq.s32.totalorder %s40, 0
    %s43 = sadd.s32 %s42, 1
    %s44 = scalar_select %p41, %s42, %s43
    %p47 = pneg %p41
    %p48 = scmp.eq.s32.totalorder %s32, 1
    %p49 = por %p47, %p48
    %p50 = scmp.ne.s32.totalorder %s42, %s45
    %p51 = scmp.eq.s32.totalorder %s32, 0
    %p52 = por %p50, %p51
    %p53 = scmp.ne.s32.totalorder %s42, %s45
    %p54 = scmp.eq.s32.totalorder %s37, 1
    %p55 = por %p53, %p54
    %p56 = scmp.ne.s32.totalorder %s45, %s46
    %p57 = scmp.eq.s32.totalorder %s37, 0
    %p58 = por %p56, %p57
    %p59 = scmp.ne.s32.totalorder %s45, %s46
    %p60 = scmp.eq.s32.totalorder %s38, 1
    %p61 = por %p59, %p60
    %p63 = scmp.ne.s32.totalorder %s46, %s62
    %p64 = scmp.eq.s32.totalorder %s38, 0
    %p65 = por %p63, %p64
    %s66 = ssub.s32 %s32, %s39
    %p67 = scmp.eq.s32.totalorder %s66, 0
    %s69 = sadd.s32 %s68, 1
    %s70 = scalar_select %p67, %s68, %s69
    %p73 = pneg %p67
    %p74 = scmp.eq.s32.totalorder %s32, 1
    %p75 = por %p73, %p74
    %p76 = scmp.ne.s32.totalorder %s68, %s71
    %p77 = scmp.eq.s32.totalorder %s32, 0
    %p78 = por %p76, %p77
    %p79 = scmp.ne.s32.totalorder %s68, %s71
    %p80 = scmp.eq.s32.totalorder %s37, 1
    %p81 = por %p79, %p80
    %p82 = scmp.ne.s32.totalorder %s71, %s72
    %p83 = scmp.eq.s32.totalorder %s37, 0
    %p84 = por %p82, %p83
    %p85 = scmp.ne.s32.totalorder %s71, %s72
    %p86 = scmp.eq.s32.totalorder %s38, 1
    %p87 = por %p85, %p86
    %p89 = scmp.ne.s32.totalorder %s72, %s88
    %p90 = scmp.eq.s32.totalorder %s38, 0
    %p91 = por %p89, %p90
    %s92 = ssub.s32 %s32, %s39
    %p93 = scmp.eq.s32.totalorder %s92, 0
    %s95 = sadd.s32 %s94, 1
    %s96 = scalar_select %p93, %s94, %s95
    %p99 = pneg %p93
    %p100 = scmp.eq.s32.totalorder %s32, 1
    %p101 = por %p99, %p100
    %p102 = scmp.ne.s32.totalorder %s94, %s97
    %p103 = scmp.eq.s32.totalorder %s32, 0
    %p104 = por %p102, %p103
    %p105 = scmp.ne.s32.totalorder %s94, %s97
    %p106 = scmp.eq.s32.totalorder %s37, 1
    %p107 = por %p105, %p106
    %p108 = scmp.ne.s32.totalorder %s97, %s98
    %p109 = scmp.eq.s32.totalorder %s37, 0
    %p110 = por %p108, %p109
    %p111 = scmp.ne.s32.totalorder %s97, %s98
    %p112 = scmp.eq.s32.totalorder %s38, 1
    %p113 = por %p111, %p112
    %p115 = scmp.ne.s32.totalorder %s98, %s114
    %p116 = scmp.eq.s32.totalorder %s38, 0
    %p117 = por %p115, %p116
    %s118 = ssub.s32 %s32, %s39
    %p119 = scmp.eq.s32.totalorder %s118, 0
    %s121 = sadd.s32 %s120, 1
    %s122 = scalar_select %p119, %s120, %s121
    %p125 = pneg %p119
    %p126 = scmp.eq.s32.totalorder %s32, 1
    %p127 = por %p125, %p126
    %p128 = scmp.ne.s32.totalorder %s120, %s123
    %p129 = scmp.eq.s32.totalorder %s32, 0
    %p130 = por %p128, %p129
    %p131 = scmp.ne.s32.totalorder %s120, %s123
    %p132 = scmp.eq.s32.totalorder %s37, 1
    %p133 = por %p131, %p132
    %p134 = scmp.ne.s32.totalorder %s123, %s124
    %p135 = scmp.eq.s32.totalorder %s37, 0
    %p136 = por %p134, %p135
    %p137 = scmp.ne.s32.totalorder %s123, %s124
    %p138 = scmp.eq.s32.totalorder %s38, 1
    %p139 = por %p137, %p138
    %p141 = scmp.ne.s32.totalorder %s124, %s140
    %p142 = scmp.eq.s32.totalorder %s38, 0
    %p143 = por %p141, %p142
    %s145 = sadd.s32 %s144, 1
    %p148 = scmp.eq.s32.totalorder %s32, 1
    %p149 = scmp.ne.s32.totalorder %s144, %s146
    %p150 = scmp.eq.s32.totalorder %s32, 0
    %p151 = por %p149, %p150
    %p152 = scmp.ne.s32.totalorder %s144, %s146
    %p153 = scmp.eq.s32.totalorder %s37, 1
    %p154 = por %p152, %p153
    %p155 = scmp.ne.s32.totalorder %s146, %s147
    %p156 = scmp.eq.s32.totalorder %s37, 0
    %p157 = por %p155, %p156
    %p158 = scmp.ne.s32.totalorder %s146, %s147
    %p159 = scmp.eq.s32.totalorder %s38, 1
    %p160 = por %p158, %p159
    %p162 = scmp.ne.s32.totalorder %s147, %s161
    %p163 = scmp.eq.s32.totalorder %s38, 0
    %p164 = por %p162, %p163
    %s166 = sadd.s32 %s165, 1
    %p169 = scmp.eq.s32.totalorder %s32, 1
    %p170 = scmp.ne.s32.totalorder %s165, %s167
    %p171 = scmp.eq.s32.totalorder %s32, 0
    %p172 = por %p170, %p171
    %p173 = scmp.ne.s32.totalorder %s165, %s167
    %p174 = scmp.eq.s32.totalorder %s37, 1
    %p175 = por %p173, %p174
    %p176 = scmp.ne.s32.totalorder %s167, %s168
    %p177 = scmp.eq.s32.totalorder %s37, 0
    %p178 = por %p176, %p177
    %p179 = scmp.ne.s32.totalorder %s167, %s168
    %p180 = scmp.eq.s32.totalorder %s38, 1
    %p181 = por %p179, %p180
    %p183 = scmp.ne.s32.totalorder %s168, %s182
    %p184 = scmp.eq.s32.totalorder %s38, 0
    %p185 = por %p183, %p184
    %s187 = sadd.s32 %s186, 1
    %p190 = scmp.eq.s32.totalorder %s32, 1
    %p191 = scmp.ne.s32.totalorder %s186, %s188
    %p192 = scmp.eq.s32.totalorder %s32, 0
    %p193 = por %p191, %p192
    %p194 = scmp.ne.s32.totalorder %s186, %s188
    %p195 = scmp.eq.s32.totalorder %s37, 1
    %p196 = por %p194, %p195
    %p197 = scmp.ne.s32.totalorder %s188, %s189
    %p198 = scmp.eq.s32.totalorder %s37, 0
    %p199 = por %p197, %p198
    %p200 = scmp.ne.s32.totalorder %s188, %s189
    %p201 = scmp.eq.s32.totalorder %s38, 1
    %p202 = por %p200, %p201
    %p204 = scmp.ne.s32.totalorder %s189, %s203
    %p205 = scmp.eq.s32.totalorder %s38, 0
    %p206 = por %p204, %p205
    %s208 = sadd.s32 %s207, 1
    %p211 = scmp.eq.s32.totalorder %s32, 1
    %p212 = scmp.ne.s32.totalorder %s207, %s209
    %p213 = scmp.eq.s32.totalorder %s32, 0
    %p214 = por %p212, %p213
    %p215 = scmp.ne.s32.totalorder %s207, %s209
    %p216 = scmp.eq.s32.totalorder %s37, 1
    %p217 = por %p215, %p216
    %p218 = scmp.ne.s32.totalorder %s209, %s210
    %p219 = scmp.eq.s32.totalorder %s37, 0
    %p220 = por %p218, %p219
    %p221 = scmp.ne.s32.totalorder %s209, %s210
    %p222 = scmp.eq.s32.totalorder %s38, 1
    %p223 = por %p221, %p222
    %p225 = scmp.ne.s32.totalorder %s210, %s224
    %p226 = scmp.eq.s32.totalorder %s38, 0
    %p227 = por %p225, %p226
    %s229 = sadd.s32 %s228, 1
    %p232 = scmp.eq.s32.totalorder %s32, 1
    %p233 = scmp.ne.s32.totalorder %s228, %s230
    %p234 = scmp.eq.s32.totalorder %s32, 0
    %p235 = por %p233, %p234
    %p236 = scmp.ne.s32.totalorder %s228, %s230
    %p237 = scmp.eq.s32.totalorder %s37, 1
    %p238 = por %p236, %p237
    %p239 = scmp.ne.s32.totalorder %s230, %s231
    %p240 = scmp.eq.s32.totalorder %s37, 0
    %p241 = por %p239, %p240
    %p242 = scmp.ne.s32.totalorder %s230, %s231
    %p243 = scmp.eq.s32.totalorder %s38, 1
    %p244 = por %p242, %p243
    %p246 = scmp.ne.s32.totalorder %s231, %s245
    %p247 = scmp.eq.s32.totalorder %s38, 0
    %p248 = por %p246, %p247
    %s250 = sadd.s32 %s249, 1
    %p253 = scmp.eq.s32.totalorder %s32, 1
    %p254 = scmp.ne.s32.totalorder %s249, %s251
    %p255 = scmp.eq.s32.totalorder %s32, 0
    %p256 = por %p254, %p255
    %p257 = scmp.ne.s32.totalorder %s249, %s251
    %p258 = scmp.eq.s32.totalorder %s37, 1
    %p259 = por %p257, %p258
    %p260 = scmp.ne.s32.totalorder %s251, %s252
    %p261 = scmp.eq.s32.totalorder %s37, 0
    %p262 = por %p260, %p261
    %p263 = scmp.ne.s32.totalorder %s251, %s252
    %p264 = scmp.eq.s32.totalorder %s38, 1
    %p265 = por %p263, %p264
    %p267 = scmp.ne.s32.totalorder %s252, %s266
    %p268 = scmp.eq.s32.totalorder %s38, 0
    %p269 = por %p267, %p268
    %s271 = sadd.s32 %s270, 1
    %p274 = scmp.eq.s32.totalorder %s32, 1
    %p275 = scmp.ne.s32.totalorder %s270, %s272
    %p276 = scmp.eq.s32.totalorder %s32, 0
    %p277 = por %p275, %p276
    %p278 = scmp.ne.s32.totalorder %s270, %s272
    %p279 = scmp.eq.s32.totalorder %s37, 1
    %p280 = por %p278, %p279
    %p281 = scmp.ne.s32.totalorder %s272, %s273
    %p282 = scmp.eq.s32.totalorder %s37, 0
    %p283 = por %p281, %p282
    %p284 = scmp.ne.s32.totalorder %s272, %s273
    %p285 = scmp.eq.s32.totalorder %s38, 1
    %p286 = por %p284, %p285
    %p288 = scmp.ne.s32.totalorder %s273, %s287
    %p289 = scmp.eq.s32.totalorder %s38, 0
    %p290 = por %p288, %p289
    %s292 = sadd.s32 %s291, 1
    %p295 = scmp.eq.s32.totalorder %s32, 1
    %p296 = scmp.ne.s32.totalorder %s291, %s293
    %p297 = scmp.eq.s32.totalorder %s32, 0
    %p298 = por %p296, %p297
    %p299 = scmp.ne.s32.totalorder %s291, %s293
    %p300 = scmp.eq.s32.totalorder %s37, 1
    %p301 = por %p299, %p300
    %p302 = scmp.ne.s32.totalorder %s293, %s294
    %p303 = scmp.eq.s32.totalorder %s37, 0
    %p304 = por %p302, %p303
    %p305 = scmp.ne.s32.totalorder %s293, %s294
    %p306 = scmp.eq.s32.totalorder %s38, 1
    %p307 = por %p305, %p306
    %p309 = scmp.ne.s32.totalorder %s294, %s308
    %p310 = scmp.eq.s32.totalorder %s38, 0
    %p311 = por %p309, %p310
    %s313 = sadd.s32 %s312, 1
    %p316 = scmp.eq.s32.totalorder %s32, 1
    %p317 = scmp.ne.s32.totalorder %s312, %s314
    %p318 = scmp.eq.s32.totalorder %s32, 0
    %p319 = por %p317, %p318
    %p320 = scmp.ne.s32.totalorder %s312, %s314
    %p321 = scmp.eq.s32.totalorder %s37, 1
    %p322 = por %p320, %p321
    %p323 = scmp.ne.s32.totalorder %s314, %s315
    %p324 = scmp.eq.s32.totalorder %s37, 0
    %p325 = por %p323, %p324
    %p326 = scmp.ne.s32.totalorder %s314, %s315
    %p327 = scmp.eq.s32.totalorder %s38, 1
    %p328 = por %p326, %p327
    %p330 = scmp.ne.s32.totalorder %s315, %s329
    %p331 = scmp.eq.s32.totalorder %s38, 0
    %p332 = por %p330, %p331
    %s334 = sadd.s32 %s333, 1
    %p337 = scmp.eq.s32.totalorder %s32, 1
    %p338 = scmp.ne.s32.totalorder %s333, %s335
    %p339 = scmp.eq.s32.totalorder %s32, 0
    %p340 = por %p338, %p339
    %p341 = scmp.ne.s32.totalorder %s333, %s335
    %p342 = scmp.eq.s32.totalorder %s37, 1
    %p343 = por %p341, %p342
    %p344 = scmp.ne.s32.totalorder %s335, %s336
    %p345 = scmp.eq.s32.totalorder %s37, 0
    %p346 = por %p344, %p345
    %p347 = scmp.ne.s32.totalorder %s335, %s336
    %p348 = scmp.eq.s32.totalorder %s38, 1
    %p349 = por %p347, %p348
    %p351 = scmp.ne.s32.totalorder %s336, %s350
    %p352 = scmp.eq.s32.totalorder %s38, 0
    %p353 = por %p351, %p352
    %s355 = sadd.s32 %s354, 1
    %p358 = scmp.eq.s32.totalorder %s32, 1
    %p359 = scmp.ne.s32.totalorder %s354, %s356
    %p360 = scmp.eq.s32.totalorder %s32, 0
    %p361 = por %p359, %p360
    %p362 = scmp.ne.s32.totalorder %s354, %s356
    %p363 = scmp.eq.s32.totalorder %s37, 1
    %p364 = por %p362, %p363
    %p365 = scmp.ne.s32.totalorder %s356, %s357
    %p366 = scmp.eq.s32.totalorder %s37, 0
    %p367 = por %p365, %p366
    %p368 = scmp.ne.s32.totalorder %s356, %s357
    %p369 = scmp.eq.s32.totalorder %s38, 1
    %p370 = por %p368, %p369
    %p372 = scmp.ne.s32.totalorder %s357, %s371
    %p373 = scmp.eq.s32.totalorder %s38, 0
    %p374 = por %p372, %p373
    %s376 = sadd.s32 %s375, 1
    %p379 = scmp.eq.s32.totalorder %s32, 1
    %p380 = scmp.ne.s32.totalorder %s375, %s377
    %p381 = scmp.eq.s32.totalorder %s32, 0
    %p382 = por %p380, %p381
    %p383 = scmp.ne.s32.totalorder %s375, %s377
    %p384 = scmp.eq.s32.totalorder %s37, 1
    %p385 = por %p383, %p384
    %p386 = scmp.ne.s32.totalorder %s377, %s378
    %p387 = scmp.eq.s32.totalorder %s37, 0
    %p388 = por %p386, %p387
    %p389 = scmp.ne.s32.totalorder %s377, %s378
    %p390 = scmp.eq.s32.totalorder %s38, 1
    %p391 = por %p389, %p390
    %p393 = scmp.ne.s32.totalorder %s378, %s392
    %p394 = scmp.eq.s32.totalorder %s38, 0
    %p395 = por %p393, %p394
    %s397 = sadd.s32 %s396, 1
    %p400 = scmp.eq.s32.totalorder %s32, 1
    %p401 = scmp.ne.s32.totalorder %s396, %s398
    %p402 = scmp.eq.s32.totalorder %s32, 0
    %p403 = por %p401, %p402
    %p404 = scmp.ne.s32.totalorder %s396, %s398
    %p405 = scmp.eq.s32.totalorder %s37, 1
    %p406 = por %p404, %p405
    %p407 = scmp.ne.s32.totalorder %s398, %s399
    %p408 = scmp.eq.s32.totalorder %s37, 0
    %p409 = por %p407, %p408
    %p410 = scmp.ne.s32.totalorder %s398, %s399
    %p411 = scmp.eq.s32.totalorder %s38, 1
    %p412 = por %p410, %p411
    %p414 = scmp.ne.s32.totalorder %s399, %s413
    %p415 = scmp.eq.s32.totalorder %s38, 0
    %p416 = por %p414, %p415
    %s418 = sadd.s32 %s417, 1
    %p421 = scmp.eq.s32.totalorder %s32, 1
    %p422 = scmp.ne.s32.totalorder %s417, %s419
    %p423 = scmp.eq.s32.totalorder %s32, 0
    %p424 = por %p422, %p423
    %p425 = scmp.ne.s32.totalorder %s417, %s419
    %p426 = scmp.eq.s32.totalorder %s37, 1
    %p427 = por %p425, %p426
    %p428 = scmp.ne.s32.totalorder %s419, %s420
    %p429 = scmp.eq.s32.totalorder %s37, 0
    %p430 = por %p428, %p429
    %p431 = scmp.ne.s32.totalorder %s419, %s420
    %p432 = scmp.eq.s32.totalorder %s38, 1
    %p433 = por %p431, %p432
    %p435 = scmp.ne.s32.totalorder %s420, %s434
    %p436 = scmp.eq.s32.totalorder %s38, 0
    %p437 = por %p435, %p436
    %s439 = sadd.s32 %s438, 1
    %p442 = scmp.eq.s32.totalorder %s32, 1
    %p443 = scmp.ne.s32.totalorder %s438, %s440
    %p444 = scmp.eq.s32.totalorder %s32, 0
    %p445 = por %p443, %p444
    %p446 = scmp.ne.s32.totalorder %s438, %s440
    %p447 = scmp.eq.s32.totalorder %s37, 1
    %p448 = por %p446, %p447
    %p449 = scmp.ne.s32.totalorder %s440, %s441
    %p450 = scmp.eq.s32.totalorder %s37, 0
    %p451 = por %p449, %p450
    %p452 = scmp.ne.s32.totalorder %s440, %s441
    %p453 = scmp.eq.s32.totalorder %s38, 1
    %p454 = por %p452, %p453
    %p456 = scmp.ne.s32.totalorder %s441, %s455
    %p457 = scmp.eq.s32.totalorder %s38, 0
    %p458 = por %p456, %p457
    %s460 = sadd.s32 %s459, 1
    %p463 = scmp.eq.s32.totalorder %s32, 1
    %p464 = scmp.ne.s32.totalorder %s459, %s461
    %p465 = scmp.eq.s32.totalorder %s32, 0
    %p466 = por %p464, %p465
    %p467 = scmp.ne.s32.totalorder %s459, %s461
    %p468 = scmp.eq.s32.totalorder %s37, 1
    %p469 = por %p467, %p468
    %p470 = scmp.ne.s32.totalorder %s461, %s462
    %p471 = scmp.eq.s32.totalorder %s37, 0
    %p472 = por %p470, %p471
    %p473 = scmp.ne.s32.totalorder %s461, %s462
    %p474 = scmp.eq.s32.totalorder %s38, 1
    %p475 = por %p473, %p474
    %p477 = scmp.ne.s32.totalorder %s462, %s476
    %p478 = scmp.eq.s32.totalorder %s38, 0
    %p479 = por %p477, %p478
    %s481 = sadd.s32 %s480, 1
    %p484 = scmp.eq.s32.totalorder %s32, 1
    %p485 = scmp.ne.s32.totalorder %s480, %s482
    %p486 = scmp.eq.s32.totalorder %s32, 0
    %p487 = por %p485, %p486
    %p488 = scmp.ne.s32.totalorder %s480, %s482
    %p489 = scmp.eq.s32.totalorder %s37, 1
    %p490 = por %p488, %p489
    %p491 = scmp.ne.s32.totalorder %s482, %s483
    %p492 = scmp.eq.s32.totalorder %s37, 0
    %p493 = por %p491, %p492
    %p494 = scmp.ne.s32.totalorder %s482, %s483
    %p495 = scmp.eq.s32.totalorder %s38, 1
    %p496 = por %p494, %p495
    %p498 = scmp.ne.s32.totalorder %s483, %s497
    %p499 = scmp.eq.s32.totalorder %s38, 0
    %p500 = por %p498, %p499
    %s502 = sadd.s32 %s501, 1
    %p505 = scmp.eq.s32.totalorder %s32, 1
    %p506 = scmp.ne.s32.totalorder %s501, %s503
    %p507 = scmp.eq.s32.totalorder %s32, 0
    %p508 = por %p506, %p507
    %p509 = scmp.ne.s32.totalorder %s501, %s503
    %p510 = scmp.eq.s32.totalorder %s37, 1
    %p511 = por %p509, %p510
    %p512 = scmp.ne.s32.totalorder %s503, %s504
    %p513 = scmp.eq.s32.totalorder %s37, 0
    %p514 = por %p512, %p513
    %p515 = scmp.ne.s32.totalorder %s503, %s504
    %p516 = scmp.eq.s32.totalorder %s38, 1
    %p517 = por %p515, %p516
    %p519 = scmp.ne.s32.totalorder %s504, %s518
    %p520 = scmp.eq.s32.totalorder %s38, 0
    %p521 = por %p519, %p520
    %s523 = sadd.s32 %s522, 1
    %p526 = scmp.eq.s32.totalorder %s32, 1
    %p527 = scmp.ne.s32.totalorder %s522, %s524
    %p528 = scmp.eq.s32.totalorder %s32, 0
    %p529 = por %p527, %p528
    %p530 = scmp.ne.s32.totalorder %s522, %s524
    %p531 = scmp.eq.s32.totalorder %s37, 1
    %p532 = por %p530, %p531
    %p533 = scmp.ne.s32.totalorder %s524, %s525
    %p534 = scmp.eq.s32.totalorder %s37, 0
    %p535 = por %p533, %p534
    %p536 = scmp.ne.s32.totalorder %s524, %s525
    %p537 = scmp.eq.s32.totalorder %s38, 1
    %p538 = por %p536, %p537
    %p540 = scmp.ne.s32.totalorder %s525, %s539
    %p541 = scmp.eq.s32.totalorder %s38, 0
    %p542 = por %p540, %p541
    %s544 = sadd.s32 %s543, 1
    %p547 = scmp.eq.s32.totalorder %s32, 1
    %p548 = scmp.ne.s32.totalorder %s543, %s545
    %p549 = scmp.eq.s32.totalorder %s32, 0
    %p550 = por %p548, %p549
    %p551 = scmp.ne.s32.totalorder %s543, %s545
    %p552 = scmp.eq.s32.totalorder %s37, 1
    %p553 = por %p551, %p552
    %p554 = scmp.ne.s32.totalorder %s545, %s546
    %p555 = scmp.eq.s32.totalorder %s37, 0
    %p556 = por %p554, %p555
    %p557 = scmp.ne.s32.totalorder %s545, %s546
    %p558 = scmp.eq.s32.totalorder %s38, 1
    %p559 = por %p557, %p558
    %p561 = scmp.ne.s32.totalorder %s546, %s560
    %p562 = scmp.eq.s32.totalorder %s38, 0
    %p563 = por %p561, %p562
    %s565 = sadd.s32 %s564, 1
    %p568 = scmp.eq.s32.totalorder %s32, 1
    %p569 = scmp.ne.s32.totalorder %s564, %s566
    %p570 = scmp.eq.s32.totalorder %s32, 0
    %p571 = por %p569, %p570
    %p572 = scmp.ne.s32.totalorder %s564, %s566
    %p573 = scmp.eq.s32.totalorder %s37, 1
    %p574 = por %p572, %p573
    %p575 = scmp.ne.s32.totalorder %s566, %s567
    %p576 = scmp.eq.s32.totalorder %s37, 0
    %p577 = por %p575, %p576
    %p578 = scmp.ne.s32.totalorder %s566, %s567
    %p579 = scmp.eq.s32.totalorder %s38, 1
    %p580 = por %p578, %p579
    %p582 = scmp.ne.s32.totalorder %s567, %s581
    %p583 = scmp.eq.s32.totalorder %s38, 0
    %p584 = por %p582, %p583
    %s586 = sadd.s32 %s585, 1
    %p589 = scmp.eq.s32.totalorder %s32, 1
    %p590 = scmp.ne.s32.totalorder %s585, %s587
    %p591 = scmp.eq.s32.totalorder %s32, 0
    %p592 = por %p590, %p591
    %p593 = scmp.ne.s32.totalorder %s585, %s587
    %p594 = scmp.eq.s32.totalorder %s37, 1
    %p595 = por %p593, %p594
    %p596 = scmp.ne.s32.totalorder %s587, %s588
    %p597 = scmp.eq.s32.totalorder %s37, 0
    %p598 = por %p596, %p597
    %p599 = scmp.ne.s32.totalorder %s587, %s588
    %p600 = scmp.eq.s32.totalorder %s38, 1
    %p601 = por %p599, %p600
    %p603 = scmp.ne.s32.totalorder %s588, %s602
    %p604 = scmp.eq.s32.totalorder %s38, 0
    %p605 = por %p603, %p604
    %s606 = ssub.s32 %s32, %s39
    %p607 = scmp.eq.s32.totalorder %s606, 0
    %s609 = sadd.s32 %s608, 1
    %s610 = scalar_select %p607, %s608, %s609
    %p613 = pneg %p607
    %p614 = scmp.eq.s32.totalorder %s32, 1
    %p615 = por %p613, %p614
    %p616 = scmp.ne.s32.totalorder %s608, %s611
    %p617 = scmp.eq.s32.totalorder %s32, 0
    %p618 = por %p616, %p617
    %p619 = scmp.ne.s32.totalorder %s608, %s611
    %p620 = scmp.eq.s32.totalorder %s37, 1
    %p621 = por %p619, %p620
    %p622 = scmp.ne.s32.totalorder %s611, %s612
    %p623 = scmp.eq.s32.totalorder %s37, 0
    %p624 = por %p622, %p623
    %p625 = scmp.ne.s32.totalorder %s611, %s612
    %p626 = scmp.eq.s32.totalorder %s38, 1
    %p627 = por %p625, %p626
    %p629 = scmp.ne.s32.totalorder %s612, %s628
    %p630 = scmp.eq.s32.totalorder %s38, 0
    %p631 = por %p629, %p630
    %p632 = scmp.le.s32.totalorder 1, %s32
    %p633 = scmp.lt.s32.totalorder %s32, 3
    %p634 = pnand %p632, %p633
    %p635 = pneg %p634
    // Predicated region
    $region9: #{transformer_decoder_forward.3} parent=5 // pred_check
      _
    $region10: #{transformer_decoder_forward.3} parent=5 // pred_check_branch
      %637 = sbr.rel (%p634) target = $region12
    $region11: #{transformer_decoder_forward.3} parent=5 // pred_region
      %s638 = ssub.s32 %s32, 1
      // Predicated region
      $region13: #{transformer_decoder_forward.3} parent=11 // pred_check
        %p639 = pneg %p157
      $region14: #{transformer_decoder_forward.3} parent=11 // pred_check_branch
        %641 = sbr.rel (%p639) target = $region16
      $region15: #{transformer_decoder_forward.3} parent=11 // pred_region
        _
      $region16: #{transformer_decoder_forward.3} parent=11 // pred_fallthru
        _
      // Predicated region
      $region17: #{transformer_decoder_forward.3} parent=11 // pred_check
        %p642 = pneg %p178
      $region18: #{transformer_decoder_forward.3} parent=11 // pred_check_branch
        %644 = sbr.rel (%p642) target = $region20
      $region19: #{transformer_decoder_forward.3} parent=11 // pred_region
        _
      $region20: #{transformer_decoder_forward.3} parent=11 // pred_fallthru
        _
      // Predicated region
      $region21: #{transformer_decoder_forward.3} parent=11 // pred_check
        %p645 = pneg %p199
      $region22: #{transformer_decoder_forward.3} parent=11 // pred_check_branch
        %647 = sbr.rel (%p645) target = $region24
      $region23: #{transformer_decoder_forward.3} parent=11 // pred_region
        _
      $region24: #{transformer_decoder_forward.3} parent=11 // pred_fallthru
        _
      // Predicated region
      $region25: #{transformer_decoder_forward.3} parent=11 // pred_check
        %p648 = pneg %p220
      $region26: #{transformer_decoder_forward.3} parent=11 // pred_check_branch
        %650 = sbr.rel (%p648) target = $region28
      $region27: #{transformer_decoder_forward.3} parent=11 // pred_region
        _
      $region28: #{transformer_decoder_forward.3} parent=11 // pred_fallthru
        _
      // Predicated region
      $region29: #{transformer_decoder_forward.3} parent=11 // pred_check
        %p651 = pneg %p241
      $region30: #{transformer_decoder_forward.3} parent=11 // pred_check_branch
        %653 = sbr.rel (%p651) target = $region32
      $region31: #{transformer_decoder_forward.3} parent=11 // pred_region
        _
      $region32: #{transformer_decoder_forward.3} parent=11 // pred_fallthru
        _
      // Predicated region
      $region33: #{transformer_decoder_forward.3} parent=11 // pred_check
        %p654 = pneg %p262
      $region34: #{transformer_decoder_forward.3} parent=11 // pred_check_branch
        %656 = sbr.rel (%p654) target = $region36
      $region35: #{transformer_decoder_forward.3} parent=11 // pred_region
        _
      $region36: #{transformer_decoder_forward.3} parent=11 // pred_fallthru
        _
      // Predicated region
      $region37: #{transformer_decoder_forward.3} parent=11 // pred_check
        %p657 = pneg %p283
      $region38: #{transformer_decoder_forward.3} parent=11 // pred_check_branch
        %659 = sbr.rel (%p657) target = $region40
      $region39: #{transformer_decoder_forward.3} parent=11 // pred_region
        _
      $region40: #{transformer_decoder_forward.3} parent=11 // pred_fallthru
        _
      // Predicated region
      $region41: #{transformer_decoder_forward.3} parent=11 // pred_check
        %p660 = pneg %p304
      $region42: #{transformer_decoder_forward.3} parent=11 // pred_check_branch
        %662 = sbr.rel (%p660) target = $region44
      $region43: #{transformer_decoder_forward.3} parent=11 // pred_region
        _
      $region44: #{transformer_decoder_forward.3} parent=11 // pred_fallthru
        _
      // Predicated region
      $region45: #{transformer_decoder_forward.3} parent=11 // pred_check
        %p663 = pneg %p325
      $region46: #{transformer_decoder_forward.3} parent=11 // pred_check_branch
        %665 = sbr.rel (%p663) target = $region48
      $region47: #{transformer_decoder_forward.3} parent=11 // pred_region
        _
      $region48: #{transformer_decoder_forward.3} parent=11 // pred_fallthru
        _
      // Predicated region
      $region49: #{transformer_decoder_forward.3} parent=11 // pred_check
        %p666 = pneg %p346
      $region50: #{transformer_decoder_forward.3} parent=11 // pred_check_branch
        %668 = sbr.rel (%p666) target = $region52
      $region51: #{transformer_decoder_forward.3} parent=11 // pred_region
        _
      $region52: #{transformer_decoder_forward.3} parent=11 // pred_fallthru
        _
      // Predicated region
      $region53: #{transformer_decoder_forward.3} parent=11 // pred_check
        %p669 = pneg %p367
      $region54: #{transformer_decoder_forward.3} parent=11 // pred_check_branch
        %671 = sbr.rel (%p669) target = $region56
      $region55: #{transformer_decoder_forward.3} parent=11 // pred_region
        _
      $region56: #{transformer_decoder_forward.3} parent=11 // pred_fallthru
        _
      // Predicated region
      $region57: #{transformer_decoder_forward.3} parent=11 // pred_check
        %p672 = pneg %p388
      $region58: #{transformer_decoder_forward.3} parent=11 // pred_check_branch
        %674 = sbr.rel (%p672) target = $region60
      $region59: #{transformer_decoder_forward.3} parent=11 // pred_region
        _
      $region60: #{transformer_decoder_forward.3} parent=11 // pred_fallthru
        _
      // Predicated region
      $region61: #{transformer_decoder_forward.3} parent=11 // pred_check
        %p675 = pneg %p409
      $region62: #{transformer_decoder_forward.3} parent=11 // pred_check_branch
        %677 = sbr.rel (%p675) target = $region64
      $region63: #{transformer_decoder_forward.3} parent=11 // pred_region
        _
      $region64: #{transformer_decoder_forward.3} parent=11 // pred_fallthru
        _
      // Predicated region
      $region65: #{transformer_decoder_forward.3} parent=11 // pred_check
        %p678 = pneg %p430
      $region66: #{transformer_decoder_forward.3} parent=11 // pred_check_branch
        %680 = sbr.rel (%p678) target = $region68
      $region67: #{transformer_decoder_forward.3} parent=11 // pred_region
        _
      $region68: #{transformer_decoder_forward.3} parent=11 // pred_fallthru
        _
      // Predicated region
      $region69: #{transformer_decoder_forward.3} parent=11 // pred_check
        %p681 = pneg %p451
      $region70: #{transformer_decoder_forward.3} parent=11 // pred_check_branch
        %683 = sbr.rel (%p681) target = $region72
      $region71: #{transformer_decoder_forward.3} parent=11 // pred_region
        _
      $region72: #{transformer_decoder_forward.3} parent=11 // pred_fallthru
        _
      // Predicated region
      $region73: #{transformer_decoder_forward.3} parent=11 // pred_check
        %p684 = pneg %p472
      $region74: #{transformer_decoder_forward.3} parent=11 // pred_check_branch
        %686 = sbr.rel (%p684) target = $region76
      $region75: #{transformer_decoder_forward.3} parent=11 // pred_region
        _
      $region76: #{transformer_decoder_forward.3} parent=11 // pred_fallthru
        _
      // Predicated region
      $region77: #{transformer_decoder_forward.3} parent=11 // pred_check
        %p687 = pneg %p493
      $region78: #{transformer_decoder_forward.3} parent=11 // pred_check_branch
        %689 = sbr.rel (%p687) target = $region80
      $region79: #{transformer_decoder_forward.3} parent=11 // pred_region
        _
      $region80: #{transformer_decoder_forward.3} parent=11 // pred_fallthru
        _
      // Predicated region
      $region81: #{transformer_decoder_forward.3} parent=11 // pred_check
        %p690 = pneg %p514
      $region82: #{transformer_decoder_forward.3} parent=11 // pred_check_branch
        %692 = sbr.rel (%p690) target = $region84
      $region83: #{transformer_decoder_forward.3} parent=11 // pred_region
        _
      $region84: #{transformer_decoder_forward.3} parent=11 // pred_fallthru
        _
      // Predicated region
      $region85: #{transformer_decoder_forward.3} parent=11 // pred_check
        %p693 = pneg %p535
      $region86: #{transformer_decoder_forward.3} parent=11 // pred_check_branch
        %695 = sbr.rel (%p693) target = $region88
      $region87: #{transformer_decoder_forward.3} parent=11 // pred_region
        _
      $region88: #{transformer_decoder_forward.3} parent=11 // pred_fallthru
        _
      // Predicated region
      $region89: #{transformer_decoder_forward.3} parent=11 // pred_check
        %p696 = pneg %p556
      $region90: #{transformer_decoder_forward.3} parent=11 // pred_check_branch
        %698 = sbr.rel (%p696) target = $region92
      $region91: #{transformer_decoder_forward.3} parent=11 // pred_region
        _
      $region92: #{transformer_decoder_forward.3} parent=11 // pred_fallthru
        _
      // Predicated region
      $region93: #{transformer_decoder_forward.3} parent=11 // pred_check
        %p699 = pneg %p577
      $region94: #{transformer_decoder_forward.3} parent=11 // pred_check_branch
        %701 = sbr.rel (%p699) target = $region96
      $region95: #{transformer_decoder_forward.3} parent=11 // pred_region
        _
      $region96: #{transformer_decoder_forward.3} parent=11 // pred_fallthru
        _
      // Predicated region
      $region97: #{transformer_decoder_forward.3} parent=11 // pred_check
        %p702 = pneg %p598
      $region98: #{transformer_decoder_forward.3} parent=11 // pred_check_branch
        %704 = sbr.rel (%p702) target = $region100
      $region99: #{transformer_decoder_forward.3} parent=11 // pred_region
        _
      $region100: #{transformer_decoder_forward.3} parent=11 // pred_fallthru
        _
    $region12: #{transformer_decoder_forward.3} parent=5 // pred_fallthru
      _
    %p705 = scmp.lt.s32.totalorder %s32, 2
    // Predicated region
    $region101: #{transformer_decoder_forward.3} parent=5 // pred_check
      %p706 = pneg %p705
    $region102: #{transformer_decoder_forward.3} parent=5 // pred_check_branch
      %708 = sbr.rel (%p706) target = $region104
    $region103: #{transformer_decoder_forward.3} parent=5 // pred_region
      // Predicated region
      $region105: #{transformer_decoder_forward.3} parent=103 // pred_check
        %p709 = pneg %p52
      $region106: #{transformer_decoder_forward.3} parent=103 // pred_check_branch
        %711 = sbr.rel (%p709) target = $region108
      $region107: #{transformer_decoder_forward.3} parent=103 // pred_region
        %p712 = scmp.lt.s32.totalorder %s32, 1
        %s713 = scalar_select %p712, %s32, 1
        %s714 = smul.addr %s713, 8
        %s715 = scalar_lea.vmem %s0, %s714
      $region108: #{transformer_decoder_forward.3} parent=103 // pred_fallthru
        _
      // Predicated region
      $region109: #{transformer_decoder_forward.3} parent=103 // pred_check
        %p716 = pneg %p78
      $region110: #{transformer_decoder_forward.3} parent=103 // pred_check_branch
        %718 = sbr.rel (%p716) target = $region112
      $region111: #{transformer_decoder_forward.3} parent=103 // pred_region
        %p719 = scmp.lt.s32.totalorder %s32, 1
        %s720 = scalar_select %p719, %s32, 1
        %s721 = smul.addr %s720, 2
        %s722 = smul.addr %s721, 4
        %s723 = scalar_lea.vmem %s1, %s722
      $region112: #{transformer_decoder_forward.3} parent=103 // pred_fallthru
        _
      // Predicated region
      $region113: #{transformer_decoder_forward.3} parent=103 // pred_check
        %p724 = pneg %p104
      $region114: #{transformer_decoder_forward.3} parent=103 // pred_check_branch
        %726 = sbr.rel (%p724) target = $region116
      $region115: #{transformer_decoder_forward.3} parent=103 // pred_region
        %p727 = scmp.lt.s32.totalorder %s32, 1
        %s728 = scalar_select %p727, %s32, 1
        %s729 = scalar_lea.vmem %s2, %s728
      $region116: #{transformer_decoder_forward.3} parent=103 // pred_fallthru
        _
      // Predicated region
      $region117: #{transformer_decoder_forward.3} parent=103 // pred_check
        %p730 = pneg %p130
      $region118: #{transformer_decoder_forward.3} parent=103 // pred_check_branch
        %732 = sbr.rel (%p730) target = $region120
      $region119: #{transformer_decoder_forward.3} parent=103 // pred_region
        %p733 = scmp.lt.s32.totalorder %s32, 1
        %s734 = scalar_select %p733, %s32, 1
        %s735 = scalar_lea.vmem %s3, %s734
      $region120: #{transformer_decoder_forward.3} parent=103 // pred_fallthru
        _
    $region104: #{transformer_decoder_forward.3} parent=5 // pred_fallthru
      _
    %p736 = scmp.le.s32.totalorder 1, %s32
    %p737 = scmp.lt.s32.totalorder %s32, 3
    %p738 = pnand %p736, %p737
    %p739 = pneg %p738
    // Predicated region
    $region121: #{transformer_decoder_forward.3} parent=5 // pred_check
      _
    $region122: #{transformer_decoder_forward.3} parent=5 // pred_check_branch
      %741 = sbr.rel (%p738) target = $region124
    $region123: #{transformer_decoder_forward.3} parent=5 // pred_region
      %s742 = ssub.s32 %s32, 1
      %p743 = scmp.lt.s32.totalorder %s37, 1
      %s744 = scalar_select %p743, %s37, 1
      %s745 = smul.addr %s744, 8
      %s746 = scalar_lea.vmem %s0, %s745
      %p747 = pneg %p58
      %p748 = pneg %p55
      %p749 = scmp.lt.s32.totalorder %s37, 1
      %s750 = scalar_select %p749, %s37, 1
      %s751 = smul.addr %s750, 2
      %s752 = smul.addr %s751, 4
      %s753 = scalar_lea.vmem %s1, %s752
      %p754 = pneg %p84
      %p755 = pneg %p81
      %p756 = scmp.lt.s32.totalorder %s37, 1
      %s757 = scalar_select %p756, %s37, 1
      %s758 = scalar_lea.vmem %s2, %s757
      %p759 = pneg %p110
      %p760 = pneg %p107
      %p761 = scmp.lt.s32.totalorder %s37, 1
      %s762 = scalar_select %p761, %s37, 1
      %s763 = scalar_lea.vmem %s3, %s762
      %p764 = pneg %p136
      %p765 = pneg %p133
      %p766 = pneg %p157
      %p767 = pneg %p154
      %p768 = pneg %p178
      %p769 = pneg %p175
      %p770 = pneg %p199
      %p771 = pneg %p196
      %p772 = pneg %p220
      %p773 = pneg %p217
      %p774 = pneg %p241
      %p775 = pneg %p238
      %p776 = pneg %p262
      %p777 = pneg %p259
      %p778 = pneg %p283
      %p779 = pneg %p280
      %p780 = pneg %p304
      %p781 = pneg %p301
      %p782 = pneg %p325
      %p783 = pneg %p322
      %p784 = pneg %p346
      %p785 = pneg %p343
      %p786 = pneg %p367
      %p787 = pneg %p364
      %p788 = pneg %p388
      %p789 = pneg %p385
      %p790 = pneg %p409
      %p791 = pneg %p406
      %p792 = pneg %p430
      %p793 = pneg %p427
      %p794 = pneg %p451
      %p795 = pneg %p448
      %p796 = pneg %p472
      %p797 = pneg %p469
      %p798 = pneg %p493
      %p799 = pneg %p490
      %p800 = pneg %p514
      %p801 = pneg %p511
      %p802 = pneg %p535
      %p803 = pneg %p532
      %p804 = pneg %p556
      %p805 = pneg %p553
      %p806 = pneg %p577
      %p807 = pneg %p574
      %p808 = pneg %p598
      %p809 = pneg %p595
      %p810 = pneg %p624
      %p811 = pneg %p621
      %p812 = scmp.lt.s32.totalorder %s37, 1
      %s813 = scalar_select %p812, %s37, 1
      %s814 = smul.addr %s813, 8
      %s815 = scalar_lea.vmem %s26, %s814
      %p816 = scmp.lt.s32.totalorder %s37, 1
      %s817 = scalar_select %p816, %s37, 1
      %s818 = smul.addr %s817, 8
      %s819 = scalar_lea.vmem %s0, %s818
      %p820 = scmp.lt.s32.totalorder %s37, 1
      %s821 = scalar_select %p820, %s37, 1
      %s822 = smul.addr %s821, 2
      %s823 = smul.addr %s822, 4
      %s824 = scalar_lea.vmem %s1, %s823
      %p825 = scmp.lt.s32.totalorder %s37, 1
      %s826 = scalar_select %p825, %s37, 1
      %s827 = scalar_lea.vmem %s2, %s826
      %p828 = scmp.lt.s32.totalorder %s37, 1
      %s829 = scalar_select %p828, %s37, 1
      %s830 = scalar_lea.vmem %s3, %s829
      %p831 = scmp.lt.s32.totalorder %s37, 1
      %s832 = scalar_select %p831, %s37, 1
      %s833 = smul.addr %s832, 8
      %s834 = scalar_lea.vmem %s26, %s833
      %v836 = vld [vmem:[%s819] sm:$0xff]
      %v837 = vld [vmem:[%s827] sm:$0x1]
      %vm838 = vcmp.gt.f32.partialorder %v837, 0.5
      %v839 = vld [vmem:[%s830] sm:$0x1]
      %vm840 = vcmp.gt.f32.partialorder %v839, 0.5
      %v841 = vlaneseq
      %v842 = vshrl.u32 %v841, 7
      %v843 = vlaneseq
      %v844 = vand.u32 %v843, 127
      %vm845 = vcmp.le.s32.totalorder %v844, %v842
      %v846 = vsel %vm838, 1, 0
      %v847 = vperm.slane %v846, 0
      %vm848 = vcmp.eq.s32.totalorder %v847, 1
      %vm849 = vmand %vm845, %vm848
      %v850 = vpack.c.bf16 %v836, %v836
      %v851 = vld [vmem:[%s4] sm:$0xf]
      %v852 = vld [vmem:[%s4 + $0x4] sm:$0xf]
      %v853 = vld [vmem:[%s4 + $0x8] sm:$0xf]
      %v854 = vld [vmem:[%s4 + $0xc] sm:$0xf]
      %v855 = vld [vmem:[%s5] sm:$0x1]
      %v856 = vld [vmem:[%s6] sm:$0xf]
      %v857 = vld [vmem:[%s6 + $0x4] sm:$0xf]
      %v858 = vld [vmem:[%s6 + $0x8] sm:$0xf]
      %v859 = vld [vmem:[%s6 + $0xc] sm:$0xf]
      %v860 = vld [vmem:[%s7] sm:$0x1]
      %v861 = vld [vmem:[%s8] sm:$0xf]
      %v862 = vld [vmem:[%s8 + $0x4] sm:$0xf]
      %v863 = vld [vmem:[%s8 + $0x8] sm:$0xf]
      %v864 = vld [vmem:[%s8 + $0xc] sm:$0xf]
      %v865 = vld [vmem:[%s9] sm:$0x1]
      %v867 = vperm.slane %v855, 0
      %v873 = vunpack.c.l.b16 %v851
      %v874 = vunpack.c.l.b16 %v852
      %v875 = vunpack.c.l.b16 %v853
      %v876 = vunpack.c.l.b16 %v854
      %v877 = vpack.c.b16 %v874, %v873
      %v878 = vpack.c.b16 %v876, %v875
      %vm881 = vcmask 261120
      %v883 = vsel %vm881, %v850, 0
      %885 = vmatpush.bf16.msra.mxu0 0
      %886 = vmatpush.bf16.msra.mxu0 0
      %887 = vmatpush.bf16.msra.mxu0 0
      %888 = vmatpush.bf16.msra.mxu0 0
      %889 = vmatpush.bf16.msra.mxu0 0
      %890 = vmatpush.bf16.msra.mxu0 0
      %891 = vmatpush.bf16.msra.mxu0 %v878
      %892 = vmatpush.bf16.msra.mxu0 %v877
      %893 = vmatmul.bf16.gmra.mxu0 %v883
      %v894 = vpop.f32.mrf.mxu0
      %v895 = vadd.f32 %v867, %v894
      %v896 = vpop.f32.mrf.mxu0
      %897 = vdwg.mxu0
      %v899 = vperm.slane %v860, 0
      %v905 = vunpack.c.l.b16 %v856
      %v906 = vunpack.c.l.b16 %v857
      %v907 = vunpack.c.l.b16 %v858
      %v908 = vunpack.c.l.b16 %v859
      %v909 = vpack.c.b16 %v906, %v905
      %v910 = vpack.c.b16 %v908, %v907
      %913 = vmatpush.bf16.msra.mxu0 0
      %914 = vmatpush.bf16.msra.mxu0 0
      %915 = vmatpush.bf16.msra.mxu0 0
      %916 = vmatpush.bf16.msra.mxu0 0
      %917 = vmatpush.bf16.msra.mxu0 0
      %918 = vmatpush.bf16.msra.mxu0 0
      %919 = vmatpush.bf16.msra.mxu0 %v910
      %920 = vmatpush.bf16.msra.mxu0 %v909
      %921 = vmatmul.bf16.gmra.mxu0 %v883
      %v922 = vpop.f32.mrf.mxu0
      %v923 = vadd.f32 %v899, %v922
      %v924 = vpop.f32.mrf.mxu0
      %925 = vdwg.mxu0
      %v926 = vpack.c.bf16 %v895, %v895
      %v927 = vpack.c.bf16 %v923, %v923
      %vm928 = vcmask 64512
      %v930 = vsel %vm928, %v926, 0
      %v933 = vsel %vm928, %v927, 0
      %935 = vmatpush.bf16.xpose.msra.mxu0 0
      %936 = vmatpush.bf16.xpose.msra.mxu0 0
      %937 = vmatpush.bf16.xpose.msra.mxu0 0
      %938 = vmatpush.bf16.xpose.msra.mxu0 0
      %939 = vmatpush.bf16.xpose.msra.mxu0 0
      %940 = vmatpush.bf16.xpose.msra.mxu0 0
      %941 = vmatpush.bf16.xpose.msra.mxu0 0
      %942 = vmatpush.bf16.xpose.msra.mxu0 %v933
      %943 = vmatmul.bf16.gmra.mxu0 %v930
      %v944 = vpop.f32.mrf.mxu0
      %v945 = vadd.f32 0.0, %v944
      %v946 = vpop.f32.mrf.mxu0
      %947 = vdwg.mxu0
      %v948 = vmul.f32 %v945, 0.35355338
      %v949 = vsel %vm849, %v948, -1e+09
      %v950 = vsel %vm928, %v949, -inf
      %951 = vmax.xlane.f32.xlu0 %v950
      %v952 = vpop.xlane.xlu0 %951
      %v953 = vsub.f32 %v949, %v952
      %v954 = vmul.f32 %v953, 1.442695
      %v955 = vpow.pop %v954
      %v956 = vsel %vm928, %v955, 0.0
      %957 = vadd.xlane.f32.xlu0 %v956
      %v958 = vpop.xlane.xlu0 %957
      %v959 = vrcp.pop %v958
      %v960 = vmul.f32 %v955, %v959
      %v961 = vpack.c.bf16 %v960, %v960
      %v963 = vunpack.c.l.b16 %v927
      %v964 = vpack.c.b16 %v963, %v963
      %965 = vrot.lane.b32.xlu0 %v964, 96
      %v966 = vpop.permute.xlu0 %965
      %v968 = vsel %vm928, %v961, 0
      %vm970 = vcmask 1043456
      %v972 = vsel %vm970, %v966, 0
      %974 = vmatpush.bf16.msra.mxu0 0
      %975 = vmatpush.bf16.msra.mxu0 0
      %976 = vmatpush.bf16.msra.mxu0 0
      %977 = vmatpush.bf16.msra.mxu0 0
      %978 = vmatpush.bf16.msra.mxu0 0
      %979 = vmatpush.bf16.msra.mxu0 0
      %980 = vmatpush.bf16.msra.mxu0 0
      %981 = vmatpush.bf16.msra.mxu0 %v972
      %982 = vmatmul.bf16.gmra.mxu0 %v968
      %v983 = vpop.f32.mrf.mxu0
      %v984 = vadd.f32 0.0, %v983
      %v985 = vpop.f32.mrf.mxu0
      %986 = vdwg.mxu0
      %987 = vst.msk [vmem:[#allocation2] sm:$0xff] %vm928, %v984
      %v989 = vunpack.c.l.b16 %v926
      %v990 = vpack.c.b16 %v989, %v989
      %991 = vrot.lane.b32.xlu0 %v990, 120
      %v992 = vpop.permute.xlu0 %991
      %993 = vrot.lane.b32.xlu0 %v964, 120
      %v994 = vpop.permute.xlu0 %993
      %v996 = vsel %vm928, %v992, 0
      %v999 = vsel %vm928, %v994, 0
      %1001 = vmatpush.bf16.xpose.msra.mxu0 0
      %1002 = vmatpush.bf16.xpose.msra.mxu0 0
      %1003 = vmatpush.bf16.xpose.msra.mxu0 0
      %1004 = vmatpush.bf16.xpose.msra.mxu0 0
      %1005 = vmatpush.bf16.xpose.msra.mxu0 0
      %1006 = vmatpush.bf16.xpose.msra.mxu0 0
      %1007 = vmatpush.bf16.xpose.msra.mxu0 0
      %1008 = vmatpush.bf16.xpose.msra.mxu0 %v999
      %1009 = vmatmul.bf16.gmra.mxu0 %v996
      %v1010 = vpop.f32.mrf.mxu0
      %v1011 = vadd.f32 0.0, %v1010
      %v1012 = vpop.f32.mrf.mxu0
      %1013 = vdwg.mxu0
      %v1014 = vmul.f32 %v1011, 0.35355338
      %v1015 = vsel %vm849, %v1014, -1e+09
      %v1016 = vsel %vm928, %v1015, -inf
      %1017 = vmax.xlane.f32.xlu0 %v1016
      %v1018 = vpop.xlane.xlu0 %1017
      %v1019 = vsub.f32 %v1015, %v1018
      %v1020 = vmul.f32 %v1019, 1.442695
      %v1021 = vpow.pop %v1020
      %v1022 = vsel %vm928, %v1021, 0.0
      %1023 = vadd.xlane.f32.xlu0 %v1022
      %v1024 = vpop.xlane.xlu0 %1023
      %v1025 = vrcp.pop %v1024
      %v1026 = vmul.f32 %v1021, %v1025
      %v1027 = vpack.c.bf16 %v1026, %v1026
      %1028 = vrot.lane.b32.xlu0 %v964, 88
      %v1029 = vpop.permute.xlu0 %1028
      %v1031 = vsel %vm928, %v1027, 0
      %v1034 = vsel %vm970, %v1029, 0
      %1036 = vmatpush.bf16.msra.mxu0 0
      %1037 = vmatpush.bf16.msra.mxu0 0
      %1038 = vmatpush.bf16.msra.mxu0 0
      %1039 = vmatpush.bf16.msra.mxu0 0
      %1040 = vmatpush.bf16.msra.mxu0 0
      %1041 = vmatpush.bf16.msra.mxu0 0
      %1042 = vmatpush.bf16.msra.mxu0 0
      %1043 = vmatpush.bf16.msra.mxu0 %v1034
      %1044 = vmatmul.bf16.gmra.mxu0 %v1031
      %v1045 = vpop.f32.mrf.mxu0
      %v1046 = vadd.f32 0.0, %v1045
      %v1047 = vpop.f32.mrf.mxu0
      %1048 = vdwg.mxu0
      %1050 = vrot.lane.b32.xlu0 %v1046, 8
      %v1051 = vpop.permute.xlu0 %1050
      %vm1053 = vcmask 130112
      %1054 = vst.msk [vmem:[#allocation2] sm:$0xff] %vm1053, %v1051
      %1055 = vrot.lane.b32.xlu0 %v990, 112
      %v1056 = vpop.permute.xlu0 %1055
      %1057 = vrot.lane.b32.xlu0 %v964, 112
      %v1058 = vpop.permute.xlu0 %1057
      %v1060 = vsel %vm928, %v1056, 0
      %v1063 = vsel %vm928, %v1058, 0
      %1065 = vmatpush.bf16.xpose.msra.mxu0 0
      %1066 = vmatpush.bf16.xpose.msra.mxu0 0
      %1067 = vmatpush.bf16.xpose.msra.mxu0 0
      %1068 = vmatpush.bf16.xpose.msra.mxu0 0
      %1069 = vmatpush.bf16.xpose.msra.mxu0 0
      %1070 = vmatpush.bf16.xpose.msra.mxu0 0
      %1071 = vmatpush.bf16.xpose.msra.mxu0 0
      %1072 = vmatpush.bf16.xpose.msra.mxu0 %v1063
      %1073 = vmatmul.bf16.gmra.mxu0 %v1060
      %v1074 = vpop.f32.mrf.mxu0
      %v1075 = vadd.f32 0.0, %v1074
      %v1076 = vpop.f32.mrf.mxu0
      %1077 = vdwg.mxu0
      %v1078 = vmul.f32 %v1075, 0.35355338
      %v1079 = vsel %vm849, %v1078, -1e+09
      %v1080 = vsel %vm928, %v1079, -inf
      %1081 = vmax.xlane.f32.xlu0 %v1080
      %v1082 = vpop.xlane.xlu0 %1081
      %v1083 = vsub.f32 %v1079, %v1082
      %v1084 = vmul.f32 %v1083, 1.442695
      %v1085 = vpow.pop %v1084
      %v1086 = vsel %vm928, %v1085, 0.0
      %1087 = vadd.xlane.f32.xlu0 %v1086
      %v1088 = vpop.xlane.xlu0 %1087
      %v1089 = vrcp.pop %v1088
      %v1090 = vmul.f32 %v1085, %v1089
      %v1091 = vpack.c.bf16 %v1090, %v1090
      %1092 = vrot.lane.b32.xlu0 %v964, 80
      %v1093 = vpop.permute.xlu0 %1092
      %v1095 = vsel %vm928, %v1091, 0
      %v1098 = vsel %vm970, %v1093, 0
      %1100 = vmatpush.bf16.msra.mxu0 0
      %1101 = vmatpush.bf16.msra.mxu0 0
      %1102 = vmatpush.bf16.msra.mxu0 0
      %1103 = vmatpush.bf16.msra.mxu0 0
      %1104 = vmatpush.bf16.msra.mxu0 0
      %1105 = vmatpush.bf16.msra.mxu0 0
      %1106 = vmatpush.bf16.msra.mxu0 0
      %1107 = vmatpush.bf16.msra.mxu0 %v1098
      %1108 = vmatmul.bf16.gmra.mxu0 %v1095
      %v1109 = vpop.f32.mrf.mxu0
      %v1110 = vadd.f32 0.0, %v1109
      %v1111 = vpop.f32.mrf.mxu0
      %1112 = vdwg.mxu0
      %1114 = vrot.lane.b32.xlu0 %v1110, 16
      %v1115 = vpop.permute.xlu0 %1114
      %vm1117 = vcmask 195712
      %1118 = vst.msk [vmem:[#allocation2] sm:$0xff] %vm1117, %v1115
      %1119 = vrot.lane.b32.xlu0 %v990, 104
      %v1120 = vpop.permute.xlu0 %1119
      %1121 = vrot.lane.b32.xlu0 %v964, 104
      %v1122 = vpop.permute.xlu0 %1121
      %v1124 = vsel %vm928, %v1120, 0
      %v1127 = vsel %vm928, %v1122, 0
      %1129 = vmatpush.bf16.xpose.msra.mxu0 0
      %1130 = vmatpush.bf16.xpose.msra.mxu0 0
      %1131 = vmatpush.bf16.xpose.msra.mxu0 0
      %1132 = vmatpush.bf16.xpose.msra.mxu0 0
      %1133 = vmatpush.bf16.xpose.msra.mxu0 0
      %1134 = vmatpush.bf16.xpose.msra.mxu0 0
      %1135 = vmatpush.bf16.xpose.msra.mxu0 0
      %1136 = vmatpush.bf16.xpose.msra.mxu0 %v1127
      %1137 = vmatmul.bf16.gmra.mxu0 %v1124
      %v1138 = vpop.f32.mrf.mxu0
      %v1139 = vadd.f32 0.0, %v1138
      %v1140 = vpop.f32.mrf.mxu0
      %1141 = vdwg.mxu0
      %v1142 = vmul.f32 %v1139, 0.35355338
      %v1143 = vsel %vm849, %v1142, -1e+09
      %v1144 = vsel %vm928, %v1143, -inf
      %1145 = vmax.xlane.f32.xlu0 %v1144
      %v1146 = vpop.xlane.xlu0 %1145
      %v1147 = vsub.f32 %v1143, %v1146
      %v1148 = vmul.f32 %v1147, 1.442695
      %v1149 = vpow.pop %v1148
      %v1150 = vsel %vm928, %v1149, 0.0
      %1151 = vadd.xlane.f32.xlu0 %v1150
      %v1152 = vpop.xlane.xlu0 %1151
      %v1153 = vrcp.pop %v1152
      %v1154 = vmul.f32 %v1149, %v1153
      %v1155 = vpack.c.bf16 %v1154, %v1154
      %1156 = vrot.lane.b32.xlu0 %v964, 72
      %v1157 = vpop.permute.xlu0 %1156
      %v1159 = vsel %vm928, %v1155, 0
      %v1162 = vsel %vm970, %v1157, 0
      %1164 = vmatpush.bf16.msra.mxu0 0
      %1165 = vmatpush.bf16.msra.mxu0 0
      %1166 = vmatpush.bf16.msra.mxu0 0
      %1167 = vmatpush.bf16.msra.mxu0 0
      %1168 = vmatpush.bf16.msra.mxu0 0
      %1169 = vmatpush.bf16.msra.mxu0 0
      %1170 = vmatpush.bf16.msra.mxu0 0
      %1171 = vmatpush.bf16.msra.mxu0 %v1162
      %1172 = vmatmul.bf16.gmra.mxu0 %v1159
      %v1173 = vpop.f32.mrf.mxu0
      %v1174 = vadd.f32 0.0, %v1173
      %v1175 = vpop.f32.mrf.mxu0
      %1176 = vdwg.mxu0
      %1178 = vrot.lane.b32.xlu0 %v1174, 24
      %v1179 = vpop.permute.xlu0 %1178
      %vm1181 = vcmask 261312
      %1182 = vst.msk [vmem:[#allocation2] sm:$0xff] %vm1181, %v1179
      %v1183 = vld [vmem:[#allocation2] sm:$0xff]
      %v1184 = vpack.c.bf16 %v1183, %v1183
      %v1186 = vperm.slane %v865, 0
      %v1192 = vunpack.c.l.b16 %v861
      %v1193 = vunpack.c.l.b16 %v862
      %v1194 = vunpack.c.l.b16 %v863
      %v1195 = vunpack.c.l.b16 %v864
      %v1196 = vpack.c.b16 %v1193, %v1192
      %v1197 = vpack.c.b16 %v1195, %v1194
      %v1201 = vsel %vm881, %v1184, 0
      %1203 = vmatpush.bf16.msra.mxu0 0
      %1204 = vmatpush.bf16.msra.mxu0 0
      %1205 = vmatpush.bf16.msra.mxu0 0
      %1206 = vmatpush.bf16.msra.mxu0 0
      %1207 = vmatpush.bf16.msra.mxu0 0
      %1208 = vmatpush.bf16.msra.mxu0 0
      %1209 = vmatpush.bf16.msra.mxu0 %v1197
      %1210 = vmatpush.bf16.msra.mxu0 %v1196
      %1211 = vmatmul.bf16.gmra.mxu0 %v1201
      %v1212 = vpop.f32.mrf.mxu0
      %v1213 = vadd.f32 %v1186, %v1212
      %v1214 = vpop.f32.mrf.mxu0
      %1215 = vdwg.mxu0
      %v1216 = vld [vmem:[%s10] sm:$0x1]
      %v1217 = vld [vmem:[%s11] sm:$0x1]
      %v1218 = vadd.f32 %v836, %v1213
      %v1219 = vsel %vm881, %v1218, 0.0
      %1220 = vadd.xlane.f32.xlu0 %v1219
      %v1221 = vpop.xlane.xlu0 %1220
      %v1222 = vrcp.pop 32.0
      %v1223 = vmul.f32 32.0, %v1222
      %v1224 = vsub.f32 1.0, %v1223
      %v1225 = vmul.f32 %v1222, %v1224
      %v1226 = vadd.f32 %v1222, %v1225
      %vm1227 = vweird.f32 %v1222
      %v1228 = vsel %vm1227, %v1222, %v1226
      %v1229 = vmul.f32 %v1221, %v1228
      %v1230 = vsub.f32 %v1218, %v1229
      %v1231 = vmul.f32 %v1230, %v1230
      %v1232 = vsel %vm881, %v1231, 0.0
      %1233 = vadd.xlane.f32.xlu0 %v1232
      %v1234 = vpop.xlane.xlu0 %1233
      %v1235 = vmul.f32 %v1234, %v1228
      %v1236 = vadd.f32 %v1235, 1e-05
      %v1237 = vrsqrt.pop %v1236
      %v1238 = vmul.f32 %v1237, %v1236
      %v1239 = vmul.f32 %v1238, %v1237
      %v1240 = vmul.f32 0.5, %v1239
      %v1241 = vsub.f32 1.5, %v1240
      %v1242 = vmul.f32 %v1237, %v1241
      %vm1243 = vweird.f32 %v1236
      %vm1244 = vweird.f32 %v1237
      %vm1245 = vmor %vm1243, %vm1244
      %v1246 = vsel %vm1245, %v1237, %v1242
      %v1247 = vmul.f32 %v1230, %v1246
      %v1249 = vperm.slane %v1216, 0
      %v1251 = vmul.f32 %v1247, %v1249
      %v1253 = vperm.slane %v1217, 0
      %v1255 = vadd.f32 %v1251, %v1253
      %v1256 = vpack.c.bf16 %v1255, %v1255
      %v1257 = vld [vmem:[%s824] sm:$0xf]
      %v1258 = vld [vmem:[%s824 + $0x4] sm:$0xf]
      %v1259 = vld [vmem:[%s12] sm:$0xf]
      %v1260 = vld [vmem:[%s12 + $0x4] sm:$0xf]
      %v1261 = vld [vmem:[%s12 + $0x8] sm:$0xf]
      %v1262 = vld [vmem:[%s12 + $0xc] sm:$0xf]
      %v1263 = vld [vmem:[%s13] sm:$0x1]
      %v1264 = vld [vmem:[%s14] sm:$0xf]
      %v1265 = vld [vmem:[%s14 + $0x4] sm:$0xf]
      %v1266 = vld [vmem:[%s14 + $0x8] sm:$0xf]
      %v1267 = vld [vmem:[%s14 + $0xc] sm:$0xf]
      %v1268 = vld [vmem:[%s15] sm:$0x1]
      %v1269 = vld [vmem:[%s16] sm:$0xf]
      %v1270 = vld [vmem:[%s16 + $0x4] sm:$0xf]
      %v1271 = vld [vmem:[%s16 + $0x8] sm:$0xf]
      %v1272 = vld [vmem:[%s16 + $0xc] sm:$0xf]
      %v1273 = vld [vmem:[%s17] sm:$0x1]
      %v1275 = vperm.slane %v1263, 0
      %v1281 = vunpack.c.l.b16 %v1259
      %v1282 = vunpack.c.l.b16 %v1260
      %v1283 = vunpack.c.l.b16 %v1261
      %v1284 = vunpack.c.l.b16 %v1262
      %v1285 = vpack.c.b16 %v1282, %v1281
      %v1286 = vpack.c.b16 %v1284, %v1283
      %v1290 = vsel %vm881, %v1256, 0
      %1292 = vmatpush.bf16.msra.mxu0 0
      %1293 = vmatpush.bf16.msra.mxu0 0
      %1294 = vmatpush.bf16.msra.mxu0 0
      %1295 = vmatpush.bf16.msra.mxu0 0
      %1296 = vmatpush.bf16.msra.mxu0 0
      %1297 = vmatpush.bf16.msra.mxu0 0
      %1298 = vmatpush.bf16.msra.mxu0 %v1286
      %1299 = vmatpush.bf16.msra.mxu0 %v1285
      %1300 = vmatmul.bf16.gmra.mxu0 %v1290
      %v1301 = vpop.f32.mrf.mxu0
      %v1302 = vadd.f32 %v1275, %v1301
      %v1303 = vpop.f32.mrf.mxu0
      %1304 = vdwg.mxu0
      %v1306 = vperm.slane %v1268, 0
      %v1310 = vunpack.c.l.b16 %v1257
      %v1311 = vunpack.c.l.b16 %v1258
      %v1312 = vpack.c.b16 %v1311, %v1310
      %v1317 = vunpack.c.l.b16 %v1264
      %v1318 = vunpack.c.l.b16 %v1265
      %v1319 = vunpack.c.l.b16 %v1266
      %v1320 = vunpack.c.l.b16 %v1267
      %v1321 = vpack.c.b16 %v1318, %v1317
      %v1322 = vpack.c.b16 %v1320, %v1319
      %v1326 = vsel %vm881, %v1312, 0
      %1328 = vmatpush.bf16.msra.mxu0 0
      %1329 = vmatpush.bf16.msra.mxu0 0
      %1330 = vmatpush.bf16.msra.mxu0 0
      %1331 = vmatpush.bf16.msra.mxu0 0
      %1332 = vmatpush.bf16.msra.mxu0 0
      %1333 = vmatpush.bf16.msra.mxu0 0
      %1334 = vmatpush.bf16.msra.mxu0 %v1322
      %1335 = vmatpush.bf16.msra.mxu0 %v1321
      %1336 = vmatmul.bf16.gmra.mxu0 %v1326
      %v1337 = vpop.f32.mrf.mxu0
      %v1338 = vadd.f32 %v1306, %v1337
      %v1339 = vpop.f32.mrf.mxu0
      %v1340 = vadd.f32 %v1306, %v1339
      %1341 = vdwg.mxu0
      %v1342 = vpack.c.bf16 %v1302, %v1302
      %v1343 = vpack.c.bf16 %v1338, %v1338
      %v1344 = vpack.c.bf16 %v1340, %v1340
      %v1347 = vunpack.c.l.b16 %v1343
      %v1348 = vunpack.c.l.b16 %v1344
      %v1349 = vpack.c.b16 %v1348, %v1347
      %v1351 = vsel %vm928, %v1342, 0
      %v1354 = vsel %vm928, %v1349, 0
      %1356 = vmatpush.bf16.xpose.msra.mxu0 0
      %1357 = vmatpush.bf16.xpose.msra.mxu0 0
      %1358 = vmatpush.bf16.xpose.msra.mxu0 0
      %1359 = vmatpush.bf16.xpose.msra.mxu0 0
      %1360 = vmatpush.bf16.xpose.msra.mxu0 0
      %1361 = vmatpush.bf16.xpose.msra.mxu0 0
      %1362 = vmatpush.bf16.xpose.msra.mxu0 0
      %1363 = vmatpush.bf16.xpose.msra.mxu0 %v1354
      %1364 = vmatmul.bf16.gmra.mxu0 %v1351
      %v1365 = vpop.f32.mrf.mxu0
      %v1366 = vadd.f32 0.0, %v1365
      %v1367 = vpop.f32.mrf.mxu0
      %1368 = vdwg.mxu0
      %v1369 = vmul.f32 %v1366, 0.35355338
      %v1370 = vsel %vm840, 1, 0
      %v1371 = vperm.slane %v1370, 0
      %vm1372 = vcmp.eq.s32.totalorder %v1371, 1
      %v1373 = vsel %vm1372, %v1369, -1e+09
      %vm1374 = vcmask 130048
      %v1375 = vsel %vm1374, %v1373, -inf
      %1376 = vmax.xlane.f32.xlu0 %v1375
      %v1377 = vpop.xlane.xlu0 %1376
      %v1378 = vsub.f32 %v1373, %v1377
      %v1379 = vmul.f32 %v1378, 1.442695
      %v1380 = vpow.pop %v1379
      %v1381 = vsel %vm1374, %v1380, 0.0
      %1382 = vadd.xlane.f32.xlu0 %v1381
      %v1383 = vpop.xlane.xlu0 %1382
      %v1384 = vrcp.pop %v1383
      %v1385 = vmul.f32 %v1380, %v1384
      %v1386 = vpack.c.bf16 %v1385, %v1385
      %1387 = vrot.lane.b32.xlu0 %v1349, 96
      %v1388 = vpop.permute.xlu0 %1387
      %v1391 = vsel %vm1374, %v1386, 0
      %1393 = vmatpush.bf16.msra.mxu0 0
      %1394 = vmatpush.bf16.msra.mxu0 0
      %1395 = vmatpush.bf16.msra.mxu0 0
      %1396 = vmatpush.bf16.msra.mxu0 0
      %1397 = vmatpush.bf16.msra.mxu0 0
      %1398 = vmatpush.bf16.msra.mxu0 0
      %1399 = vmatpush.bf16.msra.mxu0 0
      %1400 = vmatpush.bf16.msra.mxu0 %v1388
      %1401 = vmatmul.bf16.gmra.mxu0 %v1391
      %v1402 = vpop.f32.mrf.mxu0
      %v1403 = vadd.f32 0.0, %v1402
      %v1404 = vpop.f32.mrf.mxu0
      %1405 = vdwg.mxu0
      %1406 = vst.msk [vmem:[#allocation2] sm:$0xff] %vm928, %v1403
      %v1408 = vunpack.c.l.b16 %v1342
      %v1409 = vpack.c.b16 %v1408, %v1408
      %1410 = vrot.lane.b32.xlu0 %v1409, 120
      %v1411 = vpop.permute.xlu0 %1410
      %1412 = vrot.lane.b32.xlu0 %v1349, 120
      %v1413 = vpop.permute.xlu0 %1412
      %v1415 = vsel %vm928, %v1411, 0
      %v1418 = vsel %vm928, %v1413, 0
      %1420 = vmatpush.bf16.xpose.msra.mxu0 0
      %1421 = vmatpush.bf16.xpose.msra.mxu0 0
      %1422 = vmatpush.bf16.xpose.msra.mxu0 0
      %1423 = vmatpush.bf16.xpose.msra.mxu0 0
      %1424 = vmatpush.bf16.xpose.msra.mxu0 0
      %1425 = vmatpush.bf16.xpose.msra.mxu0 0
      %1426 = vmatpush.bf16.xpose.msra.mxu0 0
      %1427 = vmatpush.bf16.xpose.msra.mxu0 %v1418
      %1428 = vmatmul.bf16.gmra.mxu0 %v1415
      %v1429 = vpop.f32.mrf.mxu0
      %v1430 = vadd.f32 0.0, %v1429
      %v1431 = vpop.f32.mrf.mxu0
      %1432 = vdwg.mxu0
      %v1433 = vmul.f32 %v1430, 0.35355338
      %v1434 = vsel %vm1372, %v1433, -1e+09
      %v1435 = vsel %vm1374, %v1434, -inf
      %1436 = vmax.xlane.f32.xlu0 %v1435
      %v1437 = vpop.xlane.xlu0 %1436
      %v1438 = vsub.f32 %v1434, %v1437
      %v1439 = vmul.f32 %v1438, 1.442695
      %v1440 = vpow.pop %v1439
      %v1441 = vsel %vm1374, %v1440, 0.0
      %1442 = vadd.xlane.f32.xlu0 %v1441
      %v1443 = vpop.xlane.xlu0 %1442
      %v1444 = vrcp.pop %v1443
      %v1445 = vmul.f32 %v1440, %v1444
      %v1446 = vpack.c.bf16 %v1445, %v1445
      %1447 = vrot.lane.b32.xlu0 %v1349, 88
      %v1448 = vpop.permute.xlu0 %1447
      %v1451 = vsel %vm1374, %v1446, 0
      %1453 = vmatpush.bf16.msra.mxu0 0
      %1454 = vmatpush.bf16.msra.mxu0 0
      %1455 = vmatpush.bf16.msra.mxu0 0
      %1456 = vmatpush.bf16.msra.mxu0 0
      %1457 = vmatpush.bf16.msra.mxu0 0
      %1458 = vmatpush.bf16.msra.mxu0 0
      %1459 = vmatpush.bf16.msra.mxu0 0
      %1460 = vmatpush.bf16.msra.mxu0 %v1448
      %1461 = vmatmul.bf16.gmra.mxu0 %v1451
      %v1462 = vpop.f32.mrf.mxu0
      %v1463 = vadd.f32 0.0, %v1462
      %v1464 = vpop.f32.mrf.mxu0
      %1465 = vdwg.mxu0
      %1467 = vrot.lane.b32.xlu0 %v1463, 8
      %v1468 = vpop.permute.xlu0 %1467
      %1470 = vst.msk [vmem:[#allocation2] sm:$0xff] %vm1053, %v1468
      %1471 = vrot.lane.b32.xlu0 %v1409, 112
      %v1472 = vpop.permute.xlu0 %1471
      %1473 = vrot.lane.b32.xlu0 %v1349, 112
      %v1474 = vpop.permute.xlu0 %1473
      %v1476 = vsel %vm928, %v1472, 0
      %v1479 = vsel %vm928, %v1474, 0
      %1481 = vmatpush.bf16.xpose.msra.mxu0 0
      %1482 = vmatpush.bf16.xpose.msra.mxu0 0
      %1483 = vmatpush.bf16.xpose.msra.mxu0 0
      %1484 = vmatpush.bf16.xpose.msra.mxu0 0
      %1485 = vmatpush.bf16.xpose.msra.mxu0 0
      %1486 = vmatpush.bf16.xpose.msra.mxu0 0
      %1487 = vmatpush.bf16.xpose.msra.mxu0 0
      %1488 = vmatpush.bf16.xpose.msra.mxu0 %v1479
      %1489 = vmatmul.bf16.gmra.mxu0 %v1476
      %v1490 = vpop.f32.mrf.mxu0
      %v1491 = vadd.f32 0.0, %v1490
      %v1492 = vpop.f32.mrf.mxu0
      %1493 = vdwg.mxu0
      %v1494 = vmul.f32 %v1491, 0.35355338
      %v1495 = vsel %vm1372, %v1494, -1e+09
      %v1496 = vsel %vm1374, %v1495, -inf
      %1497 = vmax.xlane.f32.xlu0 %v1496
      %v1498 = vpop.xlane.xlu0 %1497
      %v1499 = vsub.f32 %v1495, %v1498
      %v1500 = vmul.f32 %v1499, 1.442695
      %v1501 = vpow.pop %v1500
      %v1502 = vsel %vm1374, %v1501, 0.0
      %1503 = vadd.xlane.f32.xlu0 %v1502
      %v1504 = vpop.xlane.xlu0 %1503
      %v1505 = vrcp.pop %v1504
      %v1506 = vmul.f32 %v1501, %v1505
      %v1507 = vpack.c.bf16 %v1506, %v1506
      %1508 = vrot.lane.b32.xlu0 %v1349, 80
      %v1509 = vpop.permute.xlu0 %1508
      %v1512 = vsel %vm1374, %v1507, 0
      %1514 = vmatpush.bf16.msra.mxu0 0
      %1515 = vmatpush.bf16.msra.mxu0 0
      %1516 = vmatpush.bf16.msra.mxu0 0
      %1517 = vmatpush.bf16.msra.mxu0 0
      %1518 = vmatpush.bf16.msra.mxu0 0
      %1519 = vmatpush.bf16.msra.mxu0 0
      %1520 = vmatpush.bf16.msra.mxu0 0
      %1521 = vmatpush.bf16.msra.mxu0 %v1509
      %1522 = vmatmul.bf16.gmra.mxu0 %v1512
      %v1523 = vpop.f32.mrf.mxu0
      %v1524 = vadd.f32 0.0, %v1523
      %v1525 = vpop.f32.mrf.mxu0
      %1526 = vdwg.mxu0
      %1528 = vrot.lane.b32.xlu0 %v1524, 16
      %v1529 = vpop.permute.xlu0 %1528
      %1531 = vst.msk [vmem:[#allocation2] sm:$0xff] %vm1117, %v1529
      %1532 = vrot.lane.b32.xlu0 %v1409, 104
      %v1533 = vpop.permute.xlu0 %1532
      %1534 = vrot.lane.b32.xlu0 %v1349, 104
      %v1535 = vpop.permute.xlu0 %1534
      %v1537 = vsel %vm928, %v1533, 0
      %v1540 = vsel %vm928, %v1535, 0
      %1542 = vmatpush.bf16.xpose.msra.mxu0 0
      %1543 = vmatpush.bf16.xpose.msra.mxu0 0
      %1544 = vmatpush.bf16.xpose.msra.mxu0 0
      %1545 = vmatpush.bf16.xpose.msra.mxu0 0
      %1546 = vmatpush.bf16.xpose.msra.mxu0 0
      %1547 = vmatpush.bf16.xpose.msra.mxu0 0
      %1548 = vmatpush.bf16.xpose.msra.mxu0 0
      %1549 = vmatpush.bf16.xpose.msra.mxu0 %v1540
      %1550 = vmatmul.bf16.gmra.mxu0 %v1537
      %v1551 = vpop.f32.mrf.mxu0
      %v1552 = vadd.f32 0.0, %v1551
      %v1553 = vpop.f32.mrf.mxu0
      %1554 = vdwg.mxu0
      %v1555 = vmul.f32 %v1552, 0.35355338
      %v1556 = vsel %vm1372, %v1555, -1e+09
      %v1557 = vsel %vm1374, %v1556, -inf
      %1558 = vmax.xlane.f32.xlu0 %v1557
      %v1559 = vpop.xlane.xlu0 %1558
      %v1560 = vsub.f32 %v1556, %v1559
      %v1561 = vmul.f32 %v1560, 1.442695
      %v1562 = vpow.pop %v1561
      %v1563 = vsel %vm1374, %v1562, 0.0
      %1564 = vadd.xlane.f32.xlu0 %v1563
      %v1565 = vpop.xlane.xlu0 %1564
      %v1566 = vrcp.pop %v1565
      %v1567 = vmul.f32 %v1562, %v1566
      %v1568 = vpack.c.bf16 %v1567, %v1567
      %1569 = vrot.lane.b32.xlu0 %v1349, 72
      %v1570 = vpop.permute.xlu0 %1569
      %v1573 = vsel %vm1374, %v1568, 0
      %1575 = vmatpush.bf16.msra.mxu0 0
      %1576 = vmatpush.bf16.msra.mxu0 0
      %1577 = vmatpush.bf16.msra.mxu0 0
      %1578 = vmatpush.bf16.msra.mxu0 0
      %1579 = vmatpush.bf16.msra.mxu0 0
      %1580 = vmatpush.bf16.msra.mxu0 0
      %1581 = vmatpush.bf16.msra.mxu0 0
      %1582 = vmatpush.bf16.msra.mxu0 %v1570
      %1583 = vmatmul.bf16.gmra.mxu0 %v1573
      %v1584 = vpop.f32.mrf.mxu0
      %v1585 = vadd.f32 0.0, %v1584
      %v1586 = vpop.f32.mrf.mxu0
      %1587 = vdwg.mxu0
      %1589 = vrot.lane.b32.xlu0 %v1585, 24
      %v1590 = vpop.permute.xlu0 %1589
      %1592 = vst.msk [vmem:[#allocation2] sm:$0xff] %vm1181, %v1590
      %v1593 = vld [vmem:[#allocation2] sm:$0xff]
      %v1594 = vpack.c.bf16 %v1593, %v1593
      %v1596 = vperm.slane %v1273, 0
      %v1602 = vunpack.c.l.b16 %v1269
      %v1603 = vunpack.c.l.b16 %v1270
      %v1604 = vunpack.c.l.b16 %v1271
      %v1605 = vunpack.c.l.b16 %v1272
      %v1606 = vpack.c.b16 %v1603, %v1602
      %v1607 = vpack.c.b16 %v1605, %v1604
      %v1611 = vsel %vm881, %v1594, 0
      %1613 = vmatpush.bf16.msra.mxu0 0
      %1614 = vmatpush.bf16.msra.mxu0 0
      %1615 = vmatpush.bf16.msra.mxu0 0
      %1616 = vmatpush.bf16.msra.mxu0 0
      %1617 = vmatpush.bf16.msra.mxu0 0
      %1618 = vmatpush.bf16.msra.mxu0 0
      %1619 = vmatpush.bf16.msra.mxu0 %v1607
      %1620 = vmatpush.bf16.msra.mxu0 %v1606
      %1621 = vmatmul.bf16.gmra.mxu0 %v1611
      %v1622 = vpop.f32.mrf.mxu0
      %v1623 = vadd.f32 %v1596, %v1622
      %v1624 = vpop.f32.mrf.mxu0
      %1625 = vdwg.mxu0
      %v1626 = vld [vmem:[%s18] sm:$0x1]
      %v1627 = vld [vmem:[%s19] sm:$0x1]
      %v1628 = vadd.f32 %v1255, %v1623
      %v1629 = vsel %vm881, %v1628, 0.0
      %1630 = vadd.xlane.f32.xlu0 %v1629
      %v1631 = vpop.xlane.xlu0 %1630
      %v1632 = vmul.f32 %v1631, %v1228
      %v1633 = vsub.f32 %v1628, %v1632
      %v1634 = vmul.f32 %v1633, %v1633
      %v1635 = vsel %vm881, %v1634, 0.0
      %1636 = vadd.xlane.f32.xlu0 %v1635
      %v1637 = vpop.xlane.xlu0 %1636
      %v1638 = vmul.f32 %v1637, %v1228
      %v1639 = vadd.f32 %v1638, 1e-05
      %v1640 = vrsqrt.pop %v1639
      %v1641 = vmul.f32 %v1640, %v1639
      %v1642 = vmul.f32 %v1641, %v1640
      %v1643 = vmul.f32 0.5, %v1642
      %v1644 = vsub.f32 1.5, %v1643
      %v1645 = vmul.f32 %v1640, %v1644
      %vm1646 = vweird.f32 %v1639
      %vm1647 = vweird.f32 %v1640
      %vm1648 = vmor %vm1646, %vm1647
      %v1649 = vsel %vm1648, %v1640, %v1645
      %v1650 = vmul.f32 %v1633, %v1649
      %v1652 = vperm.slane %v1626, 0
      %v1654 = vmul.f32 %v1650, %v1652
      %v1656 = vperm.slane %v1627, 0
      %v1658 = vadd.f32 %v1654, %v1656
      %v1659 = vpack.c.bf16 %v1658, %v1658
      %v1660 = vld [vmem:[%s20] sm:$0xf]
      %v1661 = vld [vmem:[%s20 + $0x4] sm:$0xf]
      %v1662 = vld [vmem:[%s20 + $0x8] sm:$0xf]
      %v1663 = vld [vmem:[%s20 + $0xc] sm:$0xf]
      %v1664 = vld [vmem:[%s21] sm:$0x1]
      %v1666 = vperm.slane %v1664, 0
      %v1672 = vunpack.c.l.b16 %v1660
      %v1673 = vunpack.c.l.b16 %v1661
      %v1674 = vunpack.c.l.b16 %v1662
      %v1675 = vunpack.c.l.b16 %v1663
      %v1676 = vpack.c.b16 %v1673, %v1672
      %v1677 = vpack.c.b16 %v1675, %v1674
      %v1681 = vsel %vm881, %v1659, 0
      %1683 = vmatpush.bf16.msra.mxu0 0
      %1684 = vmatpush.bf16.msra.mxu0 0
      %1685 = vmatpush.bf16.msra.mxu0 0
      %1686 = vmatpush.bf16.msra.mxu0 0
      %1687 = vmatpush.bf16.msra.mxu0 0
      %1688 = vmatpush.bf16.msra.mxu0 0
      %1689 = vmatpush.bf16.msra.mxu0 %v1677
      %1690 = vmatpush.bf16.msra.mxu0 %v1676
      %1691 = vmatmul.bf16.gmra.mxu0 %v1681
      %v1692 = vpop.f32.mrf.mxu0
      %v1693 = vadd.f32 %v1666, %v1692
      %v1694 = vpop.f32.mrf.mxu0
      %1695 = vdwg.mxu0
      %v1696 = vmax.f32 %v1693, 0.0
      %v1697 = vpack.c.bf16 %v1696, %v1696
      %v1698 = vld [vmem:[%s22] sm:$0xf]
      %v1699 = vld [vmem:[%s22 + $0x4] sm:$0xf]
      %v1700 = vld [vmem:[%s22 + $0x8] sm:$0xf]
      %v1701 = vld [vmem:[%s22 + $0xc] sm:$0xf]
      %v1702 = vld [vmem:[%s22 + $0x10] sm:$0xf]
      %v1703 = vld [vmem:[%s22 + $0x14] sm:$0xf]
      %v1704 = vld [vmem:[%s22 + $0x18] sm:$0xf]
      %v1705 = vld [vmem:[%s22 + $0x1c] sm:$0xf]
      %v1706 = vld [vmem:[%s23] sm:$0x1]
      %v1708 = vperm.slane %v1706, 0
      %v1718 = vunpack.c.l.b16 %v1698
      %v1719 = vunpack.c.l.b16 %v1699
      %v1720 = vunpack.c.l.b16 %v1700
      %v1721 = vunpack.c.l.b16 %v1701
      %v1722 = vunpack.c.l.b16 %v1702
      %v1723 = vunpack.c.l.b16 %v1703
      %v1724 = vunpack.c.l.b16 %v1704
      %v1725 = vunpack.c.l.b16 %v1705
      %v1726 = vpack.c.b16 %v1719, %v1718
      %v1727 = vpack.c.b16 %v1721, %v1720
      %v1728 = vpack.c.b16 %v1723, %v1722
      %v1729 = vpack.c.b16 %v1725, %v1724
      %vm1734 = vcmask 523264
      %v1736 = vsel %vm1734, %v1697, 0
      %1738 = vmatpush.bf16.msra.mxu0 0
      %1739 = vmatpush.bf16.msra.mxu0 0
      %1740 = vmatpush.bf16.msra.mxu0 0
      %1741 = vmatpush.bf16.msra.mxu0 0
      %1742 = vmatpush.bf16.msra.mxu0 %v1729
      %1743 = vmatpush.bf16.msra.mxu0 %v1728
      %1744 = vmatpush.bf16.msra.mxu0 %v1727
      %1745 = vmatpush.bf16.msra.mxu0 %v1726
      %1746 = vmatmul.bf16.gmra.mxu0 %v1736
      %v1747 = vpop.f32.mrf.mxu0
      %v1748 = vadd.f32 %v1708, %v1747
      %v1749 = vpop.f32.mrf.mxu0
      %1750 = vdwg.mxu0
      %v1751 = vld [vmem:[%s24] sm:$0x1]
      %v1752 = vld [vmem:[%s25] sm:$0x1]
      %v1753 = vadd.f32 %v1658, %v1748
      %v1754 = vsel %vm881, %v1753, 0.0
      %1755 = vadd.xlane.f32.xlu0 %v1754
      %v1756 = vpop.xlane.xlu0 %1755
      %v1757 = vmul.f32 %v1756, %v1228
      %v1758 = vsub.f32 %v1753, %v1757
      %v1759 = vmul.f32 %v1758, %v1758
      %v1760 = vsel %vm881, %v1759, 0.0
      %1761 = vadd.xlane.f32.xlu0 %v1760
      %v1762 = vpop.xlane.xlu0 %1761
      %v1763 = vmul.f32 %v1762, %v1228
      %v1764 = vadd.f32 %v1763, 1e-05
      %v1765 = vrsqrt.pop %v1764
      %v1766 = vmul.f32 %v1765, %v1764
      %v1767 = vmul.f32 %v1766, %v1765
      %v1768 = vmul.f32 0.5, %v1767
      %v1769 = vsub.f32 1.5, %v1768
      %v1770 = vmul.f32 %v1765, %v1769
      %vm1771 = vweird.f32 %v1764
      %vm1772 = vweird.f32 %v1765
      %vm1773 = vmor %vm1771, %vm1772
      %v1774 = vsel %vm1773, %v1765, %v1770
      %v1775 = vmul.f32 %v1758, %v1774
      %v1777 = vperm.slane %v1751, 0
      %v1779 = vmul.f32 %v1775, %v1777
      %v1781 = vperm.slane %v1752, 0
      %v1783 = vadd.f32 %v1779, %v1781
      %1784 = vst.msk [vmem:[%s834] sm:$0xff] %vm881, %v1783
      %p1785 = scmp.lt.s32.totalorder %s37, 1
      %s1786 = scalar_select %p1785, %s37, 1
      %s1787 = smul.addr %s1786, 8
      %s1788 = scalar_lea.vmem %s26, %s1787
      // Predicated region
      $region125: #{transformer_decoder_forward.3} parent=123 // pred_check
        %p1789 = pneg %p621
      $region126: #{transformer_decoder_forward.3} parent=123 // pred_check_branch
        %1791 = sbr.rel (%p1789) target = $region128
      $region127: #{transformer_decoder_forward.3} parent=123 // pred_region
        _
      $region128: #{transformer_decoder_forward.3} parent=123 // pred_fallthru
        _
    $region124: #{transformer_decoder_forward.3} parent=5 // pred_fallthru
      _
    %p1792 = scmp.le.s32.totalorder 2, %s32
    // Predicated region
    $region129: #{transformer_decoder_forward.3} parent=5 // pred_check
      %p1793 = pneg %p1792
    $region130: #{transformer_decoder_forward.3} parent=5 // pred_check_branch
      %1795 = sbr.rel (%p1793) target = $region132
    $region131: #{transformer_decoder_forward.3} parent=5 // pred_region
      %s1796 = ssub.s32 %s32, 2
      // Predicated region
      $region133: #{transformer_decoder_forward.3} parent=131 // pred_check
        %p1797 = pneg %p627
      $region134: #{transformer_decoder_forward.3} parent=131 // pred_check_branch
        %1799 = sbr.rel (%p1797) target = $region136
      $region135: #{transformer_decoder_forward.3} parent=131 // pred_region
        %p1800 = scmp.lt.s32.totalorder %s38, 1
        %s1801 = scalar_select %p1800, %s38, 1
        %s1802 = smul.addr %s1801, 8
        %s1803 = scalar_lea.vmem %s26, %s1802
      $region136: #{transformer_decoder_forward.3} parent=131 // pred_fallthru
        _
    $region132: #{transformer_decoder_forward.3} parent=5 // pred_fallthru
      _
  $region6: #{transformer_decoder_forward.3} parent=0 // loop_footer
    %s36 = sadd.s32 1, %s32
  $region7: #{transformer_decoder_forward.3} parent=0 // loop_footer_branch
    %31 = sbr.rel target = $region3
  $region8: #{transformer_decoder_forward.3} parent=0 // loop_exit
    _

// kernel: transformer_decoder_forward.4
$region0: #{transformer_decoder_forward.4}
  #allocation0 [shape = 'u32[]', space=smem, size = 0x4, offset = 0x4, fixed_abs, tag = 'smem constant byte address 0x4 - core index']
  #allocation1 [shape = 'u32[72,128]{1,0:T(1,128)}', space=vmem, size = 0x9000, scoped, tag = 'internal scratch']
  #allocation2 [shape = 'f32[8,32]{1,0:T(8,128)}', space=vmem, size = 0x1000, scoped, tag = 'scratch operand']
  %s0 = inlined_call_operand.vmem [shape: f32[2,8,32], index: 0, kind: input, shape index: {}]
  %s1 = inlined_call_operand.vmem [shape: bf16[2,16,32], index: 1, kind: input, shape index: {}]
  %s2 = inlined_call_operand.vmem [shape: f32[2,1,8], index: 2, kind: input, shape index: {}]
  %s3 = inlined_call_operand.vmem [shape: f32[2,1,16], index: 3, kind: input, shape index: {}]
  %s4 = inlined_call_operand.vmem [shape: bf16[32,32], index: 4, kind: input, shape index: {}]
  %s5 = inlined_call_operand.vmem [shape: f32[1,32], index: 5, kind: input, shape index: {}]
  %s6 = inlined_call_operand.vmem [shape: bf16[32,64], index: 6, kind: input, shape index: {}]
  %s7 = inlined_call_operand.vmem [shape: f32[1,64], index: 7, kind: input, shape index: {}]
  %s8 = inlined_call_operand.vmem [shape: bf16[32,32], index: 8, kind: input, shape index: {}]
  %s9 = inlined_call_operand.vmem [shape: f32[1,32], index: 9, kind: input, shape index: {}]
  %s10 = inlined_call_operand.vmem [shape: f32[1,32], index: 10, kind: input, shape index: {}]
  %s11 = inlined_call_operand.vmem [shape: f32[1,32], index: 11, kind: input, shape index: {}]
  %s12 = inlined_call_operand.vmem [shape: bf16[32,32], index: 12, kind: input, shape index: {}]
  %s13 = inlined_call_operand.vmem [shape: f32[1,32], index: 13, kind: input, shape index: {}]
  %s14 = inlined_call_operand.vmem [shape: bf16[32,64], index: 14, kind: input, shape index: {}]
  %s15 = inlined_call_operand.hbm [shape: f32[1,64], index: 15, kind: input, shape index: {}]
  %s16 = inlined_call_operand.vmem [shape: bf16[32,32], index: 16, kind: input, shape index: {}]
  %s17 = inlined_call_operand.hbm [shape: f32[1,32], index: 17, kind: input, shape index: {}]
  %s18 = inlined_call_operand.hbm [shape: f32[1,32], index: 18, kind: input, shape index: {}]
  %s19 = inlined_call_operand.hbm [shape: f32[1,32], index: 19, kind: input, shape index: {}]
  %s20 = inlined_call_operand.vmem [shape: bf16[32,64], index: 20, kind: input, shape index: {}]
  %s21 = inlined_call_operand.hbm [shape: f32[1,64], index: 21, kind: input, shape index: {}]
  %s22 = inlined_call_operand.vmem [shape: bf16[64,32], index: 22, kind: input, shape index: {}]
  %s23 = inlined_call_operand.hbm [shape: f32[1,32], index: 23, kind: input, shape index: {}]
  %s24 = inlined_call_operand.hbm [shape: f32[1,32], index: 24, kind: input, shape index: {}]
  %s25 = inlined_call_operand.hbm [shape: f32[1,32], index: 25, kind: input, shape index: {}]
  %s26 = inlined_call_operand.vmem [shape: f32[2,8,32], index: 26, kind: output, shape index: {}]
  %s27 = sld [smem:[#allocation0]]
  $region169: #{transformer_decoder_forward.4} parent=0
    _
  %s29 = ssub.s32 1, %s27
  %s30 = scalar_select 0, %s29, %s27
  $region1: #{transformer_decoder_forward.4} parent=0
    #allocation3 [shape = 'u8[512]{0}', space=vmem, size = 0x400, scoped, tag = 'input window, operand 15, single buffered']
    #allocation4 [shape = 's32[2]{0}', space=sflag, size = 0x8, scoped, tag = 'scoped memory for transformer_decoder_forward.4']
    #allocation5 [shape = 'u8[512]{0}', space=vmem, size = 0x400, scoped, tag = 'input window, operand 17, single buffered']
    #allocation6 [shape = 's32[1]{0}', space=sflag, size = 0x4, scoped, tag = 'scoped memory for transformer_decoder_forward.4']
    #allocation7 [shape = 'u8[512]{0}', space=vmem, size = 0x400, scoped, tag = 'input window, operand 18, single buffered']
    #allocation8 [shape = 'u8[512]{0}', space=vmem, size = 0x400, scoped, tag = 'input window, operand 19, single buffered']
    #allocation9 [shape = 's32[1]{0}', space=sflag, size = 0x4, scoped, tag = 'scoped memory for transformer_decoder_forward.4']
    #allocation10 [shape = 'u8[512]{0}', space=vmem, size = 0x400, scoped, tag = 'input window, operand 21, single buffered']
    #allocation11 [shape = 'u8[512]{0}', space=vmem, size = 0x400, scoped, tag = 'input window, operand 23, single buffered']
    #allocation12 [shape = 's32[1]{0}', space=sflag, size = 0x4, scoped, tag = 'scoped memory for transformer_decoder_forward.4']
    #allocation13 [shape = 'u8[512]{0}', space=vmem, size = 0x400, scoped, tag = 'input window, operand 24, single buffered']
    #allocation14 [shape = 'u8[512]{0}', space=vmem, size = 0x400, scoped, tag = 'input window, operand 25, single buffered']
    #allocation15 [shape = 's32[1]{0}', space=sflag, size = 0x4, scoped, tag = 'scoped memory for transformer_decoder_forward.4']
    %31 = vsyncpa [#allocation4], 0
    %32 = vsyncpa [#allocation6], 0
    %33 = vsyncpa [#allocation9], 0
    %34 = vsyncpa [#allocation12], 0
    %35 = vsyncpa [#allocation15], 0
    loop: start=0, step=1, limit=4
    $region2: #{transformer_decoder_forward.4} parent=1 // loop_pre_header
      _
    $region3: #{transformer_decoder_forward.4} parent=1 // loop_header
      %s37 = sphi 0, %s41
      %p38 = scmp.ge.s32.totalorder %s37, 4
      %s47 = sphi 0, %s49
      %s50 = sphi 0, %s47
      %s51 = sphi 0, %s50
      %s67 = sphi 0, %s51
      %s73 = sphi 0, %s75
      %s76 = sphi 0, %s73
      %s77 = sphi 0, %s76
      %s93 = sphi 0, %s77
      %s99 = sphi 0, %s101
      %s102 = sphi 0, %s99
      %s103 = sphi 0, %s102
      %s119 = sphi 0, %s103
      %s125 = sphi 0, %s127
      %s128 = sphi 0, %s125
      %s129 = sphi 0, %s128
      %s145 = sphi 0, %s129
      %s149 = sphi 0, %s149
      %s151 = sphi 0, %s149
      %s152 = sphi 0, %s151
      %s166 = sphi 0, %s152
      %s170 = sphi 0, %s170
      %s172 = sphi 0, %s170
      %s173 = sphi 0, %s172
      %s187 = sphi 0, %s173
      %s191 = sphi 0, %s191
      %s193 = sphi 0, %s191
      %s194 = sphi 0, %s193
      %s208 = sphi 0, %s194
      %s212 = sphi 0, %s212
      %s214 = sphi 0, %s212
      %s215 = sphi 0, %s214
      %s229 = sphi 0, %s215
      %s233 = sphi 0, %s233
      %s235 = sphi 0, %s233
      %s236 = sphi 0, %s235
      %s250 = sphi 0, %s236
      %s254 = sphi 0, %s254
      %s256 = sphi 0, %s254
      %s257 = sphi 0, %s256
      %s271 = sphi 0, %s257
      %s275 = sphi 0, %s275
      %s277 = sphi 0, %s275
      %s278 = sphi 0, %s277
      %s292 = sphi 0, %s278
      %s296 = sphi 0, %s296
      %s298 = sphi 0, %s296
      %s299 = sphi 0, %s298
      %s313 = sphi 0, %s299
      %s317 = sphi 0, %s317
      %s319 = sphi 0, %s317
      %s320 = sphi 0, %s319
      %s334 = sphi 0, %s320
      %s338 = sphi 0, %s338
      %s340 = sphi 0, %s338
      %s341 = sphi 0, %s340
      %s355 = sphi 0, %s341
      %s359 = sphi 0, %s359
      %s361 = sphi 0, %s359
      %s362 = sphi 0, %s361
      %s376 = sphi 0, %s362
      %s380 = sphi 0, %s380
      %s382 = sphi 0, %s380
      %s383 = sphi 0, %s382
      %s397 = sphi 0, %s383
      %s401 = sphi 0, %s401
      %s403 = sphi 0, %s401
      %s404 = sphi 0, %s403
      %s418 = sphi 0, %s404
      %s422 = sphi 0, %s422
      %s424 = sphi 0, %s422
      %s425 = sphi 0, %s424
      %s439 = sphi 0, %s425
      %s443 = sphi 0, %s443
      %s445 = sphi 0, %s443
      %s446 = sphi 0, %s445
      %s460 = sphi 0, %s446
      %s464 = sphi 0, %s464
      %s466 = sphi 0, %s464
      %s467 = sphi 0, %s466
      %s481 = sphi 0, %s467
      %s485 = sphi 0, %s485
      %s487 = sphi 0, %s485
      %s488 = sphi 0, %s487
      %s502 = sphi 0, %s488
      %s506 = sphi 0, %s506
      %s508 = sphi 0, %s506
      %s509 = sphi 0, %s508
      %s523 = sphi 0, %s509
      %s527 = sphi 0, %s527
      %s529 = sphi 0, %s527
      %s530 = sphi 0, %s529
      %s544 = sphi 0, %s530
      %s548 = sphi 0, %s548
      %s550 = sphi 0, %s548
      %s551 = sphi 0, %s550
      %s565 = sphi 0, %s551
      %s569 = sphi 0, %s569
      %s571 = sphi 0, %s569
      %s572 = sphi 0, %s571
      %s586 = sphi 0, %s572
      %s590 = sphi 0, %s590
      %s592 = sphi 0, %s590
      %s593 = sphi 0, %s592
      %s607 = sphi 0, %s593
      %s613 = sphi 0, %s615
      %s616 = sphi 0, %s613
      %s617 = sphi 0, %s616
      %s633 = sphi 0, %s617
    $region4: #{transformer_decoder_forward.4} parent=1 // loop_header_branch
      %40 = sbr.rel (%p38) target = $region8
    $region5: #{transformer_decoder_forward.4} parent=1 // loop_body
      %s42 = ssub.s32 %s37, 1
      %s43 = ssub.s32 %s37, 2
      %s44 = sadd.s32 %s37, 1
      %s45 = ssub.s32 %s37, %s44
      %p46 = scmp.eq.s32.totalorder %s45, 0
      %s48 = sadd.s32 %s47, 1
      %s49 = scalar_select %p46, %s47, %s48
      %p52 = pneg %p46
      %p53 = scmp.eq.s32.totalorder %s37, 1
      %p54 = por %p52, %p53
      %p55 = scmp.ne.s32.totalorder %s47, %s50
      %p56 = scmp.eq.s32.totalorder %s37, 0
      %p57 = por %p55, %p56
      %p58 = scmp.ne.s32.totalorder %s47, %s50
      %p59 = scmp.eq.s32.totalorder %s42, 1
      %p60 = por %p58, %p59
      %p61 = scmp.ne.s32.totalorder %s50, %s51
      %p62 = scmp.eq.s32.totalorder %s42, 0
      %p63 = por %p61, %p62
      %p64 = scmp.ne.s32.totalorder %s50, %s51
      %p65 = scmp.eq.s32.totalorder %s43, 1
      %p66 = por %p64, %p65
      %p68 = scmp.ne.s32.totalorder %s51, %s67
      %p69 = scmp.eq.s32.totalorder %s43, 0
      %p70 = por %p68, %p69
      %s71 = ssub.s32 %s37, %s44
      %p72 = scmp.eq.s32.totalorder %s71, 0
      %s74 = sadd.s32 %s73, 1
      %s75 = scalar_select %p72, %s73, %s74
      %p78 = pneg %p72
      %p79 = scmp.eq.s32.totalorder %s37, 1
      %p80 = por %p78, %p79
      %p81 = scmp.ne.s32.totalorder %s73, %s76
      %p82 = scmp.eq.s32.totalorder %s37, 0
      %p83 = por %p81, %p82
      %p84 = scmp.ne.s32.totalorder %s73, %s76
      %p85 = scmp.eq.s32.totalorder %s42, 1
      %p86 = por %p84, %p85
      %p87 = scmp.ne.s32.totalorder %s76, %s77
      %p88 = scmp.eq.s32.totalorder %s42, 0
      %p89 = por %p87, %p88
      %p90 = scmp.ne.s32.totalorder %s76, %s77
      %p91 = scmp.eq.s32.totalorder %s43, 1
      %p92 = por %p90, %p91
      %p94 = scmp.ne.s32.totalorder %s77, %s93
      %p95 = scmp.eq.s32.totalorder %s43, 0
      %p96 = por %p94, %p95
      %s97 = ssub.s32 %s37, %s44
      %p98 = scmp.eq.s32.totalorder %s97, 0
      %s100 = sadd.s32 %s99, 1
      %s101 = scalar_select %p98, %s99, %s100
      %p104 = pneg %p98
      %p105 = scmp.eq.s32.totalorder %s37, 1
      %p106 = por %p104, %p105
      %p107 = scmp.ne.s32.totalorder %s99, %s102
      %p108 = scmp.eq.s32.totalorder %s37, 0
      %p109 = por %p107, %p108
      %p110 = scmp.ne.s32.totalorder %s99, %s102
      %p111 = scmp.eq.s32.totalorder %s42, 1
      %p112 = por %p110, %p111
      %p113 = scmp.ne.s32.totalorder %s102, %s103
      %p114 = scmp.eq.s32.totalorder %s42, 0
      %p115 = por %p113, %p114
      %p116 = scmp.ne.s32.totalorder %s102, %s103
      %p117 = scmp.eq.s32.totalorder %s43, 1
      %p118 = por %p116, %p117
      %p120 = scmp.ne.s32.totalorder %s103, %s119
      %p121 = scmp.eq.s32.totalorder %s43, 0
      %p122 = por %p120, %p121
      %s123 = ssub.s32 %s37, %s44
      %p124 = scmp.eq.s32.totalorder %s123, 0
      %s126 = sadd.s32 %s125, 1
      %s127 = scalar_select %p124, %s125, %s126
      %p130 = pneg %p124
      %p131 = scmp.eq.s32.totalorder %s37, 1
      %p132 = por %p130, %p131
      %p133 = scmp.ne.s32.totalorder %s125, %s128
      %p134 = scmp.eq.s32.totalorder %s37, 0
      %p135 = por %p133, %p134
      %p136 = scmp.ne.s32.totalorder %s125, %s128
      %p137 = scmp.eq.s32.totalorder %s42, 1
      %p138 = por %p136, %p137
      %p139 = scmp.ne.s32.totalorder %s128, %s129
      %p140 = scmp.eq.s32.totalorder %s42, 0
      %p141 = por %p139, %p140
      %p142 = scmp.ne.s32.totalorder %s128, %s129
      %p143 = scmp.eq.s32.totalorder %s43, 1
      %p144 = por %p142, %p143
      %p146 = scmp.ne.s32.totalorder %s129, %s145
      %p147 = scmp.eq.s32.totalorder %s43, 0
      %p148 = por %p146, %p147
      %s150 = sadd.s32 %s149, 1
      %p153 = scmp.eq.s32.totalorder %s37, 1
      %p154 = scmp.ne.s32.totalorder %s149, %s151
      %p155 = scmp.eq.s32.totalorder %s37, 0
      %p156 = por %p154, %p155
      %p157 = scmp.ne.s32.totalorder %s149, %s151
      %p158 = scmp.eq.s32.totalorder %s42, 1
      %p159 = por %p157, %p158
      %p160 = scmp.ne.s32.totalorder %s151, %s152
      %p161 = scmp.eq.s32.totalorder %s42, 0
      %p162 = por %p160, %p161
      %p163 = scmp.ne.s32.totalorder %s151, %s152
      %p164 = scmp.eq.s32.totalorder %s43, 1
      %p165 = por %p163, %p164
      %p167 = scmp.ne.s32.totalorder %s152, %s166
      %p168 = scmp.eq.s32.totalorder %s43, 0
      %p169 = por %p167, %p168
      %s171 = sadd.s32 %s170, 1
      %p174 = scmp.eq.s32.totalorder %s37, 1
      %p175 = scmp.ne.s32.totalorder %s170, %s172
      %p176 = scmp.eq.s32.totalorder %s37, 0
      %p177 = por %p175, %p176
      %p178 = scmp.ne.s32.totalorder %s170, %s172
      %p179 = scmp.eq.s32.totalorder %s42, 1
      %p180 = por %p178, %p179
      %p181 = scmp.ne.s32.totalorder %s172, %s173
      %p182 = scmp.eq.s32.totalorder %s42, 0
      %p183 = por %p181, %p182
      %p184 = scmp.ne.s32.totalorder %s172, %s173
      %p185 = scmp.eq.s32.totalorder %s43, 1
      %p186 = por %p184, %p185
      %p188 = scmp.ne.s32.totalorder %s173, %s187
      %p189 = scmp.eq.s32.totalorder %s43, 0
      %p190 = por %p188, %p189
      %s192 = sadd.s32 %s191, 1
      %p195 = scmp.eq.s32.totalorder %s37, 1
      %p196 = scmp.ne.s32.totalorder %s191, %s193
      %p197 = scmp.eq.s32.totalorder %s37, 0
      %p198 = por %p196, %p197
      %p199 = scmp.ne.s32.totalorder %s191, %s193
      %p200 = scmp.eq.s32.totalorder %s42, 1
      %p201 = por %p199, %p200
      %p202 = scmp.ne.s32.totalorder %s193, %s194
      %p203 = scmp.eq.s32.totalorder %s42, 0
      %p204 = por %p202, %p203
      %p205 = scmp.ne.s32.totalorder %s193, %s194
      %p206 = scmp.eq.s32.totalorder %s43, 1
      %p207 = por %p205, %p206
      %p209 = scmp.ne.s32.totalorder %s194, %s208
      %p210 = scmp.eq.s32.totalorder %s43, 0
      %p211 = por %p209, %p210
      %s213 = sadd.s32 %s212, 1
      %p216 = scmp.eq.s32.totalorder %s37, 1
      %p217 = scmp.ne.s32.totalorder %s212, %s214
      %p218 = scmp.eq.s32.totalorder %s37, 0
      %p219 = por %p217, %p218
      %p220 = scmp.ne.s32.totalorder %s212, %s214
      %p221 = scmp.eq.s32.totalorder %s42, 1
      %p222 = por %p220, %p221
      %p223 = scmp.ne.s32.totalorder %s214, %s215
      %p224 = scmp.eq.s32.totalorder %s42, 0
      %p225 = por %p223, %p224
      %p226 = scmp.ne.s32.totalorder %s214, %s215
      %p227 = scmp.eq.s32.totalorder %s43, 1
      %p228 = por %p226, %p227
      %p230 = scmp.ne.s32.totalorder %s215, %s229
      %p231 = scmp.eq.s32.totalorder %s43, 0
      %p232 = por %p230, %p231
      %s234 = sadd.s32 %s233, 1
      %p237 = scmp.eq.s32.totalorder %s37, 1
      %p238 = scmp.ne.s32.totalorder %s233, %s235
      %p239 = scmp.eq.s32.totalorder %s37, 0
      %p240 = por %p238, %p239
      %p241 = scmp.ne.s32.totalorder %s233, %s235
      %p242 = scmp.eq.s32.totalorder %s42, 1
      %p243 = por %p241, %p242
      %p244 = scmp.ne.s32.totalorder %s235, %s236
      %p245 = scmp.eq.s32.totalorder %s42, 0
      %p246 = por %p244, %p245
      %p247 = scmp.ne.s32.totalorder %s235, %s236
      %p248 = scmp.eq.s32.totalorder %s43, 1
      %p249 = por %p247, %p248
      %p251 = scmp.ne.s32.totalorder %s236, %s250
      %p252 = scmp.eq.s32.totalorder %s43, 0
      %p253 = por %p251, %p252
      %s255 = sadd.s32 %s254, 1
      %p258 = scmp.eq.s32.totalorder %s37, 1
      %p259 = scmp.ne.s32.totalorder %s254, %s256
      %p260 = scmp.eq.s32.totalorder %s37, 0
      %p261 = por %p259, %p260
      %p262 = scmp.ne.s32.totalorder %s254, %s256
      %p263 = scmp.eq.s32.totalorder %s42, 1
      %p264 = por %p262, %p263
      %p265 = scmp.ne.s32.totalorder %s256, %s257
      %p266 = scmp.eq.s32.totalorder %s42, 0
      %p267 = por %p265, %p266
      %p268 = scmp.ne.s32.totalorder %s256, %s257
      %p269 = scmp.eq.s32.totalorder %s43, 1
      %p270 = por %p268, %p269
      %p272 = scmp.ne.s32.totalorder %s257, %s271
      %p273 = scmp.eq.s32.totalorder %s43, 0
      %p274 = por %p272, %p273
      %s276 = sadd.s32 %s275, 1
      %p279 = scmp.eq.s32.totalorder %s37, 1
      %p280 = scmp.ne.s32.totalorder %s275, %s277
      %p281 = scmp.eq.s32.totalorder %s37, 0
      %p282 = por %p280, %p281
      %p283 = scmp.ne.s32.totalorder %s275, %s277
      %p284 = scmp.eq.s32.totalorder %s42, 1
      %p285 = por %p283, %p284
      %p286 = scmp.ne.s32.totalorder %s277, %s278
      %p287 = scmp.eq.s32.totalorder %s42, 0
      %p288 = por %p286, %p287
      %p289 = scmp.ne.s32.totalorder %s277, %s278
      %p290 = scmp.eq.s32.totalorder %s43, 1
      %p291 = por %p289, %p290
      %p293 = scmp.ne.s32.totalorder %s278, %s292
      %p294 = scmp.eq.s32.totalorder %s43, 0
      %p295 = por %p293, %p294
      %s297 = sadd.s32 %s296, 1
      %p300 = scmp.eq.s32.totalorder %s37, 1
      %p301 = scmp.ne.s32.totalorder %s296, %s298
      %p302 = scmp.eq.s32.totalorder %s37, 0
      %p303 = por %p301, %p302
      %p304 = scmp.ne.s32.totalorder %s296, %s298
      %p305 = scmp.eq.s32.totalorder %s42, 1
      %p306 = por %p304, %p305
      %p307 = scmp.ne.s32.totalorder %s298, %s299
      %p308 = scmp.eq.s32.totalorder %s42, 0
      %p309 = por %p307, %p308
      %p310 = scmp.ne.s32.totalorder %s298, %s299
      %p311 = scmp.eq.s32.totalorder %s43, 1
      %p312 = por %p310, %p311
      %p314 = scmp.ne.s32.totalorder %s299, %s313
      %p315 = scmp.eq.s32.totalorder %s43, 0
      %p316 = por %p314, %p315
      %s318 = sadd.s32 %s317, 1
      %p321 = scmp.eq.s32.totalorder %s37, 1
      %p322 = scmp.ne.s32.totalorder %s317, %s319
      %p323 = scmp.eq.s32.totalorder %s37, 0
      %p324 = por %p322, %p323
      %p325 = scmp.ne.s32.totalorder %s317, %s319
      %p326 = scmp.eq.s32.totalorder %s42, 1
      %p327 = por %p325, %p326
      %p328 = scmp.ne.s32.totalorder %s319, %s320
      %p329 = scmp.eq.s32.totalorder %s42, 0
      %p330 = por %p328, %p329
      %p331 = scmp.ne.s32.totalorder %s319, %s320
      %p332 = scmp.eq.s32.totalorder %s43, 1
      %p333 = por %p331, %p332
      %p335 = scmp.ne.s32.totalorder %s320, %s334
      %p336 = scmp.eq.s32.totalorder %s43, 0
      %p337 = por %p335, %p336
      %s339 = sadd.s32 %s338, 1
      %p342 = scmp.eq.s32.totalorder %s37, 1
      %p343 = scmp.ne.s32.totalorder %s338, %s340
      %p344 = scmp.eq.s32.totalorder %s37, 0
      %p345 = por %p343, %p344
      %p346 = scmp.ne.s32.totalorder %s338, %s340
      %p347 = scmp.eq.s32.totalorder %s42, 1
      %p348 = por %p346, %p347
      %p349 = scmp.ne.s32.totalorder %s340, %s341
      %p350 = scmp.eq.s32.totalorder %s42, 0
      %p351 = por %p349, %p350
      %p352 = scmp.ne.s32.totalorder %s340, %s341
      %p353 = scmp.eq.s32.totalorder %s43, 1
      %p354 = por %p352, %p353
      %p356 = scmp.ne.s32.totalorder %s341, %s355
      %p357 = scmp.eq.s32.totalorder %s43, 0
      %p358 = por %p356, %p357
      %s360 = sadd.s32 %s359, 1
      %p363 = scmp.eq.s32.totalorder %s37, 1
      %p364 = scmp.ne.s32.totalorder %s359, %s361
      %p365 = scmp.eq.s32.totalorder %s37, 0
      %p366 = por %p364, %p365
      %p367 = scmp.ne.s32.totalorder %s359, %s361
      %p368 = scmp.eq.s32.totalorder %s42, 1
      %p369 = por %p367, %p368
      %p370 = scmp.ne.s32.totalorder %s361, %s362
      %p371 = scmp.eq.s32.totalorder %s42, 0
      %p372 = por %p370, %p371
      %p373 = scmp.ne.s32.totalorder %s361, %s362
      %p374 = scmp.eq.s32.totalorder %s43, 1
      %p375 = por %p373, %p374
      %p377 = scmp.ne.s32.totalorder %s362, %s376
      %p378 = scmp.eq.s32.totalorder %s43, 0
      %p379 = por %p377, %p378
      %s381 = sadd.s32 %s380, 1
      %p384 = scmp.eq.s32.totalorder %s37, 1
      %p385 = scmp.ne.s32.totalorder %s380, %s382
      %p386 = scmp.eq.s32.totalorder %s37, 0
      %p387 = por %p385, %p386
      %p388 = scmp.ne.s32.totalorder %s380, %s382
      %p389 = scmp.eq.s32.totalorder %s42, 1
      %p390 = por %p388, %p389
      %p391 = scmp.ne.s32.totalorder %s382, %s383
      %p392 = scmp.eq.s32.totalorder %s42, 0
      %p393 = por %p391, %p392
      %p394 = scmp.ne.s32.totalorder %s382, %s383
      %p395 = scmp.eq.s32.totalorder %s43, 1
      %p396 = por %p394, %p395
      %p398 = scmp.ne.s32.totalorder %s383, %s397
      %p399 = scmp.eq.s32.totalorder %s43, 0
      %p400 = por %p398, %p399
      %s402 = sadd.s32 %s401, 1
      %p405 = scmp.eq.s32.totalorder %s37, 1
      %p406 = scmp.ne.s32.totalorder %s401, %s403
      %p407 = scmp.eq.s32.totalorder %s37, 0
      %p408 = por %p406, %p407
      %p409 = scmp.ne.s32.totalorder %s401, %s403
      %p410 = scmp.eq.s32.totalorder %s42, 1
      %p411 = por %p409, %p410
      %p412 = scmp.ne.s32.totalorder %s403, %s404
      %p413 = scmp.eq.s32.totalorder %s42, 0
      %p414 = por %p412, %p413
      %p415 = scmp.ne.s32.totalorder %s403, %s404
      %p416 = scmp.eq.s32.totalorder %s43, 1
      %p417 = por %p415, %p416
      %p419 = scmp.ne.s32.totalorder %s404, %s418
      %p420 = scmp.eq.s32.totalorder %s43, 0
      %p421 = por %p419, %p420
      %s423 = sadd.s32 %s422, 1
      %p426 = scmp.eq.s32.totalorder %s37, 1
      %p427 = scmp.ne.s32.totalorder %s422, %s424
      %p428 = scmp.eq.s32.totalorder %s37, 0
      %p429 = por %p427, %p428
      %p430 = scmp.ne.s32.totalorder %s422, %s424
      %p431 = scmp.eq.s32.totalorder %s42, 1
      %p432 = por %p430, %p431
      %p433 = scmp.ne.s32.totalorder %s424, %s425
      %p434 = scmp.eq.s32.totalorder %s42, 0
      %p435 = por %p433, %p434
      %p436 = scmp.ne.s32.totalorder %s424, %s425
      %p437 = scmp.eq.s32.totalorder %s43, 1
      %p438 = por %p436, %p437
      %p440 = scmp.ne.s32.totalorder %s425, %s439
      %p441 = scmp.eq.s32.totalorder %s43, 0
      %p442 = por %p440, %p441
      %s444 = sadd.s32 %s443, 1
      %p447 = scmp.eq.s32.totalorder %s37, 1
      %p448 = scmp.ne.s32.totalorder %s443, %s445
      %p449 = scmp.eq.s32.totalorder %s37, 0
      %p450 = por %p448, %p449
      %p451 = scmp.ne.s32.totalorder %s443, %s445
      %p452 = scmp.eq.s32.totalorder %s42, 1
      %p453 = por %p451, %p452
      %p454 = scmp.ne.s32.totalorder %s445, %s446
      %p455 = scmp.eq.s32.totalorder %s42, 0
      %p456 = por %p454, %p455
      %p457 = scmp.ne.s32.totalorder %s445, %s446
      %p458 = scmp.eq.s32.totalorder %s43, 1
      %p459 = por %p457, %p458
      %p461 = scmp.ne.s32.totalorder %s446, %s460
      %p462 = scmp.eq.s32.totalorder %s43, 0
      %p463 = por %p461, %p462
      %s465 = sadd.s32 %s464, 1
      %p468 = scmp.eq.s32.totalorder %s37, 1
      %p469 = scmp.ne.s32.totalorder %s464, %s466
      %p470 = scmp.eq.s32.totalorder %s37, 0
      %p471 = por %p469, %p470
      %p472 = scmp.ne.s32.totalorder %s464, %s466
      %p473 = scmp.eq.s32.totalorder %s42, 1
      %p474 = por %p472, %p473
      %p475 = scmp.ne.s32.totalorder %s466, %s467
      %p476 = scmp.eq.s32.totalorder %s42, 0
      %p477 = por %p475, %p476
      %p478 = scmp.ne.s32.totalorder %s466, %s467
      %p479 = scmp.eq.s32.totalorder %s43, 1
      %p480 = por %p478, %p479
      %p482 = scmp.ne.s32.totalorder %s467, %s481
      %p483 = scmp.eq.s32.totalorder %s43, 0
      %p484 = por %p482, %p483
      %s486 = sadd.s32 %s485, 1
      %p489 = scmp.eq.s32.totalorder %s37, 1
      %p490 = scmp.ne.s32.totalorder %s485, %s487
      %p491 = scmp.eq.s32.totalorder %s37, 0
      %p492 = por %p490, %p491
      %p493 = scmp.ne.s32.totalorder %s485, %s487
      %p494 = scmp.eq.s32.totalorder %s42, 1
      %p495 = por %p493, %p494
      %p496 = scmp.ne.s32.totalorder %s487, %s488
      %p497 = scmp.eq.s32.totalorder %s42, 0
      %p498 = por %p496, %p497
      %p499 = scmp.ne.s32.totalorder %s487, %s488
      %p500 = scmp.eq.s32.totalorder %s43, 1
      %p501 = por %p499, %p500
      %p503 = scmp.ne.s32.totalorder %s488, %s502
      %p504 = scmp.eq.s32.totalorder %s43, 0
      %p505 = por %p503, %p504
      %s507 = sadd.s32 %s506, 1
      %p510 = scmp.eq.s32.totalorder %s37, 1
      %p511 = scmp.ne.s32.totalorder %s506, %s508
      %p512 = scmp.eq.s32.totalorder %s37, 0
      %p513 = por %p511, %p512
      %p514 = scmp.ne.s32.totalorder %s506, %s508
      %p515 = scmp.eq.s32.totalorder %s42, 1
      %p516 = por %p514, %p515
      %p517 = scmp.ne.s32.totalorder %s508, %s509
      %p518 = scmp.eq.s32.totalorder %s42, 0
      %p519 = por %p517, %p518
      %p520 = scmp.ne.s32.totalorder %s508, %s509
      %p521 = scmp.eq.s32.totalorder %s43, 1
      %p522 = por %p520, %p521
      %p524 = scmp.ne.s32.totalorder %s509, %s523
      %p525 = scmp.eq.s32.totalorder %s43, 0
      %p526 = por %p524, %p525
      %s528 = sadd.s32 %s527, 1
      %p531 = scmp.eq.s32.totalorder %s37, 1
      %p532 = scmp.ne.s32.totalorder %s527, %s529
      %p533 = scmp.eq.s32.totalorder %s37, 0
      %p534 = por %p532, %p533
      %p535 = scmp.ne.s32.totalorder %s527, %s529
      %p536 = scmp.eq.s32.totalorder %s42, 1
      %p537 = por %p535, %p536
      %p538 = scmp.ne.s32.totalorder %s529, %s530
      %p539 = scmp.eq.s32.totalorder %s42, 0
      %p540 = por %p538, %p539
      %p541 = scmp.ne.s32.totalorder %s529, %s530
      %p542 = scmp.eq.s32.totalorder %s43, 1
      %p543 = por %p541, %p542
      %p545 = scmp.ne.s32.totalorder %s530, %s544
      %p546 = scmp.eq.s32.totalorder %s43, 0
      %p547 = por %p545, %p546
      %s549 = sadd.s32 %s548, 1
      %p552 = scmp.eq.s32.totalorder %s37, 1
      %p553 = scmp.ne.s32.totalorder %s548, %s550
      %p554 = scmp.eq.s32.totalorder %s37, 0
      %p555 = por %p553, %p554
      %p556 = scmp.ne.s32.totalorder %s548, %s550
      %p557 = scmp.eq.s32.totalorder %s42, 1
      %p558 = por %p556, %p557
      %p559 = scmp.ne.s32.totalorder %s550, %s551
      %p560 = scmp.eq.s32.totalorder %s42, 0
      %p561 = por %p559, %p560
      %p562 = scmp.ne.s32.totalorder %s550, %s551
      %p563 = scmp.eq.s32.totalorder %s43, 1
      %p564 = por %p562, %p563
      %p566 = scmp.ne.s32.totalorder %s551, %s565
      %p567 = scmp.eq.s32.totalorder %s43, 0
      %p568 = por %p566, %p567
      %s570 = sadd.s32 %s569, 1
      %p573 = scmp.eq.s32.totalorder %s37, 1
      %p574 = scmp.ne.s32.totalorder %s569, %s571
      %p575 = scmp.eq.s32.totalorder %s37, 0
      %p576 = por %p574, %p575
      %p577 = scmp.ne.s32.totalorder %s569, %s571
      %p578 = scmp.eq.s32.totalorder %s42, 1
      %p579 = por %p577, %p578
      %p580 = scmp.ne.s32.totalorder %s571, %s572
      %p581 = scmp.eq.s32.totalorder %s42, 0
      %p582 = por %p580, %p581
      %p583 = scmp.ne.s32.totalorder %s571, %s572
      %p584 = scmp.eq.s32.totalorder %s43, 1
      %p585 = por %p583, %p584
      %p587 = scmp.ne.s32.totalorder %s572, %s586
      %p588 = scmp.eq.s32.totalorder %s43, 0
      %p589 = por %p587, %p588
      %s591 = sadd.s32 %s590, 1
      %p594 = scmp.eq.s32.totalorder %s37, 1
      %p595 = scmp.ne.s32.totalorder %s590, %s592
      %p596 = scmp.eq.s32.totalorder %s37, 0
      %p597 = por %p595, %p596
      %p598 = scmp.ne.s32.totalorder %s590, %s592
      %p599 = scmp.eq.s32.totalorder %s42, 1
      %p600 = por %p598, %p599
      %p601 = scmp.ne.s32.totalorder %s592, %s593
      %p602 = scmp.eq.s32.totalorder %s42, 0
      %p603 = por %p601, %p602
      %p604 = scmp.ne.s32.totalorder %s592, %s593
      %p605 = scmp.eq.s32.totalorder %s43, 1
      %p606 = por %p604, %p605
      %p608 = scmp.ne.s32.totalorder %s593, %s607
      %p609 = scmp.eq.s32.totalorder %s43, 0
      %p610 = por %p608, %p609
      %s611 = ssub.s32 %s37, %s44
      %p612 = scmp.eq.s32.totalorder %s611, 0
      %s614 = sadd.s32 %s613, 1
      %s615 = scalar_select %p612, %s613, %s614
      %p618 = pneg %p612
      %p619 = scmp.eq.s32.totalorder %s37, 1
      %p620 = por %p618, %p619
      %p621 = scmp.ne.s32.totalorder %s613, %s616
      %p622 = scmp.eq.s32.totalorder %s37, 0
      %p623 = por %p621, %p622
      %p624 = scmp.ne.s32.totalorder %s613, %s616
      %p625 = scmp.eq.s32.totalorder %s42, 1
      %p626 = por %p624, %p625
      %p627 = scmp.ne.s32.totalorder %s616, %s617
      %p628 = scmp.eq.s32.totalorder %s42, 0
      %p629 = por %p627, %p628
      %p630 = scmp.ne.s32.totalorder %s616, %s617
      %p631 = scmp.eq.s32.totalorder %s43, 1
      %p632 = por %p630, %p631
      %p634 = scmp.ne.s32.totalorder %s617, %s633
      %p635 = scmp.eq.s32.totalorder %s43, 0
      %p636 = por %p634, %p635
      %p637 = scmp.le.s32.totalorder 1, %s37
      %p638 = scmp.lt.s32.totalorder %s37, 3
      %p639 = pnand %p637, %p638
      %p640 = pneg %p639
      // Predicated region
      $region9: #{transformer_decoder_forward.4} parent=5 // pred_check
        _
      $region10: #{transformer_decoder_forward.4} parent=5 // pred_check_branch
        %642 = sbr.rel (%p639) target = $region12
      $region11: #{transformer_decoder_forward.4} parent=5 // pred_region
        %s643 = ssub.s32 %s37, 1
        // Predicated region
        $region13: #{transformer_decoder_forward.4} parent=11 // pred_check
          %p644 = pneg %p162
        $region14: #{transformer_decoder_forward.4} parent=11 // pred_check_branch
          %646 = sbr.rel (%p644) target = $region16
        $region15: #{transformer_decoder_forward.4} parent=11 // pred_region
          _
        $region16: #{transformer_decoder_forward.4} parent=11 // pred_fallthru
          _
        // Predicated region
        $region17: #{transformer_decoder_forward.4} parent=11 // pred_check
          %p647 = pneg %p183
        $region18: #{transformer_decoder_forward.4} parent=11 // pred_check_branch
          %649 = sbr.rel (%p647) target = $region20
        $region19: #{transformer_decoder_forward.4} parent=11 // pred_region
          _
        $region20: #{transformer_decoder_forward.4} parent=11 // pred_fallthru
          _
        // Predicated region
        $region21: #{transformer_decoder_forward.4} parent=11 // pred_check
          %p650 = pneg %p204
        $region22: #{transformer_decoder_forward.4} parent=11 // pred_check_branch
          %652 = sbr.rel (%p650) target = $region24
        $region23: #{transformer_decoder_forward.4} parent=11 // pred_region
          _
        $region24: #{transformer_decoder_forward.4} parent=11 // pred_fallthru
          _
        // Predicated region
        $region25: #{transformer_decoder_forward.4} parent=11 // pred_check
          %p653 = pneg %p225
        $region26: #{transformer_decoder_forward.4} parent=11 // pred_check_branch
          %655 = sbr.rel (%p653) target = $region28
        $region27: #{transformer_decoder_forward.4} parent=11 // pred_region
          _
        $region28: #{transformer_decoder_forward.4} parent=11 // pred_fallthru
          _
        // Predicated region
        $region29: #{transformer_decoder_forward.4} parent=11 // pred_check
          %p656 = pneg %p246
        $region30: #{transformer_decoder_forward.4} parent=11 // pred_check_branch
          %658 = sbr.rel (%p656) target = $region32
        $region31: #{transformer_decoder_forward.4} parent=11 // pred_region
          _
        $region32: #{transformer_decoder_forward.4} parent=11 // pred_fallthru
          _
        // Predicated region
        $region33: #{transformer_decoder_forward.4} parent=11 // pred_check
          %p659 = pneg %p267
        $region34: #{transformer_decoder_forward.4} parent=11 // pred_check_branch
          %661 = sbr.rel (%p659) target = $region36
        $region35: #{transformer_decoder_forward.4} parent=11 // pred_region
          _
        $region36: #{transformer_decoder_forward.4} parent=11 // pred_fallthru
          _
        // Predicated region
        $region37: #{transformer_decoder_forward.4} parent=11 // pred_check
          %p662 = pneg %p288
        $region38: #{transformer_decoder_forward.4} parent=11 // pred_check_branch
          %664 = sbr.rel (%p662) target = $region40
        $region39: #{transformer_decoder_forward.4} parent=11 // pred_region
          _
        $region40: #{transformer_decoder_forward.4} parent=11 // pred_fallthru
          _
        // Predicated region
        $region41: #{transformer_decoder_forward.4} parent=11 // pred_check
          %p665 = pneg %p309
        $region42: #{transformer_decoder_forward.4} parent=11 // pred_check_branch
          %667 = sbr.rel (%p665) target = $region44
        $region43: #{transformer_decoder_forward.4} parent=11 // pred_region
          _
        $region44: #{transformer_decoder_forward.4} parent=11 // pred_fallthru
          _
        // Predicated region
        $region45: #{transformer_decoder_forward.4} parent=11 // pred_check
          %p668 = pneg %p330
        $region46: #{transformer_decoder_forward.4} parent=11 // pred_check_branch
          %670 = sbr.rel (%p668) target = $region48
        $region47: #{transformer_decoder_forward.4} parent=11 // pred_region
          _
        $region48: #{transformer_decoder_forward.4} parent=11 // pred_fallthru
          _
        // Predicated region
        $region49: #{transformer_decoder_forward.4} parent=11 // pred_check
          %p671 = pneg %p351
        $region50: #{transformer_decoder_forward.4} parent=11 // pred_check_branch
          %673 = sbr.rel (%p671) target = $region52
        $region51: #{transformer_decoder_forward.4} parent=11 // pred_region
          _
        $region52: #{transformer_decoder_forward.4} parent=11 // pred_fallthru
          _
        // Predicated region
        $region53: #{transformer_decoder_forward.4} parent=11 // pred_check
          %p674 = pneg %p372
        $region54: #{transformer_decoder_forward.4} parent=11 // pred_check_branch
          %676 = sbr.rel (%p674) target = $region56
        $region55: #{transformer_decoder_forward.4} parent=11 // pred_region
          _
        $region56: #{transformer_decoder_forward.4} parent=11 // pred_fallthru
          _
        // Predicated region
        $region57: #{transformer_decoder_forward.4} parent=11 // pred_check
          %p677 = pneg %p393
        $region58: #{transformer_decoder_forward.4} parent=11 // pred_check_branch
          %679 = sbr.rel (%p677) target = $region60
        $region59: #{transformer_decoder_forward.4} parent=11 // pred_region
          %681 = vsyncadd [#allocation4], 0
          %s683 = sshll.u32 %s15, 4
          %s684 = int_to_ptr.hbm [resolvable:$true] %s683
          %s685 = sshll.u32 [#allocation3], 4
          %s686 = int_to_ptr.vmem [resolvable:$true] %s685
          %688 = dma.hbm_to_vmem [thread:$0]  %s684, 16, %s686, [#allocation4]
        $region60: #{transformer_decoder_forward.4} parent=11 // pred_fallthru
          _
        // Predicated region
        $region61: #{transformer_decoder_forward.4} parent=11 // pred_check
          %p689 = pneg %p414
        $region62: #{transformer_decoder_forward.4} parent=11 // pred_check_branch
          %691 = sbr.rel (%p689) target = $region64
        $region63: #{transformer_decoder_forward.4} parent=11 // pred_region
          _
        $region64: #{transformer_decoder_forward.4} parent=11 // pred_fallthru
          _
        // Predicated region
        $region65: #{transformer_decoder_forward.4} parent=11 // pred_check
          %p692 = pneg %p435
        $region66: #{transformer_decoder_forward.4} parent=11 // pred_check_branch
          %694 = sbr.rel (%p692) target = $region68
        $region67: #{transformer_decoder_forward.4} parent=11 // pred_region
          %696 = vsyncadd [#allocation6], 0
          %s698 = sshll.u32 %s17, 4
          %s699 = int_to_ptr.hbm [resolvable:$true] %s698
          %s700 = sshll.u32 [#allocation5], 4
          %s701 = int_to_ptr.vmem [resolvable:$true] %s700
          %703 = dma.hbm_to_vmem [thread:$0]  %s699, 16, %s701, [#allocation6]
        $region68: #{transformer_decoder_forward.4} parent=11 // pred_fallthru
          _
        // Predicated region
        $region69: #{transformer_decoder_forward.4} parent=11 // pred_check
          %p704 = pneg %p456
        $region70: #{transformer_decoder_forward.4} parent=11 // pred_check_branch
          %706 = sbr.rel (%p704) target = $region72
        $region71: #{transformer_decoder_forward.4} parent=11 // pred_region
          %708 = vsyncadd [#allocation6], 0
          %s710 = sshll.u32 %s18, 4
          %s711 = int_to_ptr.hbm [resolvable:$true] %s710
          %s712 = sshll.u32 [#allocation7], 4
          %s713 = int_to_ptr.vmem [resolvable:$true] %s712
          %715 = dma.hbm_to_vmem [thread:$0]  %s711, 16, %s713, [#allocation6]
        $region72: #{transformer_decoder_forward.4} parent=11 // pred_fallthru
          _
        // Predicated region
        $region73: #{transformer_decoder_forward.4} parent=11 // pred_check
          %p716 = pneg %p477
        $region74: #{transformer_decoder_forward.4} parent=11 // pred_check_branch
          %718 = sbr.rel (%p716) target = $region76
        $region75: #{transformer_decoder_forward.4} parent=11 // pred_region
          %720 = vsyncadd [#allocation9], 0
          %s722 = sshll.u32 %s19, 4
          %s723 = int_to_ptr.hbm [resolvable:$true] %s722
          %s724 = sshll.u32 [#allocation8], 4
          %s725 = int_to_ptr.vmem [resolvable:$true] %s724
          %727 = dma.hbm_to_vmem [thread:$0]  %s723, 16, %s725, [#allocation9]
        $region76: #{transformer_decoder_forward.4} parent=11 // pred_fallthru
          _
        // Predicated region
        $region77: #{transformer_decoder_forward.4} parent=11 // pred_check
          %p728 = pneg %p498
        $region78: #{transformer_decoder_forward.4} parent=11 // pred_check_branch
          %730 = sbr.rel (%p728) target = $region80
        $region79: #{transformer_decoder_forward.4} parent=11 // pred_region
          _
        $region80: #{transformer_decoder_forward.4} parent=11 // pred_fallthru
          _
        // Predicated region
        $region81: #{transformer_decoder_forward.4} parent=11 // pred_check
          %p731 = pneg %p519
        $region82: #{transformer_decoder_forward.4} parent=11 // pred_check_branch
          %733 = sbr.rel (%p731) target = $region84
        $region83: #{transformer_decoder_forward.4} parent=11 // pred_region
          %735 = vsyncadd [#allocation9], 0
          %s737 = sshll.u32 %s21, 4
          %s738 = int_to_ptr.hbm [resolvable:$true] %s737
          %s739 = sshll.u32 [#allocation10], 4
          %s740 = int_to_ptr.vmem [resolvable:$true] %s739
          %742 = dma.hbm_to_vmem [thread:$0]  %s738, 16, %s740, [#allocation9]
        $region84: #{transformer_decoder_forward.4} parent=11 // pred_fallthru
          _
        // Predicated region
        $region85: #{transformer_decoder_forward.4} parent=11 // pred_check
          %p743 = pneg %p540
        $region86: #{transformer_decoder_forward.4} parent=11 // pred_check_branch
          %745 = sbr.rel (%p743) target = $region88
        $region87: #{transformer_decoder_forward.4} parent=11 // pred_region
          _
        $region88: #{transformer_decoder_forward.4} parent=11 // pred_fallthru
          _
        // Predicated region
        $region89: #{transformer_decoder_forward.4} parent=11 // pred_check
          %p746 = pneg %p561
        $region90: #{transformer_decoder_forward.4} parent=11 // pred_check_branch
          %748 = sbr.rel (%p746) target = $region92
        $region91: #{transformer_decoder_forward.4} parent=11 // pred_region
          %750 = vsyncadd [#allocation12], 0
          %s752 = sshll.u32 %s23, 4
          %s753 = int_to_ptr.hbm [resolvable:$true] %s752
          %s754 = sshll.u32 [#allocation11], 4
          %s755 = int_to_ptr.vmem [resolvable:$true] %s754
          %757 = dma.hbm_to_vmem [thread:$0]  %s753, 16, %s755, [#allocation12]
        $region92: #{transformer_decoder_forward.4} parent=11 // pred_fallthru
          _
        // Predicated region
        $region93: #{transformer_decoder_forward.4} parent=11 // pred_check
          %p758 = pneg %p582
        $region94: #{transformer_decoder_forward.4} parent=11 // pred_check_branch
          %760 = sbr.rel (%p758) target = $region96
        $region95: #{transformer_decoder_forward.4} parent=11 // pred_region
          %762 = vsyncadd [#allocation12], 0
          %s764 = sshll.u32 %s24, 4
          %s765 = int_to_ptr.hbm [resolvable:$true] %s764
          %s766 = sshll.u32 [#allocation13], 4
          %s767 = int_to_ptr.vmem [resolvable:$true] %s766
          %769 = dma.hbm_to_vmem [thread:$0]  %s765, 16, %s767, [#allocation12]
        $region96: #{transformer_decoder_forward.4} parent=11 // pred_fallthru
          _
        // Predicated region
        $region97: #{transformer_decoder_forward.4} parent=11 // pred_check
          %p770 = pneg %p603
        $region98: #{transformer_decoder_forward.4} parent=11 // pred_check_branch
          %772 = sbr.rel (%p770) target = $region100
        $region99: #{transformer_decoder_forward.4} parent=11 // pred_region
          %774 = vsyncadd [#allocation15], 0
          %s776 = sshll.u32 %s25, 4
          %s777 = int_to_ptr.hbm [resolvable:$true] %s776
          %s778 = sshll.u32 [#allocation14], 4
          %s779 = int_to_ptr.vmem [resolvable:$true] %s778
          %781 = dma.hbm_to_vmem [thread:$0]  %s777, 16, %s779, [#allocation15]
        $region100: #{transformer_decoder_forward.4} parent=11 // pred_fallthru
          _
      $region12: #{transformer_decoder_forward.4} parent=5 // pred_fallthru
        _
      %p782 = scmp.lt.s32.totalorder %s37, 2
      // Predicated region
      $region101: #{transformer_decoder_forward.4} parent=5 // pred_check
        %p783 = pneg %p782
      $region102: #{transformer_decoder_forward.4} parent=5 // pred_check_branch
        %785 = sbr.rel (%p783) target = $region104
      $region103: #{transformer_decoder_forward.4} parent=5 // pred_region
        // Predicated region
        $region105: #{transformer_decoder_forward.4} parent=103 // pred_check
          %p786 = pneg %p57
        $region106: #{transformer_decoder_forward.4} parent=103 // pred_check_branch
          %788 = sbr.rel (%p786) target = $region108
        $region107: #{transformer_decoder_forward.4} parent=103 // pred_region
          %p789 = scmp.lt.s32.totalorder %s37, 1
          %s790 = scalar_select %p789, %s37, 1
          %s791 = smul.addr %s790, 8
          %s792 = scalar_lea.vmem %s0, %s791
        $region108: #{transformer_decoder_forward.4} parent=103 // pred_fallthru
          _
        // Predicated region
        $region109: #{transformer_decoder_forward.4} parent=103 // pred_check
          %p793 = pneg %p83
        $region110: #{transformer_decoder_forward.4} parent=103 // pred_check_branch
          %795 = sbr.rel (%p793) target = $region112
        $region111: #{transformer_decoder_forward.4} parent=103 // pred_region
          %p796 = scmp.lt.s32.totalorder %s37, 1
          %s797 = scalar_select %p796, %s37, 1
          %s798 = smul.addr %s797, 2
          %s799 = smul.addr %s798, 4
          %s800 = scalar_lea.vmem %s1, %s799
        $region112: #{transformer_decoder_forward.4} parent=103 // pred_fallthru
          _
        // Predicated region
        $region113: #{transformer_decoder_forward.4} parent=103 // pred_check
          %p801 = pneg %p109
        $region114: #{transformer_decoder_forward.4} parent=103 // pred_check_branch
          %803 = sbr.rel (%p801) target = $region116
        $region115: #{transformer_decoder_forward.4} parent=103 // pred_region
          %p804 = scmp.lt.s32.totalorder %s37, 1
          %s805 = scalar_select %p804, %s37, 1
          %s806 = scalar_lea.vmem %s2, %s805
        $region116: #{transformer_decoder_forward.4} parent=103 // pred_fallthru
          _
        // Predicated region
        $region117: #{transformer_decoder_forward.4} parent=103 // pred_check
          %p807 = pneg %p135
        $region118: #{transformer_decoder_forward.4} parent=103 // pred_check_branch
          %809 = sbr.rel (%p807) target = $region120
        $region119: #{transformer_decoder_forward.4} parent=103 // pred_region
          %p810 = scmp.lt.s32.totalorder %s37, 1
          %s811 = scalar_select %p810, %s37, 1
          %s812 = scalar_lea.vmem %s3, %s811
        $region120: #{transformer_decoder_forward.4} parent=103 // pred_fallthru
          _
      $region104: #{transformer_decoder_forward.4} parent=5 // pred_fallthru
        _
      %p813 = scmp.le.s32.totalorder 1, %s37
      %p814 = scmp.lt.s32.totalorder %s37, 3
      %p815 = pnand %p813, %p814
      %p816 = pneg %p815
      // Predicated region
      $region121: #{transformer_decoder_forward.4} parent=5 // pred_check
        _
      $region122: #{transformer_decoder_forward.4} parent=5 // pred_check_branch
        %818 = sbr.rel (%p815) target = $region124
      $region123: #{transformer_decoder_forward.4} parent=5 // pred_region
        %s819 = ssub.s32 %s37, 1
        // Predicated region
        $region125: #{transformer_decoder_forward.4} parent=123 // pred_check
          %p820 = pneg %p393
        $region126: #{transformer_decoder_forward.4} parent=123 // pred_check_branch
          %822 = sbr.rel (%p820) target = $region128
        $region127: #{transformer_decoder_forward.4} parent=123 // pred_region
          %824 = dma.done [#allocation4], 16
        $region128: #{transformer_decoder_forward.4} parent=123 // pred_fallthru
          _
        // Predicated region
        $region129: #{transformer_decoder_forward.4} parent=123 // pred_check
          %p825 = pneg %p435
        $region130: #{transformer_decoder_forward.4} parent=123 // pred_check_branch
          %827 = sbr.rel (%p825) target = $region132
        $region131: #{transformer_decoder_forward.4} parent=123 // pred_region
          %829 = dma.done [#allocation6], 16
        $region132: #{transformer_decoder_forward.4} parent=123 // pred_fallthru
          _
        // Predicated region
        $region133: #{transformer_decoder_forward.4} parent=123 // pred_check
          %p830 = pneg %p456
        $region134: #{transformer_decoder_forward.4} parent=123 // pred_check_branch
          %832 = sbr.rel (%p830) target = $region136
        $region135: #{transformer_decoder_forward.4} parent=123 // pred_region
          %834 = dma.done [#allocation6], 16
        $region136: #{transformer_decoder_forward.4} parent=123 // pred_fallthru
          _
        // Predicated region
        $region137: #{transformer_decoder_forward.4} parent=123 // pred_check
          %p835 = pneg %p477
        $region138: #{transformer_decoder_forward.4} parent=123 // pred_check_branch
          %837 = sbr.rel (%p835) target = $region140
        $region139: #{transformer_decoder_forward.4} parent=123 // pred_region
          %839 = dma.done [#allocation9], 16
        $region140: #{transformer_decoder_forward.4} parent=123 // pred_fallthru
          _
        // Predicated region
        $region141: #{transformer_decoder_forward.4} parent=123 // pred_check
          %p840 = pneg %p519
        $region142: #{transformer_decoder_forward.4} parent=123 // pred_check_branch
          %842 = sbr.rel (%p840) target = $region144
        $region143: #{transformer_decoder_forward.4} parent=123 // pred_region
          %844 = dma.done [#allocation9], 16
        $region144: #{transformer_decoder_forward.4} parent=123 // pred_fallthru
          _
        // Predicated region
        $region145: #{transformer_decoder_forward.4} parent=123 // pred_check
          %p845 = pneg %p561
        $region146: #{transformer_decoder_forward.4} parent=123 // pred_check_branch
          %847 = sbr.rel (%p845) target = $region148
        $region147: #{transformer_decoder_forward.4} parent=123 // pred_region
          %849 = dma.done [#allocation12], 16
        $region148: #{transformer_decoder_forward.4} parent=123 // pred_fallthru
          _
        // Predicated region
        $region149: #{transformer_decoder_forward.4} parent=123 // pred_check
          %p850 = pneg %p582
        $region150: #{transformer_decoder_forward.4} parent=123 // pred_check_branch
          %852 = sbr.rel (%p850) target = $region152
        $region151: #{transformer_decoder_forward.4} parent=123 // pred_region
          %854 = dma.done [#allocation12], 16
        $region152: #{transformer_decoder_forward.4} parent=123 // pred_fallthru
          _
        // Predicated region
        $region153: #{transformer_decoder_forward.4} parent=123 // pred_check
          %p855 = pneg %p603
        $region154: #{transformer_decoder_forward.4} parent=123 // pred_check_branch
          %857 = sbr.rel (%p855) target = $region156
        $region155: #{transformer_decoder_forward.4} parent=123 // pred_region
          %859 = dma.done [#allocation15], 16
        $region156: #{transformer_decoder_forward.4} parent=123 // pred_fallthru
          _
        %p860 = scmp.lt.s32.totalorder %s42, 1
        %s861 = scalar_select %p860, %s42, 1
        %s862 = smul.addr %s861, 8
        %s863 = scalar_lea.vmem %s0, %s862
        %p864 = pneg %p63
        %p865 = pneg %p60
        %p866 = scmp.lt.s32.totalorder %s42, 1
        %s867 = scalar_select %p866, %s42, 1
        %s868 = smul.addr %s867, 2
        %s869 = smul.addr %s868, 4
        %s870 = scalar_lea.vmem %s1, %s869
        %p871 = pneg %p89
        %p872 = pneg %p86
        %p873 = scmp.lt.s32.totalorder %s42, 1
        %s874 = scalar_select %p873, %s42, 1
        %s875 = scalar_lea.vmem %s2, %s874
        %p876 = pneg %p115
        %p877 = pneg %p112
        %p878 = scmp.lt.s32.totalorder %s42, 1
        %s879 = scalar_select %p878, %s42, 1
        %s880 = scalar_lea.vmem %s3, %s879
        %p881 = pneg %p141
        %p882 = pneg %p138
        %p883 = pneg %p162
        %p884 = pneg %p159
        %p885 = pneg %p183
        %p886 = pneg %p180
        %p887 = pneg %p204
        %p888 = pneg %p201
        %p889 = pneg %p225
        %p890 = pneg %p222
        %p891 = pneg %p246
        %p892 = pneg %p243
        %p893 = pneg %p267
        %p894 = pneg %p264
        %p895 = pneg %p288
        %p896 = pneg %p285
        %p897 = pneg %p309
        %p898 = pneg %p306
        %p899 = pneg %p330
        %p900 = pneg %p327
        %p901 = pneg %p351
        %p902 = pneg %p348
        %p903 = pneg %p372
        %p904 = pneg %p369
        %p905 = pneg %p393
        %p906 = pneg %p390
        %p907 = pneg %p414
        %p908 = pneg %p411
        %p909 = pneg %p435
        %p910 = pneg %p432
        %p911 = pneg %p456
        %p912 = pneg %p453
        %p913 = pneg %p477
        %p914 = pneg %p474
        %p915 = pneg %p498
        %p916 = pneg %p495
        %p917 = pneg %p519
        %p918 = pneg %p516
        %p919 = pneg %p540
        %p920 = pneg %p537
        %p921 = pneg %p561
        %p922 = pneg %p558
        %p923 = pneg %p582
        %p924 = pneg %p579
        %p925 = pneg %p603
        %p926 = pneg %p600
        %p927 = pneg %p629
        %p928 = pneg %p626
        %p929 = scmp.lt.s32.totalorder %s42, 1
        %s930 = scalar_select %p929, %s42, 1
        %s931 = smul.addr %s930, 8
        %s932 = scalar_lea.vmem %s26, %s931
        %p933 = scmp.lt.s32.totalorder %s42, 1
        %s934 = scalar_select %p933, %s42, 1
        %s935 = smul.addr %s934, 8
        %s936 = scalar_lea.vmem %s0, %s935
        %p937 = scmp.lt.s32.totalorder %s42, 1
        %s938 = scalar_select %p937, %s42, 1
        %s939 = smul.addr %s938, 2
        %s940 = smul.addr %s939, 4
        %s941 = scalar_lea.vmem %s1, %s940
        %p942 = scmp.lt.s32.totalorder %s42, 1
        %s943 = scalar_select %p942, %s42, 1
        %s944 = scalar_lea.vmem %s2, %s943
        %p945 = scmp.lt.s32.totalorder %s42, 1
        %s946 = scalar_select %p945, %s42, 1
        %s947 = scalar_lea.vmem %s3, %s946
        %p948 = scmp.lt.s32.totalorder %s42, 1
        %s949 = scalar_select %p948, %s42, 1
        %s950 = smul.addr %s949, 8
        %s951 = scalar_lea.vmem %s26, %s950
        %v953 = vld [vmem:[%s936] sm:$0xff]
        %v954 = vld [vmem:[%s944] sm:$0x1]
        %vm955 = vcmp.gt.f32.partialorder %v954, 0.5
        %v956 = vld [vmem:[%s947] sm:$0x1]
        %vm957 = vcmp.gt.f32.partialorder %v956, 0.5
        %v958 = vlaneseq
        %v959 = vshrl.u32 %v958, 7
        %v960 = vlaneseq
        %v961 = vand.u32 %v960, 127
        %vm962 = vcmp.le.s32.totalorder %v961, %v959
        %v963 = vsel %vm955, 1, 0
        %v964 = vperm.slane %v963, 0
        %vm965 = vcmp.eq.s32.totalorder %v964, 1
        %vm966 = vmand %vm962, %vm965
        %v967 = vpack.c.bf16 %v953, %v953
        %v968 = vld [vmem:[%s4] sm:$0xf]
        %v969 = vld [vmem:[%s4 + $0x4] sm:$0xf]
        %v970 = vld [vmem:[%s4 + $0x8] sm:$0xf]
        %v971 = vld [vmem:[%s4 + $0xc] sm:$0xf]
        %v972 = vld [vmem:[%s5] sm:$0x1]
        %v973 = vld [vmem:[%s6] sm:$0xf]
        %v974 = vld [vmem:[%s6 + $0x4] sm:$0xf]
        %v975 = vld [vmem:[%s6 + $0x8] sm:$0xf]
        %v976 = vld [vmem:[%s6 + $0xc] sm:$0xf]
        %v977 = vld [vmem:[%s7] sm:$0x1]
        %v978 = vld [vmem:[%s8] sm:$0xf]
        %v979 = vld [vmem:[%s8 + $0x4] sm:$0xf]
        %v980 = vld [vmem:[%s8 + $0x8] sm:$0xf]
        %v981 = vld [vmem:[%s8 + $0xc] sm:$0xf]
        %v982 = vld [vmem:[%s9] sm:$0x1]
        %v984 = vperm.slane %v972, 0
        %v990 = vunpack.c.l.b16 %v968
        %v991 = vunpack.c.l.b16 %v969
        %v992 = vunpack.c.l.b16 %v970
        %v993 = vunpack.c.l.b16 %v971
        %v994 = vpack.c.b16 %v991, %v990
        %v995 = vpack.c.b16 %v993, %v992
        %vm998 = vcmask 261120
        %v1000 = vsel %vm998, %v967, 0
        %1002 = vmatpush.bf16.msra.mxu0 0
        %1003 = vmatpush.bf16.msra.mxu0 0
        %1004 = vmatpush.bf16.msra.mxu0 0
        %1005 = vmatpush.bf16.msra.mxu0 0
        %1006 = vmatpush.bf16.msra.mxu0 0
        %1007 = vmatpush.bf16.msra.mxu0 0
        %1008 = vmatpush.bf16.msra.mxu0 %v995
        %1009 = vmatpush.bf16.msra.mxu0 %v994
        %1010 = vmatmul.bf16.gmra.mxu0 %v1000
        %v1011 = vpop.f32.mrf.mxu0
        %v1012 = vadd.f32 %v984, %v1011
        %v1013 = vpop.f32.mrf.mxu0
        %1014 = vdwg.mxu0
        %v1016 = vperm.slane %v977, 0
        %v1022 = vunpack.c.l.b16 %v973
        %v1023 = vunpack.c.l.b16 %v974
        %v1024 = vunpack.c.l.b16 %v975
        %v1025 = vunpack.c.l.b16 %v976
        %v1026 = vpack.c.b16 %v1023, %v1022
        %v1027 = vpack.c.b16 %v1025, %v1024
        %1030 = vmatpush.bf16.msra.mxu0 0
        %1031 = vmatpush.bf16.msra.mxu0 0
        %1032 = vmatpush.bf16.msra.mxu0 0
        %1033 = vmatpush.bf16.msra.mxu0 0
        %1034 = vmatpush.bf16.msra.mxu0 0
        %1035 = vmatpush.bf16.msra.mxu0 0
        %1036 = vmatpush.bf16.msra.mxu0 %v1027
        %1037 = vmatpush.bf16.msra.mxu0 %v1026
        %1038 = vmatmul.bf16.gmra.mxu0 %v1000
        %v1039 = vpop.f32.mrf.mxu0
        %v1040 = vadd.f32 %v1016, %v1039
        %v1041 = vpop.f32.mrf.mxu0
        %1042 = vdwg.mxu0
        %v1043 = vpack.c.bf16 %v1012, %v1012
        %v1044 = vpack.c.bf16 %v1040, %v1040
        %vm1045 = vcmask 64512
        %v1047 = vsel %vm1045, %v1043, 0
        %v1050 = vsel %vm1045, %v1044, 0
        %1052 = vmatpush.bf16.xpose.msra.mxu0 0
        %1053 = vmatpush.bf16.xpose.msra.mxu0 0
        %1054 = vmatpush.bf16.xpose.msra.mxu0 0
        %1055 = vmatpush.bf16.xpose.msra.mxu0 0
        %1056 = vmatpush.bf16.xpose.msra.mxu0 0
        %1057 = vmatpush.bf16.xpose.msra.mxu0 0
        %1058 = vmatpush.bf16.xpose.msra.mxu0 0
        %1059 = vmatpush.bf16.xpose.msra.mxu0 %v1050
        %1060 = vmatmul.bf16.gmra.mxu0 %v1047
        %v1061 = vpop.f32.mrf.mxu0
        %v1062 = vadd.f32 0.0, %v1061
        %v1063 = vpop.f32.mrf.mxu0
        %1064 = vdwg.mxu0
        %v1065 = vmul.f32 %v1062, 0.35355338
        %v1066 = vsel %vm966, %v1065, -1e+09
        %v1067 = vsel %vm1045, %v1066, -inf
        %1068 = vmax.xlane.f32.xlu0 %v1067
        %v1069 = vpop.xlane.xlu0 %1068
        %v1070 = vsub.f32 %v1066, %v1069
        %v1071 = vmul.f32 %v1070, 1.442695
        %v1072 = vpow.pop %v1071
        %v1073 = vsel %vm1045, %v1072, 0.0
        %1074 = vadd.xlane.f32.xlu0 %v1073
        %v1075 = vpop.xlane.xlu0 %1074
        %v1076 = vrcp.pop %v1075
        %v1077 = vmul.f32 %v1072, %v1076
        %v1078 = vpack.c.bf16 %v1077, %v1077
        %v1080 = vunpack.c.l.b16 %v1044
        %v1081 = vpack.c.b16 %v1080, %v1080
        %1082 = vrot.lane.b32.xlu0 %v1081, 96
        %v1083 = vpop.permute.xlu0 %1082
        %v1085 = vsel %vm1045, %v1078, 0
        %vm1087 = vcmask 1043456
        %v1089 = vsel %vm1087, %v1083, 0
        %1091 = vmatpush.bf16.msra.mxu0 0
        %1092 = vmatpush.bf16.msra.mxu0 0
        %1093 = vmatpush.bf16.msra.mxu0 0
        %1094 = vmatpush.bf16.msra.mxu0 0
        %1095 = vmatpush.bf16.msra.mxu0 0
        %1096 = vmatpush.bf16.msra.mxu0 0
        %1097 = vmatpush.bf16.msra.mxu0 0
        %1098 = vmatpush.bf16.msra.mxu0 %v1089
        %1099 = vmatmul.bf16.gmra.mxu0 %v1085
        %v1100 = vpop.f32.mrf.mxu0
        %v1101 = vadd.f32 0.0, %v1100
        %v1102 = vpop.f32.mrf.mxu0
        %1103 = vdwg.mxu0
        %1104 = vst.msk [vmem:[#allocation2] sm:$0xff] %vm1045, %v1101
        %v1106 = vunpack.c.l.b16 %v1043
        %v1107 = vpack.c.b16 %v1106, %v1106
        %1108 = vrot.lane.b32.xlu0 %v1107, 120
        %v1109 = vpop.permute.xlu0 %1108
        %1110 = vrot.lane.b32.xlu0 %v1081, 120
        %v1111 = vpop.permute.xlu0 %1110
        %v1113 = vsel %vm1045, %v1109, 0
        %v1116 = vsel %vm1045, %v1111, 0
        %1118 = vmatpush.bf16.xpose.msra.mxu0 0
        %1119 = vmatpush.bf16.xpose.msra.mxu0 0
        %1120 = vmatpush.bf16.xpose.msra.mxu0 0
        %1121 = vmatpush.bf16.xpose.msra.mxu0 0
        %1122 = vmatpush.bf16.xpose.msra.mxu0 0
        %1123 = vmatpush.bf16.xpose.msra.mxu0 0
        %1124 = vmatpush.bf16.xpose.msra.mxu0 0
        %1125 = vmatpush.bf16.xpose.msra.mxu0 %v1116
        %1126 = vmatmul.bf16.gmra.mxu0 %v1113
        %v1127 = vpop.f32.mrf.mxu0
        %v1128 = vadd.f32 0.0, %v1127
        %v1129 = vpop.f32.mrf.mxu0
        %1130 = vdwg.mxu0
        %v1131 = vmul.f32 %v1128, 0.35355338
        %v1132 = vsel %vm966, %v1131, -1e+09
        %v1133 = vsel %vm1045, %v1132, -inf
        %1134 = vmax.xlane.f32.xlu0 %v1133
        %v1135 = vpop.xlane.xlu0 %1134
        %v1136 = vsub.f32 %v1132, %v1135
        %v1137 = vmul.f32 %v1136, 1.442695
        %v1138 = vpow.pop %v1137
        %v1139 = vsel %vm1045, %v1138, 0.0
        %1140 = vadd.xlane.f32.xlu0 %v1139
        %v1141 = vpop.xlane.xlu0 %1140
        %v1142 = vrcp.pop %v1141
        %v1143 = vmul.f32 %v1138, %v1142
        %v1144 = vpack.c.bf16 %v1143, %v1143
        %1145 = vrot.lane.b32.xlu0 %v1081, 88
        %v1146 = vpop.permute.xlu0 %1145
        %v1148 = vsel %vm1045, %v1144, 0
        %v1151 = vsel %vm1087, %v1146, 0
        %1153 = vmatpush.bf16.msra.mxu0 0
        %1154 = vmatpush.bf16.msra.mxu0 0
        %1155 = vmatpush.bf16.msra.mxu0 0
        %1156 = vmatpush.bf16.msra.mxu0 0
        %1157 = vmatpush.bf16.msra.mxu0 0
        %1158 = vmatpush.bf16.msra.mxu0 0
        %1159 = vmatpush.bf16.msra.mxu0 0
        %1160 = vmatpush.bf16.msra.mxu0 %v1151
        %1161 = vmatmul.bf16.gmra.mxu0 %v1148
        %v1162 = vpop.f32.mrf.mxu0
        %v1163 = vadd.f32 0.0, %v1162
        %v1164 = vpop.f32.mrf.mxu0
        %1165 = vdwg.mxu0
        %1167 = vrot.lane.b32.xlu0 %v1163, 8
        %v1168 = vpop.permute.xlu0 %1167
        %vm1170 = vcmask 130112
        %1171 = vst.msk [vmem:[#allocation2] sm:$0xff] %vm1170, %v1168
        %1172 = vrot.lane.b32.xlu0 %v1107, 112
        %v1173 = vpop.permute.xlu0 %1172
        %1174 = vrot.lane.b32.xlu0 %v1081, 112
        %v1175 = vpop.permute.xlu0 %1174
        %v1177 = vsel %vm1045, %v1173, 0
        %v1180 = vsel %vm1045, %v1175, 0
        %1182 = vmatpush.bf16.xpose.msra.mxu0 0
        %1183 = vmatpush.bf16.xpose.msra.mxu0 0
        %1184 = vmatpush.bf16.xpose.msra.mxu0 0
        %1185 = vmatpush.bf16.xpose.msra.mxu0 0
        %1186 = vmatpush.bf16.xpose.msra.mxu0 0
        %1187 = vmatpush.bf16.xpose.msra.mxu0 0
        %1188 = vmatpush.bf16.xpose.msra.mxu0 0
        %1189 = vmatpush.bf16.xpose.msra.mxu0 %v1180
        %1190 = vmatmul.bf16.gmra.mxu0 %v1177
        %v1191 = vpop.f32.mrf.mxu0
        %v1192 = vadd.f32 0.0, %v1191
        %v1193 = vpop.f32.mrf.mxu0
        %1194 = vdwg.mxu0
        %v1195 = vmul.f32 %v1192, 0.35355338
        %v1196 = vsel %vm966, %v1195, -1e+09
        %v1197 = vsel %vm1045, %v1196, -inf
        %1198 = vmax.xlane.f32.xlu0 %v1197
        %v1199 = vpop.xlane.xlu0 %1198
        %v1200 = vsub.f32 %v1196, %v1199
        %v1201 = vmul.f32 %v1200, 1.442695
        %v1202 = vpow.pop %v1201
        %v1203 = vsel %vm1045, %v1202, 0.0
        %1204 = vadd.xlane.f32.xlu0 %v1203
        %v1205 = vpop.xlane.xlu0 %1204
        %v1206 = vrcp.pop %v1205
        %v1207 = vmul.f32 %v1202, %v1206
        %v1208 = vpack.c.bf16 %v1207, %v1207
        %1209 = vrot.lane.b32.xlu0 %v1081, 80
        %v1210 = vpop.permute.xlu0 %1209
        %v1212 = vsel %vm1045, %v1208, 0
        %v1215 = vsel %vm1087, %v1210, 0
        %1217 = vmatpush.bf16.msra.mxu0 0
        %1218 = vmatpush.bf16.msra.mxu0 0
        %1219 = vmatpush.bf16.msra.mxu0 0
        %1220 = vmatpush.bf16.msra.mxu0 0
        %1221 = vmatpush.bf16.msra.mxu0 0
        %1222 = vmatpush.bf16.msra.mxu0 0
        %1223 = vmatpush.bf16.msra.mxu0 0
        %1224 = vmatpush.bf16.msra.mxu0 %v1215
        %1225 = vmatmul.bf16.gmra.mxu0 %v1212
        %v1226 = vpop.f32.mrf.mxu0
        %v1227 = vadd.f32 0.0, %v1226
        %v1228 = vpop.f32.mrf.mxu0
        %1229 = vdwg.mxu0
        %1231 = vrot.lane.b32.xlu0 %v1227, 16
        %v1232 = vpop.permute.xlu0 %1231
        %vm1234 = vcmask 195712
        %1235 = vst.msk [vmem:[#allocation2] sm:$0xff] %vm1234, %v1232
        %1236 = vrot.lane.b32.xlu0 %v1107, 104
        %v1237 = vpop.permute.xlu0 %1236
        %1238 = vrot.lane.b32.xlu0 %v1081, 104
        %v1239 = vpop.permute.xlu0 %1238
        %v1241 = vsel %vm1045, %v1237, 0
        %v1244 = vsel %vm1045, %v1239, 0
        %1246 = vmatpush.bf16.xpose.msra.mxu0 0
        %1247 = vmatpush.bf16.xpose.msra.mxu0 0
        %1248 = vmatpush.bf16.xpose.msra.mxu0 0
        %1249 = vmatpush.bf16.xpose.msra.mxu0 0
        %1250 = vmatpush.bf16.xpose.msra.mxu0 0
        %1251 = vmatpush.bf16.xpose.msra.mxu0 0
        %1252 = vmatpush.bf16.xpose.msra.mxu0 0
        %1253 = vmatpush.bf16.xpose.msra.mxu0 %v1244
        %1254 = vmatmul.bf16.gmra.mxu0 %v1241
        %v1255 = vpop.f32.mrf.mxu0
        %v1256 = vadd.f32 0.0, %v1255
        %v1257 = vpop.f32.mrf.mxu0
        %1258 = vdwg.mxu0
        %v1259 = vmul.f32 %v1256, 0.35355338
        %v1260 = vsel %vm966, %v1259, -1e+09
        %v1261 = vsel %vm1045, %v1260, -inf
        %1262 = vmax.xlane.f32.xlu0 %v1261
        %v1263 = vpop.xlane.xlu0 %1262
        %v1264 = vsub.f32 %v1260, %v1263
        %v1265 = vmul.f32 %v1264, 1.442695
        %v1266 = vpow.pop %v1265
        %v1267 = vsel %vm1045, %v1266, 0.0
        %1268 = vadd.xlane.f32.xlu0 %v1267
        %v1269 = vpop.xlane.xlu0 %1268
        %v1270 = vrcp.pop %v1269
        %v1271 = vmul.f32 %v1266, %v1270
        %v1272 = vpack.c.bf16 %v1271, %v1271
        %1273 = vrot.lane.b32.xlu0 %v1081, 72
        %v1274 = vpop.permute.xlu0 %1273
        %v1276 = vsel %vm1045, %v1272, 0
        %v1279 = vsel %vm1087, %v1274, 0
        %1281 = vmatpush.bf16.msra.mxu0 0
        %1282 = vmatpush.bf16.msra.mxu0 0
        %1283 = vmatpush.bf16.msra.mxu0 0
        %1284 = vmatpush.bf16.msra.mxu0 0
        %1285 = vmatpush.bf16.msra.mxu0 0
        %1286 = vmatpush.bf16.msra.mxu0 0
        %1287 = vmatpush.bf16.msra.mxu0 0
        %1288 = vmatpush.bf16.msra.mxu0 %v1279
        %1289 = vmatmul.bf16.gmra.mxu0 %v1276
        %v1290 = vpop.f32.mrf.mxu0
        %v1291 = vadd.f32 0.0, %v1290
        %v1292 = vpop.f32.mrf.mxu0
        %1293 = vdwg.mxu0
        %1295 = vrot.lane.b32.xlu0 %v1291, 24
        %v1296 = vpop.permute.xlu0 %1295
        %vm1298 = vcmask 261312
        %1299 = vst.msk [vmem:[#allocation2] sm:$0xff] %vm1298, %v1296
        %v1300 = vld [vmem:[#allocation2] sm:$0xff]
        %v1301 = vpack.c.bf16 %v1300, %v1300
        %v1303 = vperm.slane %v982, 0
        %v1309 = vunpack.c.l.b16 %v978
        %v1310 = vunpack.c.l.b16 %v979
        %v1311 = vunpack.c.l.b16 %v980
        %v1312 = vunpack.c.l.b16 %v981
        %v1313 = vpack.c.b16 %v1310, %v1309
        %v1314 = vpack.c.b16 %v1312, %v1311
        %v1318 = vsel %vm998, %v1301, 0
        %1320 = vmatpush.bf16.msra.mxu0 0
        %1321 = vmatpush.bf16.msra.mxu0 0
        %1322 = vmatpush.bf16.msra.mxu0 0
        %1323 = vmatpush.bf16.msra.mxu0 0
        %1324 = vmatpush.bf16.msra.mxu0 0
        %1325 = vmatpush.bf16.msra.mxu0 0
        %1326 = vmatpush.bf16.msra.mxu0 %v1314
        %1327 = vmatpush.bf16.msra.mxu0 %v1313
        %1328 = vmatmul.bf16.gmra.mxu0 %v1318
        %v1329 = vpop.f32.mrf.mxu0
        %v1330 = vadd.f32 %v1303, %v1329
        %v1331 = vpop.f32.mrf.mxu0
        %1332 = vdwg.mxu0
        %v1333 = vld [vmem:[%s10] sm:$0x1]
        %v1334 = vld [vmem:[%s11] sm:$0x1]
        %v1335 = vadd.f32 %v953, %v1330
        %v1336 = vsel %vm998, %v1335, 0.0
        %1337 = vadd.xlane.f32.xlu0 %v1336
        %v1338 = vpop.xlane.xlu0 %1337
        %v1339 = vrcp.pop 32.0
        %v1340 = vmul.f32 32.0, %v1339
        %v1341 = vsub.f32 1.0, %v1340
        %v1342 = vmul.f32 %v1339, %v1341
        %v1343 = vadd.f32 %v1339, %v1342
        %vm1344 = vweird.f32 %v1339
        %v1345 = vsel %vm1344, %v1339, %v1343
        %v1346 = vmul.f32 %v1338, %v1345
        %v1347 = vsub.f32 %v1335, %v1346
        %v1348 = vmul.f32 %v1347, %v1347
        %v1349 = vsel %vm998, %v1348, 0.0
        %1350 = vadd.xlane.f32.xlu0 %v1349
        %v1351 = vpop.xlane.xlu0 %1350
        %v1352 = vmul.f32 %v1351, %v1345
        %v1353 = vadd.f32 %v1352, 1e-05
        %v1354 = vrsqrt.pop %v1353
        %v1355 = vmul.f32 %v1354, %v1353
        %v1356 = vmul.f32 %v1355, %v1354
        %v1357 = vmul.f32 0.5, %v1356
        %v1358 = vsub.f32 1.5, %v1357
        %v1359 = vmul.f32 %v1354, %v1358
        %vm1360 = vweird.f32 %v1353
        %vm1361 = vweird.f32 %v1354
        %vm1362 = vmor %vm1360, %vm1361
        %v1363 = vsel %vm1362, %v1354, %v1359
        %v1364 = vmul.f32 %v1347, %v1363
        %v1366 = vperm.slane %v1333, 0
        %v1368 = vmul.f32 %v1364, %v1366
        %v1370 = vperm.slane %v1334, 0
        %v1372 = vadd.f32 %v1368, %v1370
        %v1373 = vpack.c.bf16 %v1372, %v1372
        %v1374 = vld [vmem:[%s941] sm:$0xf]
        %v1375 = vld [vmem:[%s941 + $0x4] sm:$0xf]
        %v1376 = vld [vmem:[%s12] sm:$0xf]
        %v1377 = vld [vmem:[%s12 + $0x4] sm:$0xf]
        %v1378 = vld [vmem:[%s12 + $0x8] sm:$0xf]
        %v1379 = vld [vmem:[%s12 + $0xc] sm:$0xf]
        %v1380 = vld [vmem:[%s13] sm:$0x1]
        %v1381 = vld [vmem:[%s14] sm:$0xf]
        %v1382 = vld [vmem:[%s14 + $0x4] sm:$0xf]
        %v1383 = vld [vmem:[%s14 + $0x8] sm:$0xf]
        %v1384 = vld [vmem:[%s14 + $0xc] sm:$0xf]
        %v1385 = vld [vmem:[#allocation3] sm:$0x1]
        %v1386 = vld [vmem:[%s16] sm:$0xf]
        %v1387 = vld [vmem:[%s16 + $0x4] sm:$0xf]
        %v1388 = vld [vmem:[%s16 + $0x8] sm:$0xf]
        %v1389 = vld [vmem:[%s16 + $0xc] sm:$0xf]
        %v1390 = vld [vmem:[#allocation5] sm:$0x1]
        %v1392 = vperm.slane %v1380, 0
        %v1398 = vunpack.c.l.b16 %v1376
        %v1399 = vunpack.c.l.b16 %v1377
        %v1400 = vunpack.c.l.b16 %v1378
        %v1401 = vunpack.c.l.b16 %v1379
        %v1402 = vpack.c.b16 %v1399, %v1398
        %v1403 = vpack.c.b16 %v1401, %v1400
        %v1407 = vsel %vm998, %v1373, 0
        %1409 = vmatpush.bf16.msra.mxu0 0
        %1410 = vmatpush.bf16.msra.mxu0 0
        %1411 = vmatpush.bf16.msra.mxu0 0
        %1412 = vmatpush.bf16.msra.mxu0 0
        %1413 = vmatpush.bf16.msra.mxu0 0
        %1414 = vmatpush.bf16.msra.mxu0 0
        %1415 = vmatpush.bf16.msra.mxu0 %v1403
        %1416 = vmatpush.bf16.msra.mxu0 %v1402
        %1417 = vmatmul.bf16.gmra.mxu0 %v1407
        %v1418 = vpop.f32.mrf.mxu0
        %v1419 = vadd.f32 %v1392, %v1418
        %v1420 = vpop.f32.mrf.mxu0
        %1421 = vdwg.mxu0
        %v1423 = vperm.slane %v1385, 0
        %v1427 = vunpack.c.l.b16 %v1374
        %v1428 = vunpack.c.l.b16 %v1375
        %v1429 = vpack.c.b16 %v1428, %v1427
        %v1434 = vunpack.c.l.b16 %v1381
        %v1435 = vunpack.c.l.b16 %v1382
        %v1436 = vunpack.c.l.b16 %v1383
        %v1437 = vunpack.c.l.b16 %v1384
        %v1438 = vpack.c.b16 %v1435, %v1434
        %v1439 = vpack.c.b16 %v1437, %v1436
        %v1443 = vsel %vm998, %v1429, 0
        %1445 = vmatpush.bf16.msra.mxu0 0
        %1446 = vmatpush.bf16.msra.mxu0 0
        %1447 = vmatpush.bf16.msra.mxu0 0
        %1448 = vmatpush.bf16.msra.mxu0 0
        %1449 = vmatpush.bf16.msra.mxu0 0
        %1450 = vmatpush.bf16.msra.mxu0 0
        %1451 = vmatpush.bf16.msra.mxu0 %v1439
        %1452 = vmatpush.bf16.msra.mxu0 %v1438
        %1453 = vmatmul.bf16.gmra.mxu0 %v1443
        %v1454 = vpop.f32.mrf.mxu0
        %v1455 = vadd.f32 %v1423, %v1454
        %v1456 = vpop.f32.mrf.mxu0
        %v1457 = vadd.f32 %v1423, %v1456
        %1458 = vdwg.mxu0
        %v1459 = vpack.c.bf16 %v1419, %v1419
        %v1460 = vpack.c.bf16 %v1455, %v1455
        %v1461 = vpack.c.bf16 %v1457, %v1457
        %v1464 = vunpack.c.l.b16 %v1460
        %v1465 = vunpack.c.l.b16 %v1461
        %v1466 = vpack.c.b16 %v1465, %v1464
        %v1468 = vsel %vm1045, %v1459, 0
        %v1471 = vsel %vm1045, %v1466, 0
        %1473 = vmatpush.bf16.xpose.msra.mxu0 0
        %1474 = vmatpush.bf16.xpose.msra.mxu0 0
        %1475 = vmatpush.bf16.xpose.msra.mxu0 0
        %1476 = vmatpush.bf16.xpose.msra.mxu0 0
        %1477 = vmatpush.bf16.xpose.msra.mxu0 0
        %1478 = vmatpush.bf16.xpose.msra.mxu0 0
        %1479 = vmatpush.bf16.xpose.msra.mxu0 0
        %1480 = vmatpush.bf16.xpose.msra.mxu0 %v1471
        %1481 = vmatmul.bf16.gmra.mxu0 %v1468
        %v1482 = vpop.f32.mrf.mxu0
        %v1483 = vadd.f32 0.0, %v1482
        %v1484 = vpop.f32.mrf.mxu0
        %1485 = vdwg.mxu0
        %v1486 = vmul.f32 %v1483, 0.35355338
        %v1487 = vsel %vm957, 1, 0
        %v1488 = vperm.slane %v1487, 0
        %vm1489 = vcmp.eq.s32.totalorder %v1488, 1
        %v1490 = vsel %vm1489, %v1486, -1e+09
        %vm1491 = vcmask 130048
        %v1492 = vsel %vm1491, %v1490, -inf
        %1493 = vmax.xlane.f32.xlu0 %v1492
        %v1494 = vpop.xlane.xlu0 %1493
        %v1495 = vsub.f32 %v1490, %v1494
        %v1496 = vmul.f32 %v1495, 1.442695
        %v1497 = vpow.pop %v1496
        %v1498 = vsel %vm1491, %v1497, 0.0
        %1499 = vadd.xlane.f32.xlu0 %v1498
        %v1500 = vpop.xlane.xlu0 %1499
        %v1501 = vrcp.pop %v1500
        %v1502 = vmul.f32 %v1497, %v1501
        %v1503 = vpack.c.bf16 %v1502, %v1502
        %1504 = vrot.lane.b32.xlu0 %v1466, 96
        %v1505 = vpop.permute.xlu0 %1504
        %v1508 = vsel %vm1491, %v1503, 0
        %1510 = vmatpush.bf16.msra.mxu0 0
        %1511 = vmatpush.bf16.msra.mxu0 0
        %1512 = vmatpush.bf16.msra.mxu0 0
        %1513 = vmatpush.bf16.msra.mxu0 0
        %1514 = vmatpush.bf16.msra.mxu0 0
        %1515 = vmatpush.bf16.msra.mxu0 0
        %1516 = vmatpush.bf16.msra.mxu0 0
        %1517 = vmatpush.bf16.msra.mxu0 %v1505
        %1518 = vmatmul.bf16.gmra.mxu0 %v1508
        %v1519 = vpop.f32.mrf.mxu0
        %v1520 = vadd.f32 0.0, %v1519
        %v1521 = vpop.f32.mrf.mxu0
        %1522 = vdwg.mxu0
        %1523 = vst.msk [vmem:[#allocation2] sm:$0xff] %vm1045, %v1520
        %v1525 = vunpack.c.l.b16 %v1459
        %v1526 = vpack.c.b16 %v1525, %v1525
        %1527 = vrot.lane.b32.xlu0 %v1526, 120
        %v1528 = vpop.permute.xlu0 %1527
        %1529 = vrot.lane.b32.xlu0 %v1466, 120
        %v1530 = vpop.permute.xlu0 %1529
        %v1532 = vsel %vm1045, %v1528, 0
        %v1535 = vsel %vm1045, %v1530, 0
        %1537 = vmatpush.bf16.xpose.msra.mxu0 0
        %1538 = vmatpush.bf16.xpose.msra.mxu0 0
        %1539 = vmatpush.bf16.xpose.msra.mxu0 0
        %1540 = vmatpush.bf16.xpose.msra.mxu0 0
        %1541 = vmatpush.bf16.xpose.msra.mxu0 0
        %1542 = vmatpush.bf16.xpose.msra.mxu0 0
        %1543 = vmatpush.bf16.xpose.msra.mxu0 0
        %1544 = vmatpush.bf16.xpose.msra.mxu0 %v1535
        %1545 = vmatmul.bf16.gmra.mxu0 %v1532
        %v1546 = vpop.f32.mrf.mxu0
        %v1547 = vadd.f32 0.0, %v1546
        %v1548 = vpop.f32.mrf.mxu0
        %1549 = vdwg.mxu0
        %v1550 = vmul.f32 %v1547, 0.35355338
        %v1551 = vsel %vm1489, %v1550, -1e+09
        %v1552 = vsel %vm1491, %v1551, -inf
        %1553 = vmax.xlane.f32.xlu0 %v1552
        %v1554 = vpop.xlane.xlu0 %1553
        %v1555 = vsub.f32 %v1551, %v1554
        %v1556 = vmul.f32 %v1555, 1.442695
        %v1557 = vpow.pop %v1556
        %v1558 = vsel %vm1491, %v1557, 0.0
        %1559 = vadd.xlane.f32.xlu0 %v1558
        %v1560 = vpop.xlane.xlu0 %1559
        %v1561 = vrcp.pop %v1560
        %v1562 = vmul.f32 %v1557, %v1561
        %v1563 = vpack.c.bf16 %v1562, %v1562
        %1564 = vrot.lane.b32.xlu0 %v1466, 88
        %v1565 = vpop.permute.xlu0 %1564
        %v1568 = vsel %vm1491, %v1563, 0
        %1570 = vmatpush.bf16.msra.mxu0 0
        %1571 = vmatpush.bf16.msra.mxu0 0
        %1572 = vmatpush.bf16.msra.mxu0 0
        %1573 = vmatpush.bf16.msra.mxu0 0
        %1574 = vmatpush.bf16.msra.mxu0 0
        %1575 = vmatpush.bf16.msra.mxu0 0
        %1576 = vmatpush.bf16.msra.mxu0 0
        %1577 = vmatpush.bf16.msra.mxu0 %v1565
        %1578 = vmatmul.bf16.gmra.mxu0 %v1568
        %v1579 = vpop.f32.mrf.mxu0
        %v1580 = vadd.f32 0.0, %v1579
        %v1581 = vpop.f32.mrf.mxu0
        %1582 = vdwg.mxu0
        %1584 = vrot.lane.b32.xlu0 %v1580, 8
        %v1585 = vpop.permute.xlu0 %1584
        %1587 = vst.msk [vmem:[#allocation2] sm:$0xff] %vm1170, %v1585
        %1588 = vrot.lane.b32.xlu0 %v1526, 112
        %v1589 = vpop.permute.xlu0 %1588
        %1590 = vrot.lane.b32.xlu0 %v1466, 112
        %v1591 = vpop.permute.xlu0 %1590
        %v1593 = vsel %vm1045, %v1589, 0
        %v1596 = vsel %vm1045, %v1591, 0
        %1598 = vmatpush.bf16.xpose.msra.mxu0 0
        %1599 = vmatpush.bf16.xpose.msra.mxu0 0
        %1600 = vmatpush.bf16.xpose.msra.mxu0 0
        %1601 = vmatpush.bf16.xpose.msra.mxu0 0
        %1602 = vmatpush.bf16.xpose.msra.mxu0 0
        %1603 = vmatpush.bf16.xpose.msra.mxu0 0
        %1604 = vmatpush.bf16.xpose.msra.mxu0 0
        %1605 = vmatpush.bf16.xpose.msra.mxu0 %v1596
        %1606 = vmatmul.bf16.gmra.mxu0 %v1593
        %v1607 = vpop.f32.mrf.mxu0
        %v1608 = vadd.f32 0.0, %v1607
        %v1609 = vpop.f32.mrf.mxu0
        %1610 = vdwg.mxu0
        %v1611 = vmul.f32 %v1608, 0.35355338
        %v1612 = vsel %vm1489, %v1611, -1e+09
        %v1613 = vsel %vm1491, %v1612, -inf
        %1614 = vmax.xlane.f32.xlu0 %v1613
        %v1615 = vpop.xlane.xlu0 %1614
        %v1616 = vsub.f32 %v1612, %v1615
        %v1617 = vmul.f32 %v1616, 1.442695
        %v1618 = vpow.pop %v1617
        %v1619 = vsel %vm1491, %v1618, 0.0
        %1620 = vadd.xlane.f32.xlu0 %v1619
        %v1621 = vpop.xlane.xlu0 %1620
        %v1622 = vrcp.pop %v1621
        %v1623 = vmul.f32 %v1618, %v1622
        %v1624 = vpack.c.bf16 %v1623, %v1623
        %1625 = vrot.lane.b32.xlu0 %v1466, 80
        %v1626 = vpop.permute.xlu0 %1625
        %v1629 = vsel %vm1491, %v1624, 0
        %1631 = vmatpush.bf16.msra.mxu0 0
        %1632 = vmatpush.bf16.msra.mxu0 0
        %1633 = vmatpush.bf16.msra.mxu0 0
        %1634 = vmatpush.bf16.msra.mxu0 0
        %1635 = vmatpush.bf16.msra.mxu0 0
        %1636 = vmatpush.bf16.msra.mxu0 0
        %1637 = vmatpush.bf16.msra.mxu0 0
        %1638 = vmatpush.bf16.msra.mxu0 %v1626
        %1639 = vmatmul.bf16.gmra.mxu0 %v1629
        %v1640 = vpop.f32.mrf.mxu0
        %v1641 = vadd.f32 0.0, %v1640
        %v1642 = vpop.f32.mrf.mxu0
        %1643 = vdwg.mxu0
        %1645 = vrot.lane.b32.xlu0 %v1641, 16
        %v1646 = vpop.permute.xlu0 %1645
        %1648 = vst.msk [vmem:[#allocation2] sm:$0xff] %vm1234, %v1646
        %1649 = vrot.lane.b32.xlu0 %v1526, 104
        %v1650 = vpop.permute.xlu0 %1649
        %1651 = vrot.lane.b32.xlu0 %v1466, 104
        %v1652 = vpop.permute.xlu0 %1651
        %v1654 = vsel %vm1045, %v1650, 0
        %v1657 = vsel %vm1045, %v1652, 0
        %1659 = vmatpush.bf16.xpose.msra.mxu0 0
        %1660 = vmatpush.bf16.xpose.msra.mxu0 0
        %1661 = vmatpush.bf16.xpose.msra.mxu0 0
        %1662 = vmatpush.bf16.xpose.msra.mxu0 0
        %1663 = vmatpush.bf16.xpose.msra.mxu0 0
        %1664 = vmatpush.bf16.xpose.msra.mxu0 0
        %1665 = vmatpush.bf16.xpose.msra.mxu0 0
        %1666 = vmatpush.bf16.xpose.msra.mxu0 %v1657
        %1667 = vmatmul.bf16.gmra.mxu0 %v1654
        %v1668 = vpop.f32.mrf.mxu0
        %v1669 = vadd.f32 0.0, %v1668
        %v1670 = vpop.f32.mrf.mxu0
        %1671 = vdwg.mxu0
        %v1672 = vmul.f32 %v1669, 0.35355338
        %v1673 = vsel %vm1489, %v1672, -1e+09
        %v1674 = vsel %vm1491, %v1673, -inf
        %1675 = vmax.xlane.f32.xlu0 %v1674
        %v1676 = vpop.xlane.xlu0 %1675
        %v1677 = vsub.f32 %v1673, %v1676
        %v1678 = vmul.f32 %v1677, 1.442695
        %v1679 = vpow.pop %v1678
        %v1680 = vsel %vm1491, %v1679, 0.0
        %1681 = vadd.xlane.f32.xlu0 %v1680
        %v1682 = vpop.xlane.xlu0 %1681
        %v1683 = vrcp.pop %v1682
        %v1684 = vmul.f32 %v1679, %v1683
        %v1685 = vpack.c.bf16 %v1684, %v1684
        %1686 = vrot.lane.b32.xlu0 %v1466, 72
        %v1687 = vpop.permute.xlu0 %1686
        %v1690 = vsel %vm1491, %v1685, 0
        %1692 = vmatpush.bf16.msra.mxu0 0
        %1693 = vmatpush.bf16.msra.mxu0 0
        %1694 = vmatpush.bf16.msra.mxu0 0
        %1695 = vmatpush.bf16.msra.mxu0 0
        %1696 = vmatpush.bf16.msra.mxu0 0
        %1697 = vmatpush.bf16.msra.mxu0 0
        %1698 = vmatpush.bf16.msra.mxu0 0
        %1699 = vmatpush.bf16.msra.mxu0 %v1687
        %1700 = vmatmul.bf16.gmra.mxu0 %v1690
        %v1701 = vpop.f32.mrf.mxu0
        %v1702 = vadd.f32 0.0, %v1701
        %v1703 = vpop.f32.mrf.mxu0
        %1704 = vdwg.mxu0
        %1706 = vrot.lane.b32.xlu0 %v1702, 24
        %v1707 = vpop.permute.xlu0 %1706
        %1709 = vst.msk [vmem:[#allocation2] sm:$0xff] %vm1298, %v1707
        %v1710 = vld [vmem:[#allocation2] sm:$0xff]
        %v1711 = vpack.c.bf16 %v1710, %v1710
        %v1713 = vperm.slane %v1390, 0
        %v1719 = vunpack.c.l.b16 %v1386
        %v1720 = vunpack.c.l.b16 %v1387
        %v1721 = vunpack.c.l.b16 %v1388
        %v1722 = vunpack.c.l.b16 %v1389
        %v1723 = vpack.c.b16 %v1720, %v1719
        %v1724 = vpack.c.b16 %v1722, %v1721
        %v1728 = vsel %vm998, %v1711, 0
        %1730 = vmatpush.bf16.msra.mxu0 0
        %1731 = vmatpush.bf16.msra.mxu0 0
        %1732 = vmatpush.bf16.msra.mxu0 0
        %1733 = vmatpush.bf16.msra.mxu0 0
        %1734 = vmatpush.bf16.msra.mxu0 0
        %1735 = vmatpush.bf16.msra.mxu0 0
        %1736 = vmatpush.bf16.msra.mxu0 %v1724
        %1737 = vmatpush.bf16.msra.mxu0 %v1723
        %1738 = vmatmul.bf16.gmra.mxu0 %v1728
        %v1739 = vpop.f32.mrf.mxu0
        %v1740 = vadd.f32 %v1713, %v1739
        %v1741 = vpop.f32.mrf.mxu0
        %1742 = vdwg.mxu0
        %v1743 = vld [vmem:[#allocation7] sm:$0x1]
        %v1744 = vld [vmem:[#allocation8] sm:$0x1]
        %v1745 = vadd.f32 %v1372, %v1740
        %v1746 = vsel %vm998, %v1745, 0.0
        %1747 = vadd.xlane.f32.xlu0 %v1746
        %v1748 = vpop.xlane.xlu0 %1747
        %v1749 = vmul.f32 %v1748, %v1345
        %v1750 = vsub.f32 %v1745, %v1749
        %v1751 = vmul.f32 %v1750, %v1750
        %v1752 = vsel %vm998, %v1751, 0.0
        %1753 = vadd.xlane.f32.xlu0 %v1752
        %v1754 = vpop.xlane.xlu0 %1753
        %v1755 = vmul.f32 %v1754, %v1345
        %v1756 = vadd.f32 %v1755, 1e-05
        %v1757 = vrsqrt.pop %v1756
        %v1758 = vmul.f32 %v1757, %v1756
        %v1759 = vmul.f32 %v1758, %v1757
        %v1760 = vmul.f32 0.5, %v1759
        %v1761 = vsub.f32 1.5, %v1760
        %v1762 = vmul.f32 %v1757, %v1761
        %vm1763 = vweird.f32 %v1756
        %vm1764 = vweird.f32 %v1757
        %vm1765 = vmor %vm1763, %vm1764
        %v1766 = vsel %vm1765, %v1757, %v1762
        %v1767 = vmul.f32 %v1750, %v1766
        %v1769 = vperm.slane %v1743, 0
        %v1771 = vmul.f32 %v1767, %v1769
        %v1773 = vperm.slane %v1744, 0
        %v1775 = vadd.f32 %v1771, %v1773
        %v1776 = vpack.c.bf16 %v1775, %v1775
        %v1777 = vld [vmem:[%s20] sm:$0xf]
        %v1778 = vld [vmem:[%s20 + $0x4] sm:$0xf]
        %v1779 = vld [vmem:[%s20 + $0x8] sm:$0xf]
        %v1780 = vld [vmem:[%s20 + $0xc] sm:$0xf]
        %v1781 = vld [vmem:[#allocation10] sm:$0x1]
        %v1783 = vperm.slane %v1781, 0
        %v1789 = vunpack.c.l.b16 %v1777
        %v1790 = vunpack.c.l.b16 %v1778
        %v1791 = vunpack.c.l.b16 %v1779
        %v1792 = vunpack.c.l.b16 %v1780
        %v1793 = vpack.c.b16 %v1790, %v1789
        %v1794 = vpack.c.b16 %v1792, %v1791
        %v1798 = vsel %vm998, %v1776, 0
        %1800 = vmatpush.bf16.msra.mxu0 0
        %1801 = vmatpush.bf16.msra.mxu0 0
        %1802 = vmatpush.bf16.msra.mxu0 0
        %1803 = vmatpush.bf16.msra.mxu0 0
        %1804 = vmatpush.bf16.msra.mxu0 0
        %1805 = vmatpush.bf16.msra.mxu0 0
        %1806 = vmatpush.bf16.msra.mxu0 %v1794
        %1807 = vmatpush.bf16.msra.mxu0 %v1793
        %1808 = vmatmul.bf16.gmra.mxu0 %v1798
        %v1809 = vpop.f32.mrf.mxu0
        %v1810 = vadd.f32 %v1783, %v1809
        %v1811 = vpop.f32.mrf.mxu0
        %1812 = vdwg.mxu0
        %v1813 = vmax.f32 %v1810, 0.0
        %v1814 = vpack.c.bf16 %v1813, %v1813
        %v1815 = vld [vmem:[%s22] sm:$0xf]
        %v1816 = vld [vmem:[%s22 + $0x4] sm:$0xf]
        %v1817 = vld [vmem:[%s22 + $0x8] sm:$0xf]
        %v1818 = vld [vmem:[%s22 + $0xc] sm:$0xf]
        %v1819 = vld [vmem:[%s22 + $0x10] sm:$0xf]
        %v1820 = vld [vmem:[%s22 + $0x14] sm:$0xf]
        %v1821 = vld [vmem:[%s22 + $0x18] sm:$0xf]
        %v1822 = vld [vmem:[%s22 + $0x1c] sm:$0xf]
        %v1823 = vld [vmem:[#allocation11] sm:$0x1]
        %v1825 = vperm.slane %v1823, 0
        %v1835 = vunpack.c.l.b16 %v1815
        %v1836 = vunpack.c.l.b16 %v1816
        %v1837 = vunpack.c.l.b16 %v1817
        %v1838 = vunpack.c.l.b16 %v1818
        %v1839 = vunpack.c.l.b16 %v1819
        %v1840 = vunpack.c.l.b16 %v1820
        %v1841 = vunpack.c.l.b16 %v1821
        %v1842 = vunpack.c.l.b16 %v1822
        %v1843 = vpack.c.b16 %v1836, %v1835
        %v1844 = vpack.c.b16 %v1838, %v1837
        %v1845 = vpack.c.b16 %v1840, %v1839
        %v1846 = vpack.c.b16 %v1842, %v1841
        %vm1851 = vcmask 523264
        %v1853 = vsel %vm1851, %v1814, 0
        %1855 = vmatpush.bf16.msra.mxu0 0
        %1856 = vmatpush.bf16.msra.mxu0 0
        %1857 = vmatpush.bf16.msra.mxu0 0
        %1858 = vmatpush.bf16.msra.mxu0 0
        %1859 = vmatpush.bf16.msra.mxu0 %v1846
        %1860 = vmatpush.bf16.msra.mxu0 %v1845
        %1861 = vmatpush.bf16.msra.mxu0 %v1844
        %1862 = vmatpush.bf16.msra.mxu0 %v1843
        %1863 = vmatmul.bf16.gmra.mxu0 %v1853
        %v1864 = vpop.f32.mrf.mxu0
        %v1865 = vadd.f32 %v1825, %v1864
        %v1866 = vpop.f32.mrf.mxu0
        %1867 = vdwg.mxu0
        %v1868 = vld [vmem:[#allocation13] sm:$0x1]
        %v1869 = vld [vmem:[#allocation14] sm:$0x1]
        %v1870 = vadd.f32 %v1775, %v1865
        %v1871 = vsel %vm998, %v1870, 0.0
        %1872 = vadd.xlane.f32.xlu0 %v1871
        %v1873 = vpop.xlane.xlu0 %1872
        %v1874 = vmul.f32 %v1873, %v1345
        %v1875 = vsub.f32 %v1870, %v1874
        %v1876 = vmul.f32 %v1875, %v1875
        %v1877 = vsel %vm998, %v1876, 0.0
        %1878 = vadd.xlane.f32.xlu0 %v1877
        %v1879 = vpop.xlane.xlu0 %1878
        %v1880 = vmul.f32 %v1879, %v1345
        %v1881 = vadd.f32 %v1880, 1e-05
        %v1882 = vrsqrt.pop %v1881
        %v1883 = vmul.f32 %v1882, %v1881
        %v1884 = vmul.f32 %v1883, %v1882
        %v1885 = vmul.f32 0.5, %v1884
        %v1886 = vsub.f32 1.5, %v1885
        %v1887 = vmul.f32 %v1882, %v1886
        %vm1888 = vweird.f32 %v1881
        %vm1889 = vweird.f32 %v1882
        %vm1890 = vmor %vm1888, %vm1889
        %v1891 = vsel %vm1890, %v1882, %v1887
        %v1892 = vmul.f32 %v1875, %v1891
        %v1894 = vperm.slane %v1868, 0
        %v1896 = vmul.f32 %v1892, %v1894
        %v1898 = vperm.slane %v1869, 0
        %v1900 = vadd.f32 %v1896, %v1898
        %1901 = vst.msk [vmem:[%s951] sm:$0xff] %vm998, %v1900
        %p1902 = scmp.lt.s32.totalorder %s42, 1
        %s1903 = scalar_select %p1902, %s42, 1
        %s1904 = smul.addr %s1903, 8
        %s1905 = scalar_lea.vmem %s26, %s1904
        // Predicated region
        $region157: #{transformer_decoder_forward.4} parent=123 // pred_check
          %p1906 = pneg %p626
        $region158: #{transformer_decoder_forward.4} parent=123 // pred_check_branch
          %1908 = sbr.rel (%p1906) target = $region160
        $region159: #{transformer_decoder_forward.4} parent=123 // pred_region
          _
        $region160: #{transformer_decoder_forward.4} parent=123 // pred_fallthru
          _
      $region124: #{transformer_decoder_forward.4} parent=5 // pred_fallthru
        _
      %p1909 = scmp.le.s32.totalorder 2, %s37
      // Predicated region
      $region161: #{transformer_decoder_forward.4} parent=5 // pred_check
        %p1910 = pneg %p1909
      $region162: #{transformer_decoder_forward.4} parent=5 // pred_check_branch
        %1912 = sbr.rel (%p1910) target = $region164
      $region163: #{transformer_decoder_forward.4} parent=5 // pred_region
        %s1913 = ssub.s32 %s37, 2
        // Predicated region
        $region165: #{transformer_decoder_forward.4} parent=163 // pred_check
          %p1914 = pneg %p632
        $region166: #{transformer_decoder_forward.4} parent=163 // pred_check_branch
          %1916 = sbr.rel (%p1914) target = $region168
        $region167: #{transformer_decoder_forward.4} parent=163 // pred_region
          %p1917 = scmp.lt.s32.totalorder %s43, 1
          %s1918 = scalar_select %p1917, %s43, 1
          %s1919 = smul.addr %s1918, 8
          %s1920 = scalar_lea.vmem %s26, %s1919
        $region168: #{transformer_decoder_forward.4} parent=163 // pred_fallthru
          _
      $region164: #{transformer_decoder_forward.4} parent=5 // pred_fallthru
        _
    $region6: #{transformer_decoder_forward.4} parent=1 // loop_footer
      %s41 = sadd.s32 1, %s37
    $region7: #{transformer_decoder_forward.4} parent=1 // loop_footer_branch
      %36 = sbr.rel target = $region3
    $region8: #{transformer_decoder_forward.4} parent=1 // loop_exit
      _
    %1921 = vsyncpa [#allocation4], 1
    %s1922 = scalar_lea.sflag [#allocation4], 1
    %1923 = vsyncpa %s1922, 1
    %1924 = vsyncpa [#allocation6], 1
    %1925 = vsyncpa [#allocation9], 1
    %1926 = vsyncpa [#allocation12], 1
    %1927 = vsyncpa [#allocation15], 1

</llo_original>
